<compile_context>
chip_gen: v6e
topology: v6e:2x2x1
jax: 0.10.0
libtpu: 0.0.40
codegen_flags: <defaults>
</compile_context>

<pallas_src>
import functools

import jax
import jax.numpy as jnp
from jax.experimental import pallas as pl
from jax.experimental.pallas import tpu as pltpu


def _conv_in_lrelu_kernel(x_ref, w_ref, e_ref, o_ref, patch_ref, *,
                          T, X, Y, negative_slope, eps):
    n = T * X * Y
    c_in = x_ref.shape[1]

    xv = x_ref[0]                      # (C_in, N) f32; N = T*X*Y sits in the lane dim

    # im2col: each 3x3x3 tap is a uniform lane roll of the flattened (unpadded)
    # volume.  Source positions that would land in the zero padding are killed by a
    # per-tap mask built as the product of <=2 factorized boundary rows:
    #   e_ref rows 0/1: t>=1 / t<=T-2, rows 2/3: x>=1 / x<=X-2, rows 4/5: y>=1 / y<=Y-2.
    for k in range(27):
        dz, dy, dx = k // 9, (k // 3) % 3, k % 3
        off = (dz - 1) * X * Y + (dy - 1) * Y + (dx - 1)
        src = xv if off == 0 else pltpu.roll(xv, shift=(-off) % n, axis=1)

        mask = None
        for sel, lo_row in ((dz, 0), (dy, 2), (dx, 4)):
            if sel == 1:                       # mid tap along this axis: always valid
                continue
            r = lo_row + (sel // 2)            # sel==0 -> lo row, sel==2 -> hi row
            row = e_ref[r:r + 1, :]            # (1, N), broadcasts over C_in sublanes
            mask = row if mask is None else mask * row

        patch_ref[k * c_in:(k + 1) * c_in, :] = src if mask is None else src * mask

    # Whole convolution as a single MXU matmul with K = 27*C_in.
    acc = jnp.dot(w_ref[...], patch_ref[...],
                  preferred_element_type=jnp.float32)          # (C_out, N)

    # InstanceNorm3d: per (batch, channel) stats over all spatial positions,
    # biased variance, eps, no affine.  Fused sum / sum-of-squares (single pass).
    inv_n = 1.0 / n
    s1 = jnp.sum(acc, axis=1, keepdims=True)
    s2 = jnp.sum(acc * acc, axis=1, keepdims=True)
    mean = s1 * inv_n
    var = s2 * inv_n - mean * mean
    yhat = (acc - mean) * jax.lax.rsqrt(var + eps)

    # LeakyReLU(negative_slope); lane-dense (C_out, N) store.
    o_ref[0] = jnp.where(yhat >= 0, yhat, negative_slope * yhat)


def conv_block_3d(x, w, *, negative_slope=0.2, eps=1e-5):
    """x: (B, C_in, T, X, Y) float32 (NCDHW); w: (C_out, C_in, 3, 3, 3) float32."""
    B, c_in, T, X, Y = x.shape
    c_out = w.shape[0]
    n = T * X * Y

    # Free reshapes only: no transpose, no jnp.pad (no extra HBM passes over x).
    x_flat = x.reshape(B, c_in, n).astype(jnp.float32)
    # Weight columns ordered as (tap k = dz*9 + dy*3 + dx, ci) to match patch rows.
    w2 = jnp.transpose(w, (0, 2, 3, 4, 1)).reshape(c_out, 27 * c_in).astype(jnp.float32)

    # Factorized boundary rows over the flattened volume (emulate padding=1).
    # 6 real rows + 2 padding rows -> (8, N) for sublane alignment; constant-folded.
    t = jnp.arange(T).reshape(T, 1, 1)
    xx = jnp.arange(X).reshape(1, X, 1)
    yy = jnp.arange(Y).reshape(1, 1, Y)

    def flat(v):
        return jnp.broadcast_to(v, (T, X, Y)).reshape(1, n)

    edge = jnp.concatenate(
        [flat(t >= 1), flat(t <= T - 2),
         flat(xx >= 1), flat(xx <= X - 2),
         flat(yy >= 1), flat(yy <= Y - 2),
         jnp.ones((1, n), dtype=bool), jnp.ones((1, n), dtype=bool)],
        axis=0).astype(jnp.float32)                                  # (8, N)

    kernel = functools.partial(_conv_in_lrelu_kernel, T=T, X=X, Y=Y,
                               negative_slope=negative_slope, eps=eps)
    out = pl.pallas_call(
        kernel,
        out_shape=jax.ShapeDtypeStruct((B, c_out, n), jnp.float32),
        grid=(B,),
        in_specs=[
            pl.BlockSpec((1, c_in, n), lambda b: (b, 0, 0)),         # activations
            pl.BlockSpec((c_out, 27 * c_in), lambda b: (0, 0)),      # folded weights
            pl.BlockSpec((8, n), lambda b: (0, 0)),                  # boundary rows
        ],
        out_specs=pl.BlockSpec((1, c_out, n), lambda b: (b, 0, 0)),
        scratch_shapes=[pltpu.VMEM((27 * c_in, n), jnp.float32)],    # im2col patches
        compiler_params=pltpu.CompilerParams(
            dimension_semantics=("parallel",),
            vmem_limit_bytes=32 * 1024 * 1024,
        ),
    )(x_flat, w2, edge)

    return out.reshape(B, c_out, T, X, Y)


def _reference(x, w, *, negative_slope=0.2, eps=1e-5):
    """Pure-JAX reference matching the PyTorch module semantics."""
    y = jax.lax.conv_general_dilated(
        x, w, window_strides=(1, 1, 1), padding=((1, 1), (1, 1), (1, 1)),
        dimension_numbers=("NCDHW", "OIDHW", "NCDHW"))
    mean = jnp.mean(y, axis=(2, 3, 4), keepdims=True)
    var = jnp.mean((y - mean) ** 2, axis=(2, 3, 4), keepdims=True)
    yn = (y - mean) / jnp.sqrt(var + eps)
    return jnp.where(yn >= 0, yn, negative_slope * yn)


if __name__ == "__main__":
    B, c_in, c_out, T, X, Y = 2, 4, 8, 8, 16, 16
    key = jax.random.PRNGKey(0)
    kx, kw = jax.random.split(key)
    x = jax.random.normal(kx, (B, c_in, T, X, Y), dtype=jnp.float32)
    # Deterministic Kaiming-style init for the Conv3d weight (bias=False in the module).
    fan_in = c_in * 3 * 3 * 3
    w = jax.random.normal(kw, (c_out, c_in, 3, 3, 3), dtype=jnp.float32) * (2.0 / fan_in) ** 0.5

    out = jax.block_until_ready(conv_block_3d(x, w))
    ref = jax.block_until_ready(_reference(x, w))

    assert out.shape == (B, c_out, T, X, Y), out.shape
    assert jnp.allclose(out, ref, atol=1e-4, rtol=1e-4), float(jnp.max(jnp.abs(out - ref)))
    print("KERNEL_OK")
</pallas_src>

<mosaic_0001>
module attributes {stable_mosaic.version = 11 : i64} {
  func.func @_conv_in_lrelu_kernel(%arg0: i32, %arg1: memref<1x4x2048xf32, #tpu.memory_space<vmem>>, %arg2: memref<8x108xf32, #tpu.memory_space<vmem>>, %arg3: memref<8x2048xf32, #tpu.memory_space<vmem>>, %arg4: memref<1x8x2048xf32, #tpu.memory_space<vmem>>, %arg5: memref<108x2048xf32, #tpu.memory_space<vmem>>) attributes {dimension_semantics = [#tpu.dimension_semantics<parallel>], iteration_bounds = array<i64: 2>, scalar_prefetch = 0 : i64, scratch_operands = 1 : i64, tpu.core_type = #tpu.core_type<tc>, window_params = [{transform_indices = @transform_0, window_bounds = array<i64: 1, 4, 2048>}, {pipeline_mode = #tpu.pipeline_mode<synchronous>, transform_indices = @transform_1, window_bounds = array<i64: 8, 108>}, {pipeline_mode = #tpu.pipeline_mode<synchronous>, transform_indices = @transform_2, window_bounds = array<i64: 8, 2048>}, {transform_indices = @transform_3, window_bounds = array<i64: 1, 8, 2048>}]} {
    %c0 = arith.constant 0 : index
    %c0_0 = arith.constant 0 : index
    %c0_1 = arith.constant 0 : index
    %0 = vector.load %arg1[%c0, %c0_0, %c0_1] : memref<1x4x2048xf32, #tpu.memory_space<vmem>>, vector<1x4x2048xf32>
    %1 = vector.shape_cast %0 : vector<1x4x2048xf32> to vector<4x2048xf32>
    %c273_i32 = arith.constant 273 : i32
    %2 = tpu.dynamic_rotate %1 by %c273_i32 dim 1 : vector<4x2048xf32>, i32 -> vector<4x2048xf32>
    %c0_2 = arith.constant 0 : index
    %c0_3 = arith.constant 0 : index
    %3 = vector.load %arg3[%c0_2, %c0_3] : memref<8x2048xf32, #tpu.memory_space<vmem>>, vector<1x2048xf32>
    %c2 = arith.constant 2 : index
    %c0_4 = arith.constant 0 : index
    %4 = vector.load %arg3[%c2, %c0_4] : memref<8x2048xf32, #tpu.memory_space<vmem>>, vector<1x2048xf32>
    %5 = arith.mulf %3, %4 : vector<1x2048xf32>
    %c4 = arith.constant 4 : index
    %c0_5 = arith.constant 0 : index
    %6 = vector.load %arg3[%c4, %c0_5] : memref<8x2048xf32, #tpu.memory_space<vmem>>, vector<1x2048xf32>
    %7 = arith.mulf %5, %6 : vector<1x2048xf32>
    %8 = vector.broadcast %7 : vector<1x2048xf32> to vector<4x2048xf32>
    %9 = arith.mulf %2, %8 : vector<4x2048xf32>
    %c0_6 = arith.constant 0 : index
    %c0_7 = arith.constant 0 : index
    %10 = vector.load %arg5[%c0_6, %c0_7] : memref<108x2048xf32, #tpu.memory_space<vmem>>, vector<4x2048xf32>
    tpu.vector_store %arg5[%c0_6, %c0_7], %9 {strides = array<i32>} : memref<108x2048xf32, #tpu.memory_space<vmem>>, vector<4x2048xf32>,
    %c272_i32 = arith.constant 272 : i32
    %11 = tpu.dynamic_rotate %1 by %c272_i32 dim 1 : vector<4x2048xf32>, i32 -> vector<4x2048xf32>
    %c0_8 = arith.constant 0 : index
    %c0_9 = arith.constant 0 : index
    %12 = vector.load %arg3[%c0_8, %c0_9] : memref<8x2048xf32, #tpu.memory_space<vmem>>, vector<1x2048xf32>
    %c2_10 = arith.constant 2 : index
    %c0_11 = arith.constant 0 : index
    %13 = vector.load %arg3[%c2_10, %c0_11] : memref<8x2048xf32, #tpu.memory_space<vmem>>, vector<1x2048xf32>
    %14 = arith.mulf %12, %13 : vector<1x2048xf32>
    %15 = vector.broadcast %14 : vector<1x2048xf32> to vector<4x2048xf32>
    %16 = arith.mulf %11, %15 : vector<4x2048xf32>
    %c4_12 = arith.constant 4 : index
    %c0_13 = arith.constant 0 : index
    %17 = vector.load %arg5[%c4_12, %c0_13] : memref<108x2048xf32, #tpu.memory_space<vmem>>, vector<4x2048xf32>
    tpu.vector_store %arg5[%c4_12, %c0_13], %16 {strides = array<i32>} : memref<108x2048xf32, #tpu.memory_space<vmem>>, vector<4x2048xf32>,
    %c271_i32 = arith.constant 271 : i32
    %18 = tpu.dynamic_rotate %1 by %c271_i32 dim 1 : vector<4x2048xf32>, i32 -> vector<4x2048xf32>
    %c0_14 = arith.constant 0 : index
    %c0_15 = arith.constant 0 : index
    %19 = vector.load %arg3[%c0_14, %c0_15] : memref<8x2048xf32, #tpu.memory_space<vmem>>, vector<1x2048xf32>
    %c2_16 = arith.constant 2 : index
    %c0_17 = arith.constant 0 : index
    %20 = vector.load %arg3[%c2_16, %c0_17] : memref<8x2048xf32, #tpu.memory_space<vmem>>, vector<1x2048xf32>
    %21 = arith.mulf %19, %20 : vector<1x2048xf32>
    %c5 = arith.constant 5 : index
    %c0_18 = arith.constant 0 : index
    %22 = vector.load %arg3[%c5, %c0_18] : memref<8x2048xf32, #tpu.memory_space<vmem>>, vector<1x2048xf32>
    %23 = arith.mulf %21, %22 : vector<1x2048xf32>
    %24 = vector.broadcast %23 : vector<1x2048xf32> to vector<4x2048xf32>
    %25 = arith.mulf %18, %24 : vector<4x2048xf32>
    %c8 = arith.constant 8 : index
    %c0_19 = arith.constant 0 : index
    %26 = vector.load %arg5[%c8, %c0_19] : memref<108x2048xf32, #tpu.memory_space<vmem>>, vector<4x2048xf32>
    tpu.vector_store %arg5[%c8, %c0_19], %25 {strides = array<i32>} : memref<108x2048xf32, #tpu.memory_space<vmem>>, vector<4x2048xf32>,
    %c257_i32 = arith.constant 257 : i32
    %27 = tpu.dynamic_rotate %1 by %c257_i32 dim 1 : vector<4x2048xf32>, i32 -> vector<4x2048xf32>
    %c0_20 = arith.constant 0 : index
    %c0_21 = arith.constant 0 : index
    %28 = vector.load %arg3[%c0_20, %c0_21] : memref<8x2048xf32, #tpu.memory_space<vmem>>, vector<1x2048xf32>
    %c4_22 = arith.constant 4 : index
    %c0_23 = arith.constant 0 : index
    %29 = vector.load %arg3[%c4_22, %c0_23] : memref<8x2048xf32, #tpu.memory_space<vmem>>, vector<1x2048xf32>
    %30 = arith.mulf %28, %29 : vector<1x2048xf32>
    %31 = vector.broadcast %30 : vector<1x2048xf32> to vector<4x2048xf32>
    %32 = arith.mulf %27, %31 : vector<4x2048xf32>
    %c12 = arith.constant 12 : index
    %c0_24 = arith.constant 0 : index
    %33 = vector.load %arg5[%c12, %c0_24] : memref<108x2048xf32, #tpu.memory_space<vmem>>, vector<4x2048xf32>
    tpu.vector_store %arg5[%c12, %c0_24], %32 {strides = array<i32>} : memref<108x2048xf32, #tpu.memory_space<vmem>>, vector<4x2048xf32>,
    %c256_i32 = arith.constant 256 : i32
    %34 = tpu.dynamic_rotate %1 by %c256_i32 dim 1 : vector<4x2048xf32>, i32 -> vector<4x2048xf32>
    %c0_25 = arith.constant 0 : index
    %c0_26 = arith.constant 0 : index
    %35 = vector.load %arg3[%c0_25, %c0_26] : memref<8x2048xf32, #tpu.memory_space<vmem>>, vector<1x2048xf32>
    %36 = vector.broadcast %35 : vector<1x2048xf32> to vector<4x2048xf32>
    %37 = arith.mulf %34, %36 : vector<4x2048xf32>
    %c16 = arith.constant 16 : index
    %c0_27 = arith.constant 0 : index
    %38 = vector.load %arg5[%c16, %c0_27] : memref<108x2048xf32, #tpu.memory_space<vmem>>, vector<4x2048xf32>
    tpu.vector_store %arg5[%c16, %c0_27], %37 {strides = array<i32>} : memref<108x2048xf32, #tpu.memory_space<vmem>>, vector<4x2048xf32>,
    %c255_i32 = arith.constant 255 : i32
    %39 = tpu.dynamic_rotate %1 by %c255_i32 dim 1 : vector<4x2048xf32>, i32 -> vector<4x2048xf32>
    %c0_28 = arith.constant 0 : index
    %c0_29 = arith.constant 0 : index
    %40 = vector.load %arg3[%c0_28, %c0_29] : memref<8x2048xf32, #tpu.memory_space<vmem>>, vector<1x2048xf32>
    %c5_30 = arith.constant 5 : index
    %c0_31 = arith.constant 0 : index
    %41 = vector.load %arg3[%c5_30, %c0_31] : memref<8x2048xf32, #tpu.memory_space<vmem>>, vector<1x2048xf32>
    %42 = arith.mulf %40, %41 : vector<1x2048xf32>
    %43 = vector.broadcast %42 : vector<1x2048xf32> to vector<4x2048xf32>
    %44 = arith.mulf %39, %43 : vector<4x2048xf32>
    %c20 = arith.constant 20 : index
    %c0_32 = arith.constant 0 : index
    %45 = vector.load %arg5[%c20, %c0_32] : memref<108x2048xf32, #tpu.memory_space<vmem>>, vector<4x2048xf32>
    tpu.vector_store %arg5[%c20, %c0_32], %44 {strides = array<i32>} : memref<108x2048xf32, #tpu.memory_space<vmem>>, vector<4x2048xf32>,
    %c241_i32 = arith.constant 241 : i32
    %46 = tpu.dynamic_rotate %1 by %c241_i32 dim 1 : vector<4x2048xf32>, i32 -> vector<4x2048xf32>
    %c0_33 = arith.constant 0 : index
    %c0_34 = arith.constant 0 : index
    %47 = vector.load %arg3[%c0_33, %c0_34] : memref<8x2048xf32, #tpu.memory_space<vmem>>, vector<1x2048xf32>
    %c3 = arith.constant 3 : index
    %c0_35 = arith.constant 0 : index
    %48 = vector.load %arg3[%c3, %c0_35] : memref<8x2048xf32, #tpu.memory_space<vmem>>, vector<1x2048xf32>
    %49 = arith.mulf %47, %48 : vector<1x2048xf32>
    %c4_36 = arith.constant 4 : index
    %c0_37 = arith.constant 0 : index
    %50 = vector.load %arg3[%c4_36, %c0_37] : memref<8x2048xf32, #tpu.memory_space<vmem>>, vector<1x2048xf32>
    %51 = arith.mulf %49, %50 : vector<1x2048xf32>
    %52 = vector.broadcast %51 : vector<1x2048xf32> to vector<4x2048xf32>
    %53 = arith.mulf %46, %52 : vector<4x2048xf32>
    %c24 = arith.constant 24 : index
    %c0_38 = arith.constant 0 : index
    %54 = vector.load %arg5[%c24, %c0_38] : memref<108x2048xf32, #tpu.memory_space<vmem>>, vector<4x2048xf32>
    tpu.vector_store %arg5[%c24, %c0_38], %53 {strides = array<i32>} : memref<108x2048xf32, #tpu.memory_space<vmem>>, vector<4x2048xf32>,
    %c240_i32 = arith.constant 240 : i32
    %55 = tpu.dynamic_rotate %1 by %c240_i32 dim 1 : vector<4x2048xf32>, i32 -> vector<4x2048xf32>
    %c0_39 = arith.constant 0 : index
    %c0_40 = arith.constant 0 : index
    %56 = vector.load %arg3[%c0_39, %c0_40] : memref<8x2048xf32, #tpu.memory_space<vmem>>, vector<1x2048xf32>
    %c3_41 = arith.constant 3 : index
    %c0_42 = arith.constant 0 : index
    %57 = vector.load %arg3[%c3_41, %c0_42] : memref<8x2048xf32, #tpu.memory_space<vmem>>, vector<1x2048xf32>
    %58 = arith.mulf %56, %57 : vector<1x2048xf32>
    %59 = vector.broadcast %58 : vector<1x2048xf32> to vector<4x2048xf32>
    %60 = arith.mulf %55, %59 : vector<4x2048xf32>
    %c28 = arith.constant 28 : index
    %c0_43 = arith.constant 0 : index
    %61 = vector.load %arg5[%c28, %c0_43] : memref<108x2048xf32, #tpu.memory_space<vmem>>, vector<4x2048xf32>
    tpu.vector_store %arg5[%c28, %c0_43], %60 {strides = array<i32>} : memref<108x2048xf32, #tpu.memory_space<vmem>>, vector<4x2048xf32>,
    %c239_i32 = arith.constant 239 : i32
    %62 = tpu.dynamic_rotate %1 by %c239_i32 dim 1 : vector<4x2048xf32>, i32 -> vector<4x2048xf32>
    %c0_44 = arith.constant 0 : index
    %c0_45 = arith.constant 0 : index
    %63 = vector.load %arg3[%c0_44, %c0_45] : memref<8x2048xf32, #tpu.memory_space<vmem>>, vector<1x2048xf32>
    %c3_46 = arith.constant 3 : index
    %c0_47 = arith.constant 0 : index
    %64 = vector.load %arg3[%c3_46, %c0_47] : memref<8x2048xf32, #tpu.memory_space<vmem>>, vector<1x2048xf32>
    %65 = arith.mulf %63, %64 : vector<1x2048xf32>
    %c5_48 = arith.constant 5 : index
    %c0_49 = arith.constant 0 : index
    %66 = vector.load %arg3[%c5_48, %c0_49] : memref<8x2048xf32, #tpu.memory_space<vmem>>, vector<1x2048xf32>
    %67 = arith.mulf %65, %66 : vector<1x2048xf32>
    %68 = vector.broadcast %67 : vector<1x2048xf32> to vector<4x2048xf32>
    %69 = arith.mulf %62, %68 : vector<4x2048xf32>
    %c32 = arith.constant 32 : index
    %c0_50 = arith.constant 0 : index
    %70 = vector.load %arg5[%c32, %c0_50] : memref<108x2048xf32, #tpu.memory_space<vmem>>, vector<4x2048xf32>
    tpu.vector_store %arg5[%c32, %c0_50], %69 {strides = array<i32>} : memref<108x2048xf32, #tpu.memory_space<vmem>>, vector<4x2048xf32>,
    %c17_i32 = arith.constant 17 : i32
    %71 = tpu.dynamic_rotate %1 by %c17_i32 dim 1 : vector<4x2048xf32>, i32 -> vector<4x2048xf32>
    %c2_51 = arith.constant 2 : index
    %c0_52 = arith.constant 0 : index
    %72 = vector.load %arg3[%c2_51, %c0_52] : memref<8x2048xf32, #tpu.memory_space<vmem>>, vector<1x2048xf32>
    %c4_53 = arith.constant 4 : index
    %c0_54 = arith.constant 0 : index
    %73 = vector.load %arg3[%c4_53, %c0_54] : memref<8x2048xf32, #tpu.memory_space<vmem>>, vector<1x2048xf32>
    %74 = arith.mulf %72, %73 : vector<1x2048xf32>
    %75 = vector.broadcast %74 : vector<1x2048xf32> to vector<4x2048xf32>
    %76 = arith.mulf %71, %75 : vector<4x2048xf32>
    %c36 = arith.constant 36 : index
    %c0_55 = arith.constant 0 : index
    %77 = vector.load %arg5[%c36, %c0_55] : memref<108x2048xf32, #tpu.memory_space<vmem>>, vector<4x2048xf32>
    tpu.vector_store %arg5[%c36, %c0_55], %76 {strides = array<i32>} : memref<108x2048xf32, #tpu.memory_space<vmem>>, vector<4x2048xf32>,
    %c16_i32 = arith.constant 16 : i32
    %78 = tpu.dynamic_rotate %1 by %c16_i32 dim 1 : vector<4x2048xf32>, i32 -> vector<4x2048xf32>
    %c2_56 = arith.constant 2 : index
    %c0_57 = arith.constant 0 : index
    %79 = vector.load %arg3[%c2_56, %c0_57] : memref<8x2048xf32, #tpu.memory_space<vmem>>, vector<1x2048xf32>
    %80 = vector.broadcast %79 : vector<1x2048xf32> to vector<4x2048xf32>
    %81 = arith.mulf %78, %80 : vector<4x2048xf32>
    %c40 = arith.constant 40 : index
    %c0_58 = arith.constant 0 : index
    %82 = vector.load %arg5[%c40, %c0_58] : memref<108x2048xf32, #tpu.memory_space<vmem>>, vector<4x2048xf32>
    tpu.vector_store %arg5[%c40, %c0_58], %81 {strides = array<i32>} : memref<108x2048xf32, #tpu.memory_space<vmem>>, vector<4x2048xf32>,
    %c15_i32 = arith.constant 15 : i32
    %83 = tpu.dynamic_rotate %1 by %c15_i32 dim 1 : vector<4x2048xf32>, i32 -> vector<4x2048xf32>
    %c2_59 = arith.constant 2 : index
    %c0_60 = arith.constant 0 : index
    %84 = vector.load %arg3[%c2_59, %c0_60] : memref<8x2048xf32, #tpu.memory_space<vmem>>, vector<1x2048xf32>
    %c5_61 = arith.constant 5 : index
    %c0_62 = arith.constant 0 : index
    %85 = vector.load %arg3[%c5_61, %c0_62] : memref<8x2048xf32, #tpu.memory_space<vmem>>, vector<1x2048xf32>
    %86 = arith.mulf %84, %85 : vector<1x2048xf32>
    %87 = vector.broadcast %86 : vector<1x2048xf32> to vector<4x2048xf32>
    %88 = arith.mulf %83, %87 : vector<4x2048xf32>
    %c44 = arith.constant 44 : index
    %c0_63 = arith.constant 0 : index
    %89 = vector.load %arg5[%c44, %c0_63] : memref<108x2048xf32, #tpu.memory_space<vmem>>, vector<4x2048xf32>
    tpu.vector_store %arg5[%c44, %c0_63], %88 {strides = array<i32>} : memref<108x2048xf32, #tpu.memory_space<vmem>>, vector<4x2048xf32>,
    %c1_i32 = arith.constant 1 : i32
    %90 = tpu.dynamic_rotate %1 by %c1_i32 dim 1 : vector<4x2048xf32>, i32 -> vector<4x2048xf32>
    %c4_64 = arith.constant 4 : index
    %c0_65 = arith.constant 0 : index
    %91 = vector.load %arg3[%c4_64, %c0_65] : memref<8x2048xf32, #tpu.memory_space<vmem>>, vector<1x2048xf32>
    %92 = vector.broadcast %91 : vector<1x2048xf32> to vector<4x2048xf32>
    %93 = arith.mulf %90, %92 : vector<4x2048xf32>
    %c48 = arith.constant 48 : index
    %c0_66 = arith.constant 0 : index
    %94 = vector.load %arg5[%c48, %c0_66] : memref<108x2048xf32, #tpu.memory_space<vmem>>, vector<4x2048xf32>
    tpu.vector_store %arg5[%c48, %c0_66], %93 {strides = array<i32>} : memref<108x2048xf32, #tpu.memory_space<vmem>>, vector<4x2048xf32>,
    %c52 = arith.constant 52 : index
    %c0_67 = arith.constant 0 : index
    %95 = vector.load %arg5[%c52, %c0_67] : memref<108x2048xf32, #tpu.memory_space<vmem>>, vector<4x2048xf32>
    tpu.vector_store %arg5[%c52, %c0_67], %1 {strides = array<i32>} : memref<108x2048xf32, #tpu.memory_space<vmem>>, vector<4x2048xf32>,
    %c2047_i32 = arith.constant 2047 : i32
    %96 = tpu.dynamic_rotate %1 by %c2047_i32 dim 1 : vector<4x2048xf32>, i32 -> vector<4x2048xf32>
    %c5_68 = arith.constant 5 : index
    %c0_69 = arith.constant 0 : index
    %97 = vector.load %arg3[%c5_68, %c0_69] : memref<8x2048xf32, #tpu.memory_space<vmem>>, vector<1x2048xf32>
    %98 = vector.broadcast %97 : vector<1x2048xf32> to vector<4x2048xf32>
    %99 = arith.mulf %96, %98 : vector<4x2048xf32>
    %c56 = arith.constant 56 : index
    %c0_70 = arith.constant 0 : index
    %100 = vector.load %arg5[%c56, %c0_70] : memref<108x2048xf32, #tpu.memory_space<vmem>>, vector<4x2048xf32>
    tpu.vector_store %arg5[%c56, %c0_70], %99 {strides = array<i32>} : memref<108x2048xf32, #tpu.memory_space<vmem>>, vector<4x2048xf32>,
    %c2033_i32 = arith.constant 2033 : i32
    %101 = tpu.dynamic_rotate %1 by %c2033_i32 dim 1 : vector<4x2048xf32>, i32 -> vector<4x2048xf32>
    %c3_71 = arith.constant 3 : index
    %c0_72 = arith.constant 0 : index
    %102 = vector.load %arg3[%c3_71, %c0_72] : memref<8x2048xf32, #tpu.memory_space<vmem>>, vector<1x2048xf32>
    %c4_73 = arith.constant 4 : index
    %c0_74 = arith.constant 0 : index
    %103 = vector.load %arg3[%c4_73, %c0_74] : memref<8x2048xf32, #tpu.memory_space<vmem>>, vector<1x2048xf32>
    %104 = arith.mulf %102, %103 : vector<1x2048xf32>
    %105 = vector.broadcast %104 : vector<1x2048xf32> to vector<4x2048xf32>
    %106 = arith.mulf %101, %105 : vector<4x2048xf32>
    %c60 = arith.constant 60 : index
    %c0_75 = arith.constant 0 : index
    %107 = vector.load %arg5[%c60, %c0_75] : memref<108x2048xf32, #tpu.memory_space<vmem>>, vector<4x2048xf32>
    tpu.vector_store %arg5[%c60, %c0_75], %106 {strides = array<i32>} : memref<108x2048xf32, #tpu.memory_space<vmem>>, vector<4x2048xf32>,
    %c2032_i32 = arith.constant 2032 : i32
    %108 = tpu.dynamic_rotate %1 by %c2032_i32 dim 1 : vector<4x2048xf32>, i32 -> vector<4x2048xf32>
    %c3_76 = arith.constant 3 : index
    %c0_77 = arith.constant 0 : index
    %109 = vector.load %arg3[%c3_76, %c0_77] : memref<8x2048xf32, #tpu.memory_space<vmem>>, vector<1x2048xf32>
    %110 = vector.broadcast %109 : vector<1x2048xf32> to vector<4x2048xf32>
    %111 = arith.mulf %108, %110 : vector<4x2048xf32>
    %c64 = arith.constant 64 : index
    %c0_78 = arith.constant 0 : index
    %112 = vector.load %arg5[%c64, %c0_78] : memref<108x2048xf32, #tpu.memory_space<vmem>>, vector<4x2048xf32>
    tpu.vector_store %arg5[%c64, %c0_78], %111 {strides = array<i32>} : memref<108x2048xf32, #tpu.memory_space<vmem>>, vector<4x2048xf32>,
    %c2031_i32 = arith.constant 2031 : i32
    %113 = tpu.dynamic_rotate %1 by %c2031_i32 dim 1 : vector<4x2048xf32>, i32 -> vector<4x2048xf32>
    %c3_79 = arith.constant 3 : index
    %c0_80 = arith.constant 0 : index
    %114 = vector.load %arg3[%c3_79, %c0_80] : memref<8x2048xf32, #tpu.memory_space<vmem>>, vector<1x2048xf32>
    %c5_81 = arith.constant 5 : index
    %c0_82 = arith.constant 0 : index
    %115 = vector.load %arg3[%c5_81, %c0_82] : memref<8x2048xf32, #tpu.memory_space<vmem>>, vector<1x2048xf32>
    %116 = arith.mulf %114, %115 : vector<1x2048xf32>
    %117 = vector.broadcast %116 : vector<1x2048xf32> to vector<4x2048xf32>
    %118 = arith.mulf %113, %117 : vector<4x2048xf32>
    %c68 = arith.constant 68 : index
    %c0_83 = arith.constant 0 : index
    %119 = vector.load %arg5[%c68, %c0_83] : memref<108x2048xf32, #tpu.memory_space<vmem>>, vector<4x2048xf32>
    tpu.vector_store %arg5[%c68, %c0_83], %118 {strides = array<i32>} : memref<108x2048xf32, #tpu.memory_space<vmem>>, vector<4x2048xf32>,
    %c1809_i32 = arith.constant 1809 : i32
    %120 = tpu.dynamic_rotate %1 by %c1809_i32 dim 1 : vector<4x2048xf32>, i32 -> vector<4x2048xf32>
    %c1 = arith.constant 1 : index
    %c0_84 = arith.constant 0 : index
    %121 = vector.load %arg3[%c1, %c0_84] : memref<8x2048xf32, #tpu.memory_space<vmem>>, vector<1x2048xf32>
    %c2_85 = arith.constant 2 : index
    %c0_86 = arith.constant 0 : index
    %122 = vector.load %arg3[%c2_85, %c0_86] : memref<8x2048xf32, #tpu.memory_space<vmem>>, vector<1x2048xf32>
    %123 = arith.mulf %121, %122 : vector<1x2048xf32>
    %c4_87 = arith.constant 4 : index
    %c0_88 = arith.constant 0 : index
    %124 = vector.load %arg3[%c4_87, %c0_88] : memref<8x2048xf32, #tpu.memory_space<vmem>>, vector<1x2048xf32>
    %125 = arith.mulf %123, %124 : vector<1x2048xf32>
    %126 = vector.broadcast %125 : vector<1x2048xf32> to vector<4x2048xf32>
    %127 = arith.mulf %120, %126 : vector<4x2048xf32>
    %c72 = arith.constant 72 : index
    %c0_89 = arith.constant 0 : index
    %128 = vector.load %arg5[%c72, %c0_89] : memref<108x2048xf32, #tpu.memory_space<vmem>>, vector<4x2048xf32>
    tpu.vector_store %arg5[%c72, %c0_89], %127 {strides = array<i32>} : memref<108x2048xf32, #tpu.memory_space<vmem>>, vector<4x2048xf32>,
    %c1808_i32 = arith.constant 1808 : i32
    %129 = tpu.dynamic_rotate %1 by %c1808_i32 dim 1 : vector<4x2048xf32>, i32 -> vector<4x2048xf32>
    %c1_90 = arith.constant 1 : index
    %c0_91 = arith.constant 0 : index
    %130 = vector.load %arg3[%c1_90, %c0_91] : memref<8x2048xf32, #tpu.memory_space<vmem>>, vector<1x2048xf32>
    %c2_92 = arith.constant 2 : index
    %c0_93 = arith.constant 0 : index
    %131 = vector.load %arg3[%c2_92, %c0_93] : memref<8x2048xf32, #tpu.memory_space<vmem>>, vector<1x2048xf32>
    %132 = arith.mulf %130, %131 : vector<1x2048xf32>
    %133 = vector.broadcast %132 : vector<1x2048xf32> to vector<4x2048xf32>
    %134 = arith.mulf %129, %133 : vector<4x2048xf32>
    %c76 = arith.constant 76 : index
    %c0_94 = arith.constant 0 : index
    %135 = vector.load %arg5[%c76, %c0_94] : memref<108x2048xf32, #tpu.memory_space<vmem>>, vector<4x2048xf32>
    tpu.vector_store %arg5[%c76, %c0_94], %134 {strides = array<i32>} : memref<108x2048xf32, #tpu.memory_space<vmem>>, vector<4x2048xf32>,
    %c1807_i32 = arith.constant 1807 : i32
    %136 = tpu.dynamic_rotate %1 by %c1807_i32 dim 1 : vector<4x2048xf32>, i32 -> vector<4x2048xf32>
    %c1_95 = arith.constant 1 : index
    %c0_96 = arith.constant 0 : index
    %137 = vector.load %arg3[%c1_95, %c0_96] : memref<8x2048xf32, #tpu.memory_space<vmem>>, vector<1x2048xf32>
    %c2_97 = arith.constant 2 : index
    %c0_98 = arith.constant 0 : index
    %138 = vector.load %arg3[%c2_97, %c0_98] : memref<8x2048xf32, #tpu.memory_space<vmem>>, vector<1x2048xf32>
    %139 = arith.mulf %137, %138 : vector<1x2048xf32>
    %c5_99 = arith.constant 5 : index
    %c0_100 = arith.constant 0 : index
    %140 = vector.load %arg3[%c5_99, %c0_100] : memref<8x2048xf32, #tpu.memory_space<vmem>>, vector<1x2048xf32>
    %141 = arith.mulf %139, %140 : vector<1x2048xf32>
    %142 = vector.broadcast %141 : vector<1x2048xf32> to vector<4x2048xf32>
    %143 = arith.mulf %136, %142 : vector<4x2048xf32>
    %c80 = arith.constant 80 : index
    %c0_101 = arith.constant 0 : index
    %144 = vector.load %arg5[%c80, %c0_101] : memref<108x2048xf32, #tpu.memory_space<vmem>>, vector<4x2048xf32>
    tpu.vector_store %arg5[%c80, %c0_101], %143 {strides = array<i32>} : memref<108x2048xf32, #tpu.memory_space<vmem>>, vector<4x2048xf32>,
    %c1793_i32 = arith.constant 1793 : i32
    %145 = tpu.dynamic_rotate %1 by %c1793_i32 dim 1 : vector<4x2048xf32>, i32 -> vector<4x2048xf32>
    %c1_102 = arith.constant 1 : index
    %c0_103 = arith.constant 0 : index
    %146 = vector.load %arg3[%c1_102, %c0_103] : memref<8x2048xf32, #tpu.memory_space<vmem>>, vector<1x2048xf32>
    %c4_104 = arith.constant 4 : index
    %c0_105 = arith.constant 0 : index
    %147 = vector.load %arg3[%c4_104, %c0_105] : memref<8x2048xf32, #tpu.memory_space<vmem>>, vector<1x2048xf32>
    %148 = arith.mulf %146, %147 : vector<1x2048xf32>
    %149 = vector.broadcast %148 : vector<1x2048xf32> to vector<4x2048xf32>
    %150 = arith.mulf %145, %149 : vector<4x2048xf32>
    %c84 = arith.constant 84 : index
    %c0_106 = arith.constant 0 : index
    %151 = vector.load %arg5[%c84, %c0_106] : memref<108x2048xf32, #tpu.memory_space<vmem>>, vector<4x2048xf32>
    tpu.vector_store %arg5[%c84, %c0_106], %150 {strides = array<i32>} : memref<108x2048xf32, #tpu.memory_space<vmem>>, vector<4x2048xf32>,
    %c1792_i32 = arith.constant 1792 : i32
    %152 = tpu.dynamic_rotate %1 by %c1792_i32 dim 1 : vector<4x2048xf32>, i32 -> vector<4x2048xf32>
    %c1_107 = arith.constant 1 : index
    %c0_108 = arith.constant 0 : index
    %153 = vector.load %arg3[%c1_107, %c0_108] : memref<8x2048xf32, #tpu.memory_space<vmem>>, vector<1x2048xf32>
    %154 = vector.broadcast %153 : vector<1x2048xf32> to vector<4x2048xf32>
    %155 = arith.mulf %152, %154 : vector<4x2048xf32>
    %c88 = arith.constant 88 : index
    %c0_109 = arith.constant 0 : index
    %156 = vector.load %arg5[%c88, %c0_109] : memref<108x2048xf32, #tpu.memory_space<vmem>>, vector<4x2048xf32>
    tpu.vector_store %arg5[%c88, %c0_109], %155 {strides = array<i32>} : memref<108x2048xf32, #tpu.memory_space<vmem>>, vector<4x2048xf32>,
    %c1791_i32 = arith.constant 1791 : i32
    %157 = tpu.dynamic_rotate %1 by %c1791_i32 dim 1 : vector<4x2048xf32>, i32 -> vector<4x2048xf32>
    %c1_110 = arith.constant 1 : index
    %c0_111 = arith.constant 0 : index
    %158 = vector.load %arg3[%c1_110, %c0_111] : memref<8x2048xf32, #tpu.memory_space<vmem>>, vector<1x2048xf32>
    %c5_112 = arith.constant 5 : index
    %c0_113 = arith.constant 0 : index
    %159 = vector.load %arg3[%c5_112, %c0_113] : memref<8x2048xf32, #tpu.memory_space<vmem>>, vector<1x2048xf32>
    %160 = arith.mulf %158, %159 : vector<1x2048xf32>
    %161 = vector.broadcast %160 : vector<1x2048xf32> to vector<4x2048xf32>
    %162 = arith.mulf %157, %161 : vector<4x2048xf32>
    %c92 = arith.constant 92 : index
    %c0_114 = arith.constant 0 : index
    %163 = vector.load %arg5[%c92, %c0_114] : memref<108x2048xf32, #tpu.memory_space<vmem>>, vector<4x2048xf32>
    tpu.vector_store %arg5[%c92, %c0_114], %162 {strides = array<i32>} : memref<108x2048xf32, #tpu.memory_space<vmem>>, vector<4x2048xf32>,
    %c1777_i32 = arith.constant 1777 : i32
    %164 = tpu.dynamic_rotate %1 by %c1777_i32 dim 1 : vector<4x2048xf32>, i32 -> vector<4x2048xf32>
    %c1_115 = arith.constant 1 : index
    %c0_116 = arith.constant 0 : index
    %165 = vector.load %arg3[%c1_115, %c0_116] : memref<8x2048xf32, #tpu.memory_space<vmem>>, vector<1x2048xf32>
    %c3_117 = arith.constant 3 : index
    %c0_118 = arith.constant 0 : index
    %166 = vector.load %arg3[%c3_117, %c0_118] : memref<8x2048xf32, #tpu.memory_space<vmem>>, vector<1x2048xf32>
    %167 = arith.mulf %165, %166 : vector<1x2048xf32>
    %c4_119 = arith.constant 4 : index
    %c0_120 = arith.constant 0 : index
    %168 = vector.load %arg3[%c4_119, %c0_120] : memref<8x2048xf32, #tpu.memory_space<vmem>>, vector<1x2048xf32>
    %169 = arith.mulf %167, %168 : vector<1x2048xf32>
    %170 = vector.broadcast %169 : vector<1x2048xf32> to vector<4x2048xf32>
    %171 = arith.mulf %164, %170 : vector<4x2048xf32>
    %c96 = arith.constant 96 : index
    %c0_121 = arith.constant 0 : index
    %172 = vector.load %arg5[%c96, %c0_121] : memref<108x2048xf32, #tpu.memory_space<vmem>>, vector<4x2048xf32>
    tpu.vector_store %arg5[%c96, %c0_121], %171 {strides = array<i32>} : memref<108x2048xf32, #tpu.memory_space<vmem>>, vector<4x2048xf32>,
    %c1776_i32 = arith.constant 1776 : i32
    %173 = tpu.dynamic_rotate %1 by %c1776_i32 dim 1 : vector<4x2048xf32>, i32 -> vector<4x2048xf32>
    %c1_122 = arith.constant 1 : index
    %c0_123 = arith.constant 0 : index
    %174 = vector.load %arg3[%c1_122, %c0_123] : memref<8x2048xf32, #tpu.memory_space<vmem>>, vector<1x2048xf32>
    %c3_124 = arith.constant 3 : index
    %c0_125 = arith.constant 0 : index
    %175 = vector.load %arg3[%c3_124, %c0_125] : memref<8x2048xf32, #tpu.memory_space<vmem>>, vector<1x2048xf32>
    %176 = arith.mulf %174, %175 : vector<1x2048xf32>
    %177 = vector.broadcast %176 : vector<1x2048xf32> to vector<4x2048xf32>
    %178 = arith.mulf %173, %177 : vector<4x2048xf32>
    %c100 = arith.constant 100 : index
    %c0_126 = arith.constant 0 : index
    %179 = vector.load %arg5[%c100, %c0_126] : memref<108x2048xf32, #tpu.memory_space<vmem>>, vector<4x2048xf32>
    tpu.vector_store %arg5[%c100, %c0_126], %178 {strides = array<i32>} : memref<108x2048xf32, #tpu.memory_space<vmem>>, vector<4x2048xf32>,
    %c1775_i32 = arith.constant 1775 : i32
    %180 = tpu.dynamic_rotate %1 by %c1775_i32 dim 1 : vector<4x2048xf32>, i32 -> vector<4x2048xf32>
    %c1_127 = arith.constant 1 : index
    %c0_128 = arith.constant 0 : index
    %181 = vector.load %arg3[%c1_127, %c0_128] : memref<8x2048xf32, #tpu.memory_space<vmem>>, vector<1x2048xf32>
    %c3_129 = arith.constant 3 : index
    %c0_130 = arith.constant 0 : index
    %182 = vector.load %arg3[%c3_129, %c0_130] : memref<8x2048xf32, #tpu.memory_space<vmem>>, vector<1x2048xf32>
    %183 = arith.mulf %181, %182 : vector<1x2048xf32>
    %c5_131 = arith.constant 5 : index
    %c0_132 = arith.constant 0 : index
    %184 = vector.load %arg3[%c5_131, %c0_132] : memref<8x2048xf32, #tpu.memory_space<vmem>>, vector<1x2048xf32>
    %185 = arith.mulf %183, %184 : vector<1x2048xf32>
    %186 = vector.broadcast %185 : vector<1x2048xf32> to vector<4x2048xf32>
    %187 = arith.mulf %180, %186 : vector<4x2048xf32>
    %c104 = arith.constant 104 : index
    %c0_133 = arith.constant 0 : index
    %188 = vector.load %arg5[%c104, %c0_133] : memref<108x2048xf32, #tpu.memory_space<vmem>>, vector<4x2048xf32>
    tpu.vector_store %arg5[%c104, %c0_133], %187 {strides = array<i32>} : memref<108x2048xf32, #tpu.memory_space<vmem>>, vector<4x2048xf32>,
    %c0_134 = arith.constant 0 : index
    %c0_135 = arith.constant 0 : index
    %189 = vector.load %arg2[%c0_134, %c0_135] : memref<8x108xf32, #tpu.memory_space<vmem>>, vector<8x108xf32>
    %c0_136 = arith.constant 0 : index
    %c0_137 = arith.constant 0 : index
    %190 = vector.load %arg5[%c0_136, %c0_137] : memref<108x2048xf32, #tpu.memory_space<vmem>>, vector<108x2048xf32>
    %cst = arith.constant dense<0.000000e+00> : vector<8x2048xf32>
    %191 = tpu.matmul %189, %190, %cst {dimension_numbers = #tpu.dot_dimension_numbers<[1], [0], [0], [1], [0, 0, 1, 1], [], []>} : vector<8x108xf32>, vector<108x2048xf32>, vector<8x2048xf32> -> vector<8x2048xf32>
    %cst_138 = arith.constant dense<0.000000e+00> : vector<8xf32>
    %192 = vector.multi_reduction <add>, %191, %cst_138 [1] : vector<8x2048xf32> to vector<8xf32>
    %193 = vector.shape_cast %192 : vector<8xf32> to vector<8x1xf32>
    %194 = arith.mulf %191, %191 : vector<8x2048xf32>
    %cst_139 = arith.constant dense<0.000000e+00> : vector<8xf32>
    %195 = vector.multi_reduction <add>, %194, %cst_139 [1] : vector<8x2048xf32> to vector<8xf32>
    %196 = vector.shape_cast %195 : vector<8xf32> to vector<8x1xf32>
    %cst_140 = arith.constant 4.8828125E-4 : f32
    %197 = vector.broadcast %cst_140 : f32 to vector<8x1xf32>
    %198 = arith.mulf %193, %197 : vector<8x1xf32>
    %cst_141 = arith.constant 4.8828125E-4 : f32
    %199 = vector.broadcast %cst_141 : f32 to vector<8x1xf32>
    %200 = arith.mulf %196, %199 : vector<8x1xf32>
    %201 = arith.mulf %198, %198 : vector<8x1xf32>
    %202 = arith.subf %200, %201 : vector<8x1xf32>
    %203 = vector.broadcast %198 : vector<8x1xf32> to vector<8x2048xf32>
    %204 = arith.subf %191, %203 : vector<8x2048xf32>
    %cst_142 = arith.constant 9.99999974E-6 : f32
    %205 = vector.broadcast %cst_142 : f32 to vector<8x1xf32>
    %206 = arith.addf %202, %205 : vector<8x1xf32>
    %207 = math.rsqrt %206 : vector<8x1xf32>
    %208 = vector.broadcast %207 : vector<8x1xf32> to vector<8x2048xf32>
    %209 = arith.mulf %204, %208 : vector<8x2048xf32>
    %cst_143 = arith.constant 0.000000e+00 : f32
    %210 = vector.broadcast %cst_143 : f32 to vector<8x2048xf32>
    %211 = arith.cmpf oge, %209, %210 : vector<8x2048xf32>
    %cst_144 = arith.constant 2.000000e-01 : f32
    %212 = vector.broadcast %cst_144 : f32 to vector<8x2048xf32>
    %213 = arith.mulf %212, %209 : vector<8x2048xf32>
    %214 = arith.select %211, %209, %213 : vector<8x2048xi1>, vector<8x2048xf32>
    %c0_145 = arith.constant 0 : index
    %c0_146 = arith.constant 0 : index
    %c0_147 = arith.constant 0 : index
    %215 = vector.load %arg4[%c0_145, %c0_146, %c0_147] : memref<1x8x2048xf32, #tpu.memory_space<vmem>>, vector<1x8x2048xf32>
    %216 = vector.shape_cast %215 : vector<1x8x2048xf32> to vector<8x2048xf32>
    %217 = vector.shape_cast %214 : vector<8x2048xf32> to vector<1x8x2048xf32>
    tpu.vector_store %arg4[%c0_145, %c0_146, %c0_147], %217 {strides = array<i32>} : memref<1x8x2048xf32, #tpu.memory_space<vmem>>, vector<1x8x2048xf32>,
    return
  }
  func.func @transform_0(%arg0: i32) -> (i32, i32, i32) {
    %c0_i32 = arith.constant 0 : i32
    %c0_i32_0 = arith.constant 0 : i32
    %c0_i32_1 = arith.constant 0 : i32
    return %arg0, %c0_i32, %c0_i32_0 : i32, i32, i32
  }
  func.func @transform_1(%arg0: i32) -> (i32, i32) {
    %c0_i32 = arith.constant 0 : i32
    %c0_i32_0 = arith.constant 0 : i32
    %c0_i32_1 = arith.constant 0 : i32
    return %c0_i32, %c0_i32_0 : i32, i32
  }
  func.func @transform_2(%arg0: i32) -> (i32, i32) {
    %c0_i32 = arith.constant 0 : i32
    %c0_i32_0 = arith.constant 0 : i32
    %c0_i32_1 = arith.constant 0 : i32
    return %c0_i32, %c0_i32_0 : i32, i32
  }
  func.func @transform_3(%arg0: i32) -> (i32, i32, i32) {
    %c0_i32 = arith.constant 0 : i32
    %c0_i32_0 = arith.constant 0 : i32
    %c0_i32_1 = arith.constant 0 : i32
    return %arg0, %c0_i32, %c0_i32_0 : i32, i32, i32
  }
}

</mosaic_0001>

<llo_original>
// kernel: tpu_custom_call.1
$region0: #{tpu_custom_call.1}
  #allocation0 [shape = 'u32[]', space=smem, size = 0x4, offset = 0x4, fixed_abs, tag = 'smem constant byte address 0x4 - core index']
  #allocation1 [shape = 'u32[144,128]{1,0:T(1,128)}', space=vmem, size = 0x12000, scoped, tag = 'internal scratch']
  #allocation2 [shape = 'f32[108,2048]{1,0:T(8,128)}', space=vmem, size = 0xe0000, scoped, tag = 'scratch operand']
  %s0 = inlined_call_operand.hbm [shape: f32[2,4,2048], index: 0, kind: input, shape index: {}]
  %s1 = inlined_call_operand.hbm [shape: f32[8,108], index: 1, kind: input, shape index: {}]
  %s2 = inlined_call_operand.hbm [shape: f32[8,2048], index: 2, kind: input, shape index: {}]
  %s3 = inlined_call_operand.hbm [shape: f32[2,8,2048], index: 3, kind: output, shape index: {}]
  %s4 = sld [smem:[#allocation0]]
  $region57: #{tpu_custom_call.1} parent=0
    _
  %s6 = ssub.s32 1, %s4
  %s7 = scalar_select 0, %s6, %s4
  $region1: #{tpu_custom_call.1} parent=0
    #allocation3 [shape = 'u8[65536]{0}', space=vmem, size = 0x10000, scoped, tag = 'input window, operand 0']
    #allocation4 [shape = 's32[2]{0}', space=sflag, size = 0x8, scoped, tag = 'scoped memory for tpu_custom_call.1']
    #allocation5 [shape = 's32[2]{0}', space=sflag, size = 0x8, scoped, tag = 'scoped memory for tpu_custom_call.1']
    #allocation6 [shape = 'u8[4096]{0}', space=vmem, size = 0x1000, scoped, tag = 'input window, operand 1, single buffered']
    #allocation7 [shape = 's32[1]{0}', space=sflag, size = 0x4, scoped, tag = 'scoped memory for tpu_custom_call.1']
    #allocation8 [shape = 'u8[65536]{0}', space=vmem, size = 0x10000, scoped, tag = 'input window, operand 2, single buffered']
    #allocation9 [shape = 'u8[131072]{0}', space=vmem, size = 0x20000, scoped, tag = 'output window, operand 0']
    %8 = vsyncpa [#allocation4], 0
    %s9 = scalar_lea.sflag [#allocation4], 1
    %10 = vsyncpa %s9, 0
    %11 = vsyncpa [#allocation7], 0
    %12 = vsyncpa [#allocation5], 0
    %s13 = scalar_lea.sflag [#allocation5], 1
    %14 = vsyncpa %s13, 0
    loop: start=0, step=1, limit=4
    $region2: #{tpu_custom_call.1} parent=1 // loop_pre_header
      _
    $region3: #{tpu_custom_call.1} parent=1 // loop_header
      %s16 = sphi 0, %s20
      %p17 = scmp.ge.s32.totalorder %s16, 4
      %s26 = sphi 0, %s28
      %s29 = sphi 0, %s26
      %s30 = sphi 0, %s29
      %s46 = sphi 0, %s30
      %s50 = sphi 0, %s50
      %s52 = sphi 0, %s50
      %s53 = sphi 0, %s52
      %s67 = sphi 0, %s53
      %s71 = sphi 0, %s71
      %s73 = sphi 0, %s71
      %s74 = sphi 0, %s73
      %s88 = sphi 0, %s74
      %s94 = sphi 0, %s96
      %s97 = sphi 0, %s94
      %s98 = sphi 0, %s97
      %s114 = sphi 0, %s98
    $region4: #{tpu_custom_call.1} parent=1 // loop_header_branch
      %19 = sbr.rel (%p17) target = $region8
    $region5: #{tpu_custom_call.1} parent=1 // loop_body
      %s21 = ssub.s32 %s16, 1
      %s22 = ssub.s32 %s16, 2
      %s23 = sadd.s32 %s16, 1
      %s24 = ssub.s32 %s16, %s23
      %p25 = scmp.eq.s32.totalorder %s24, 0
      %s27 = sadd.s32 %s26, 1
      %s28 = scalar_select %p25, %s26, %s27
      %p31 = pneg %p25
      %p32 = scmp.eq.s32.totalorder %s16, 1
      %p33 = por %p31, %p32
      %p34 = scmp.ne.s32.totalorder %s26, %s29
      %p35 = scmp.eq.s32.totalorder %s16, 0
      %p36 = por %p34, %p35
      %p37 = scmp.ne.s32.totalorder %s26, %s29
      %p38 = scmp.eq.s32.totalorder %s21, 1
      %p39 = por %p37, %p38
      %p40 = scmp.ne.s32.totalorder %s29, %s30
      %p41 = scmp.eq.s32.totalorder %s21, 0
      %p42 = por %p40, %p41
      %p43 = scmp.ne.s32.totalorder %s29, %s30
      %p44 = scmp.eq.s32.totalorder %s22, 1
      %p45 = por %p43, %p44
      %p47 = scmp.ne.s32.totalorder %s30, %s46
      %p48 = scmp.eq.s32.totalorder %s22, 0
      %p49 = por %p47, %p48
      %s51 = sadd.s32 %s50, 1
      %p54 = scmp.eq.s32.totalorder %s16, 1
      %p55 = scmp.ne.s32.totalorder %s50, %s52
      %p56 = scmp.eq.s32.totalorder %s16, 0
      %p57 = por %p55, %p56
      %p58 = scmp.ne.s32.totalorder %s50, %s52
      %p59 = scmp.eq.s32.totalorder %s21, 1
      %p60 = por %p58, %p59
      %p61 = scmp.ne.s32.totalorder %s52, %s53
      %p62 = scmp.eq.s32.totalorder %s21, 0
      %p63 = por %p61, %p62
      %p64 = scmp.ne.s32.totalorder %s52, %s53
      %p65 = scmp.eq.s32.totalorder %s22, 1
      %p66 = por %p64, %p65
      %p68 = scmp.ne.s32.totalorder %s53, %s67
      %p69 = scmp.eq.s32.totalorder %s22, 0
      %p70 = por %p68, %p69
      %s72 = sadd.s32 %s71, 1
      %p75 = scmp.eq.s32.totalorder %s16, 1
      %p76 = scmp.ne.s32.totalorder %s71, %s73
      %p77 = scmp.eq.s32.totalorder %s16, 0
      %p78 = por %p76, %p77
      %p79 = scmp.ne.s32.totalorder %s71, %s73
      %p80 = scmp.eq.s32.totalorder %s21, 1
      %p81 = por %p79, %p80
      %p82 = scmp.ne.s32.totalorder %s73, %s74
      %p83 = scmp.eq.s32.totalorder %s21, 0
      %p84 = por %p82, %p83
      %p85 = scmp.ne.s32.totalorder %s73, %s74
      %p86 = scmp.eq.s32.totalorder %s22, 1
      %p87 = por %p85, %p86
      %p89 = scmp.ne.s32.totalorder %s74, %s88
      %p90 = scmp.eq.s32.totalorder %s22, 0
      %p91 = por %p89, %p90
      %s92 = ssub.s32 %s16, %s23
      %p93 = scmp.eq.s32.totalorder %s92, 0
      %s95 = sadd.s32 %s94, 1
      %s96 = scalar_select %p93, %s94, %s95
      %p99 = pneg %p93
      %p100 = scmp.eq.s32.totalorder %s16, 1
      %p101 = por %p99, %p100
      %p102 = scmp.ne.s32.totalorder %s94, %s97
      %p103 = scmp.eq.s32.totalorder %s16, 0
      %p104 = por %p102, %p103
      %p105 = scmp.ne.s32.totalorder %s94, %s97
      %p106 = scmp.eq.s32.totalorder %s21, 1
      %p107 = por %p105, %p106
      %p108 = scmp.ne.s32.totalorder %s97, %s98
      %p109 = scmp.eq.s32.totalorder %s21, 0
      %p110 = por %p108, %p109
      %p111 = scmp.ne.s32.totalorder %s97, %s98
      %p112 = scmp.eq.s32.totalorder %s22, 1
      %p113 = por %p111, %p112
      %p115 = scmp.ne.s32.totalorder %s98, %s114
      %p116 = scmp.eq.s32.totalorder %s22, 0
      %p117 = por %p115, %p116
      %p118 = scmp.le.s32.totalorder 1, %s16
      %p119 = scmp.lt.s32.totalorder %s16, 3
      %p120 = pnand %p118, %p119
      %p121 = pneg %p120
      // Predicated region
      $region9: #{tpu_custom_call.1} parent=5 // pred_check
        _
      $region10: #{tpu_custom_call.1} parent=5 // pred_check_branch
        %123 = sbr.rel (%p120) target = $region12
      $region11: #{tpu_custom_call.1} parent=5 // pred_region
        %s124 = ssub.s32 %s16, 1
        // Predicated region
        $region13: #{tpu_custom_call.1} parent=11 // pred_check
          %p125 = pneg %p63
        $region14: #{tpu_custom_call.1} parent=11 // pred_check_branch
          %127 = sbr.rel (%p125) target = $region16
        $region15: #{tpu_custom_call.1} parent=11 // pred_region
          %s129 = ssub.s32 128, 128
          %130 = vsyncadd [#allocation7], %s129
          %s132 = sshll.u32 [#allocation6], 4
          %s133 = int_to_ptr.vmem [resolvable:$true] %s132
          %135 = dma.hbm_to_vmem [thread:$0]  %s1, 128, %s133, [#allocation7]
        $region16: #{tpu_custom_call.1} parent=11 // pred_fallthru
          _
        // Predicated region
        $region17: #{tpu_custom_call.1} parent=11 // pred_check
          %p136 = pneg %p84
        $region18: #{tpu_custom_call.1} parent=11 // pred_check_branch
          %138 = sbr.rel (%p136) target = $region20
        $region19: #{tpu_custom_call.1} parent=11 // pred_region
          %s140 = ssub.s32 2048, 2048
          %141 = vsyncadd [#allocation7], %s140
          %s143 = sshll.u32 [#allocation8], 4
          %s144 = int_to_ptr.vmem [resolvable:$true] %s143
          %146 = dma.hbm_to_vmem [thread:$0]  %s2, 2048, %s144, [#allocation7]
        $region20: #{tpu_custom_call.1} parent=11 // pred_fallthru
          _
      $region12: #{tpu_custom_call.1} parent=5 // pred_fallthru
        _
      %p147 = scmp.lt.s32.totalorder %s16, 2
      // Predicated region
      $region21: #{tpu_custom_call.1} parent=5 // pred_check
        %p148 = pneg %p147
      $region22: #{tpu_custom_call.1} parent=5 // pred_check_branch
        %150 = sbr.rel (%p148) target = $region24
      $region23: #{tpu_custom_call.1} parent=5 // pred_region
        // Predicated region
        $region25: #{tpu_custom_call.1} parent=23 // pred_check
          %p151 = pneg %p36
        $region26: #{tpu_custom_call.1} parent=23 // pred_check_branch
          %153 = sbr.rel (%p151) target = $region28
        $region27: #{tpu_custom_call.1} parent=23 // pred_region
          %s154 = sand.u32 %s26, 1
          %s155 = scalar_lea.sflag [#allocation4], %s154
          %s156 = sand.u32 %s26, 1
          %s157 = smul.addr %s156, 64
          %s158 = scalar_lea.vmem [#allocation3], %s157
          %s160 = ssub.s32 1024, 1024
          %161 = vsyncadd %s155, %s160
          %s162 = smul.addr %s16, 16
          %s163 = smul.addr %s162, 64
          %s164 = scalar_lea.hbm %s0, %s163
          %s166 = sshll.u32 %s158, 4
          %s167 = int_to_ptr.vmem [resolvable:$true] %s166
          %169 = dma.hbm_to_vmem [thread:$0]  %s164, 1024, %s167, %s155
        $region28: #{tpu_custom_call.1} parent=23 // pred_fallthru
          _
      $region24: #{tpu_custom_call.1} parent=5 // pred_fallthru
        _
      %p170 = scmp.le.s32.totalorder 1, %s16
      %p171 = scmp.lt.s32.totalorder %s16, 3
      %p172 = pnand %p170, %p171
      %p173 = pneg %p172
      // Predicated region
      $region29: #{tpu_custom_call.1} parent=5 // pred_check
        _
      $region30: #{tpu_custom_call.1} parent=5 // pred_check_branch
        %175 = sbr.rel (%p172) target = $region32
      $region31: #{tpu_custom_call.1} parent=5 // pred_region
        %s176 = ssub.s32 %s16, 1
        %s177 = sand.u32 %s29, 1
        %s178 = scalar_lea.sflag [#allocation4], %s177
        %s179 = sand.u32 %s29, 1
        %s180 = smul.addr %s179, 64
        %s181 = scalar_lea.vmem [#allocation3], %s180
        // Predicated region
        $region33: #{tpu_custom_call.1} parent=31 // pred_check
          %p182 = pneg %p42
        $region34: #{tpu_custom_call.1} parent=31 // pred_check_branch
          %184 = sbr.rel (%p182) target = $region36
        $region35: #{tpu_custom_call.1} parent=31 // pred_region
          %185 = dma.done %s178, 1024
        $region36: #{tpu_custom_call.1} parent=31 // pred_fallthru
          _
        // Predicated region
        $region37: #{tpu_custom_call.1} parent=31 // pred_check
          %p186 = pneg %p63
        $region38: #{tpu_custom_call.1} parent=31 // pred_check_branch
          %188 = sbr.rel (%p186) target = $region40
        $region39: #{tpu_custom_call.1} parent=31 // pred_region
          %189 = dma.done [#allocation7], 128
        $region40: #{tpu_custom_call.1} parent=31 // pred_fallthru
          _
        // Predicated region
        $region41: #{tpu_custom_call.1} parent=31 // pred_check
          %p190 = pneg %p84
        $region42: #{tpu_custom_call.1} parent=31 // pred_check_branch
          %192 = sbr.rel (%p190) target = $region44
        $region43: #{tpu_custom_call.1} parent=31 // pred_region
          %193 = dma.done [#allocation7], 2048
        $region44: #{tpu_custom_call.1} parent=31 // pred_fallthru
          _
        %s194 = sand.u32 %s29, 1
        %s195 = scalar_lea.sflag [#allocation4], %s194
        %s196 = sand.u32 %s29, 1
        %s197 = smul.addr %s196, 64
        %s198 = scalar_lea.vmem [#allocation3], %s197
        %p199 = pneg %p42
        %p200 = pneg %p39
        %p201 = pneg %p63
        %p202 = pneg %p60
        %p203 = pneg %p84
        %p204 = pneg %p81
        %p205 = pneg %p110
        %p206 = pneg %p107
        %s207 = sand.u32 %s97, 1
        %s208 = scalar_lea.sflag [#allocation5], %s207
        %s209 = sand.u32 %s97, 1
        %s210 = smul.addr %s209, 128
        %s211 = scalar_lea.vmem [#allocation9], %s210
        %v212 = vld [vmem:[%s181] sm:$0xff]
        %v213 = vld [vmem:[%s181 + $0x8] sm:$0xff]
        %v214 = vld [vmem:[%s181 + $0x10] sm:$0xff]
        %v215 = vld [vmem:[%s181 + $0x18] sm:$0xff]
        %v216 = vld [vmem:[%s181 + $0x20] sm:$0xff]
        %v217 = vld [vmem:[%s181 + $0x28] sm:$0xff]
        %v218 = vld [vmem:[%s181 + $0x30] sm:$0xff]
        %v219 = vld [vmem:[%s181 + $0x38] sm:$0xff]
        %v228 = vcombine.high %v212, %v212
        %v229 = vcombine.high %v213, %v213
        %v230 = vcombine.high %v214, %v214
        %v231 = vcombine.high %v215, %v215
        %v232 = vcombine.high %v216, %v216
        %v233 = vcombine.high %v217, %v217
        %v234 = vcombine.high %v218, %v218
        %v235 = vcombine.high %v219, %v219
        %244 = vrot.lane.b32.xlu0 %v212, 17
        %v245 = vpop.permute.xlu0 %244
        %246 = vrot.lane.b32.xlu0 %v228, 17
        %v247 = vpop.permute.xlu0 %246
        %248 = vrot.lane.b32.xlu0 %v213, 17
        %v249 = vpop.permute.xlu0 %248
        %250 = vrot.lane.b32.xlu0 %v229, 17
        %v251 = vpop.permute.xlu0 %250
        %252 = vrot.lane.b32.xlu0 %v214, 17
        %v253 = vpop.permute.xlu0 %252
        %254 = vrot.lane.b32.xlu0 %v230, 17
        %v255 = vpop.permute.xlu0 %254
        %256 = vrot.lane.b32.xlu0 %v215, 17
        %v257 = vpop.permute.xlu0 %256
        %258 = vrot.lane.b32.xlu0 %v231, 17
        %v259 = vpop.permute.xlu0 %258
        %260 = vrot.lane.b32.xlu0 %v216, 17
        %v261 = vpop.permute.xlu0 %260
        %262 = vrot.lane.b32.xlu0 %v232, 17
        %v263 = vpop.permute.xlu0 %262
        %264 = vrot.lane.b32.xlu0 %v217, 17
        %v265 = vpop.permute.xlu0 %264
        %266 = vrot.lane.b32.xlu0 %v233, 17
        %v267 = vpop.permute.xlu0 %266
        %268 = vrot.lane.b32.xlu0 %v218, 17
        %v269 = vpop.permute.xlu0 %268
        %270 = vrot.lane.b32.xlu0 %v234, 17
        %v271 = vpop.permute.xlu0 %270
        %272 = vrot.lane.b32.xlu0 %v219, 17
        %v273 = vpop.permute.xlu0 %272
        %274 = vrot.lane.b32.xlu0 %v235, 17
        %v275 = vpop.permute.xlu0 %274
        %v276 = vlaneseq
        %v277 = vand.u32 %v276, 127
        %vm278 = vcmp.lt.s32.totalorder %v277, 17
        %v279 = vsel %vm278, %v273, %v275
        %v280 = vsel %vm278, %v271, %v273
        %v281 = vsel %vm278, %v269, %v271
        %v282 = vsel %vm278, %v267, %v269
        %v283 = vsel %vm278, %v265, %v267
        %v284 = vsel %vm278, %v263, %v265
        %v285 = vsel %vm278, %v261, %v263
        %v286 = vsel %vm278, %v259, %v261
        %v287 = vsel %vm278, %v257, %v259
        %v288 = vsel %vm278, %v255, %v257
        %v289 = vsel %vm278, %v253, %v255
        %v290 = vsel %vm278, %v251, %v253
        %v291 = vsel %vm278, %v249, %v251
        %v292 = vsel %vm278, %v247, %v249
        %v293 = vsel %vm278, %v245, %v247
        %v294 = vsel %vm278, %v275, %v245
        %v295 = vld [vmem:[#allocation8] ss:$8 sm:$0xf]
        %v296 = vld [vmem:[#allocation8] ss:$8 sm:$0xf0]
        %v297 = vor.u32 %v295, %v296
        %s298 = scalar_lea.vmem [#allocation8], 64
        %v299 = vld [vmem:[%s298] ss:$8 sm:$0xf]
        %v300 = vld [vmem:[%s298] ss:$8 sm:$0xf0]
        %v301 = vor.u32 %v299, %v300
        %s302 = scalar_lea.vmem [#allocation8], 2
        %v303 = vld [vmem:[%s302] ss:$8 sm:$0xf]
        %v304 = vld [vmem:[%s302] ss:$8 sm:$0xf0]
        %v305 = vor.u32 %v303, %v304
        %s306 = scalar_lea.vmem [#allocation8], 66
        %v307 = vld [vmem:[%s306] ss:$8 sm:$0xf]
        %v308 = vld [vmem:[%s306] ss:$8 sm:$0xf0]
        %v309 = vor.u32 %v307, %v308
        %v310 = vmul.f32 %v297, %v305
        %v311 = vmul.f32 %v301, %v309
        %s312 = scalar_lea.vmem [#allocation8], 4
        %v313 = vld [vmem:[%s312] ss:$8 sm:$0xf]
        %v314 = vld [vmem:[%s312] ss:$8 sm:$0xf0]
        %v315 = vor.u32 %v313, %v314
        %s316 = scalar_lea.vmem [#allocation8], 68
        %v317 = vld [vmem:[%s316] ss:$8 sm:$0xf]
        %v318 = vld [vmem:[%s316] ss:$8 sm:$0xf0]
        %v319 = vor.u32 %v317, %v318
        %v320 = vmul.f32 %v310, %v315
        %v321 = vmul.f32 %v311, %v319
        %v324 = vlaneseq
        %v325 = vshrl.u32 %v324, 7
        %v326 = vsub.s32 0, %v325
        %v327 = vrot.slane %v320, %v326
        %v328 = vlaneseq
        %v329 = vshrl.u32 %v328, 7
        %v330 = vsub.s32 1, %v329
        %v331 = vrot.slane %v320, %v330
        %v332 = vlaneseq
        %v333 = vshrl.u32 %v332, 7
        %v334 = vsub.s32 2, %v333
        %v335 = vrot.slane %v320, %v334
        %v336 = vlaneseq
        %v337 = vshrl.u32 %v336, 7
        %v338 = vsub.s32 3, %v337
        %v339 = vrot.slane %v320, %v338
        %v340 = vlaneseq
        %v341 = vshrl.u32 %v340, 7
        %v342 = vsub.s32 4, %v341
        %v343 = vrot.slane %v320, %v342
        %v344 = vlaneseq
        %v345 = vshrl.u32 %v344, 7
        %v346 = vsub.s32 5, %v345
        %v347 = vrot.slane %v320, %v346
        %v348 = vlaneseq
        %v349 = vshrl.u32 %v348, 7
        %v350 = vsub.s32 6, %v349
        %v351 = vrot.slane %v320, %v350
        %v352 = vlaneseq
        %v353 = vshrl.u32 %v352, 7
        %v354 = vsub.s32 7, %v353
        %v355 = vrot.slane %v320, %v354
        %v356 = vlaneseq
        %v357 = vshrl.u32 %v356, 7
        %v358 = vsub.s32 0, %v357
        %v359 = vrot.slane %v321, %v358
        %v360 = vlaneseq
        %v361 = vshrl.u32 %v360, 7
        %v362 = vsub.s32 1, %v361
        %v363 = vrot.slane %v321, %v362
        %v364 = vlaneseq
        %v365 = vshrl.u32 %v364, 7
        %v366 = vsub.s32 2, %v365
        %v367 = vrot.slane %v321, %v366
        %v368 = vlaneseq
        %v369 = vshrl.u32 %v368, 7
        %v370 = vsub.s32 3, %v369
        %v371 = vrot.slane %v321, %v370
        %v372 = vlaneseq
        %v373 = vshrl.u32 %v372, 7
        %v374 = vsub.s32 4, %v373
        %v375 = vrot.slane %v321, %v374
        %v376 = vlaneseq
        %v377 = vshrl.u32 %v376, 7
        %v378 = vsub.s32 5, %v377
        %v379 = vrot.slane %v321, %v378
        %v380 = vlaneseq
        %v381 = vshrl.u32 %v380, 7
        %v382 = vsub.s32 6, %v381
        %v383 = vrot.slane %v321, %v382
        %v384 = vlaneseq
        %v385 = vshrl.u32 %v384, 7
        %v386 = vsub.s32 7, %v385
        %v387 = vrot.slane %v321, %v386
        %v404 = vmul.f32 %v280, %v327
        %v405 = vmul.f32 %v279, %v331
        %v406 = vmul.f32 %v294, %v335
        %v407 = vmul.f32 %v293, %v339
        %v408 = vmul.f32 %v292, %v343
        %v409 = vmul.f32 %v291, %v347
        %v410 = vmul.f32 %v290, %v351
        %v411 = vmul.f32 %v289, %v355
        %v412 = vmul.f32 %v288, %v359
        %v413 = vmul.f32 %v287, %v363
        %v414 = vmul.f32 %v286, %v367
        %v415 = vmul.f32 %v285, %v371
        %v416 = vmul.f32 %v284, %v375
        %v417 = vmul.f32 %v283, %v379
        %v418 = vmul.f32 %v282, %v383
        %v419 = vmul.f32 %v281, %v387
        %420 = vst [vmem:[#allocation2] sm:$0xf] %v404
        %421 = vst [vmem:[#allocation2 + $0x8] sm:$0xf] %v405
        %422 = vst [vmem:[#allocation2 + $0x10] sm:$0xf] %v406
        %423 = vst [vmem:[#allocation2 + $0x18] sm:$0xf] %v407
        %424 = vst [vmem:[#allocation2 + $0x20] sm:$0xf] %v408
        %425 = vst [vmem:[#allocation2 + $0x28] sm:$0xf] %v409
        %426 = vst [vmem:[#allocation2 + $0x30] sm:$0xf] %v410
        %427 = vst [vmem:[#allocation2 + $0x38] sm:$0xf] %v411
        %428 = vst [vmem:[#allocation2 + $0x40] sm:$0xf] %v412
        %429 = vst [vmem:[#allocation2 + $0x48] sm:$0xf] %v413
        %430 = vst [vmem:[#allocation2 + $0x50] sm:$0xf] %v414
        %431 = vst [vmem:[#allocation2 + $0x58] sm:$0xf] %v415
        %432 = vst [vmem:[#allocation2 + $0x60] sm:$0xf] %v416
        %433 = vst [vmem:[#allocation2 + $0x68] sm:$0xf] %v417
        %434 = vst [vmem:[#allocation2 + $0x70] sm:$0xf] %v418
        %435 = vst [vmem:[#allocation2 + $0x78] sm:$0xf] %v419
        %436 = vrot.lane.b32.xlu0 %v212, 16
        %v437 = vpop.permute.xlu0 %436
        %438 = vrot.lane.b32.xlu0 %v228, 16
        %v439 = vpop.permute.xlu0 %438
        %440 = vrot.lane.b32.xlu0 %v213, 16
        %v441 = vpop.permute.xlu0 %440
        %442 = vrot.lane.b32.xlu0 %v229, 16
        %v443 = vpop.permute.xlu0 %442
        %444 = vrot.lane.b32.xlu0 %v214, 16
        %v445 = vpop.permute.xlu0 %444
        %446 = vrot.lane.b32.xlu0 %v230, 16
        %v447 = vpop.permute.xlu0 %446
        %448 = vrot.lane.b32.xlu0 %v215, 16
        %v449 = vpop.permute.xlu0 %448
        %450 = vrot.lane.b32.xlu0 %v231, 16
        %v451 = vpop.permute.xlu0 %450
        %452 = vrot.lane.b32.xlu0 %v216, 16
        %v453 = vpop.permute.xlu0 %452
        %454 = vrot.lane.b32.xlu0 %v232, 16
        %v455 = vpop.permute.xlu0 %454
        %456 = vrot.lane.b32.xlu0 %v217, 16
        %v457 = vpop.permute.xlu0 %456
        %458 = vrot.lane.b32.xlu0 %v233, 16
        %v459 = vpop.permute.xlu0 %458
        %460 = vrot.lane.b32.xlu0 %v218, 16
        %v461 = vpop.permute.xlu0 %460
        %462 = vrot.lane.b32.xlu0 %v234, 16
        %v463 = vpop.permute.xlu0 %462
        %464 = vrot.lane.b32.xlu0 %v219, 16
        %v465 = vpop.permute.xlu0 %464
        %466 = vrot.lane.b32.xlu0 %v235, 16
        %v467 = vpop.permute.xlu0 %466
        %vm468 = vcmp.lt.s32.totalorder %v277, 16
        %v469 = vsel %vm468, %v465, %v467
        %v470 = vsel %vm468, %v463, %v465
        %v471 = vsel %vm468, %v461, %v463
        %v472 = vsel %vm468, %v459, %v461
        %v473 = vsel %vm468, %v457, %v459
        %v474 = vsel %vm468, %v455, %v457
        %v475 = vsel %vm468, %v453, %v455
        %v476 = vsel %vm468, %v451, %v453
        %v477 = vsel %vm468, %v449, %v451
        %v478 = vsel %vm468, %v447, %v449
        %v479 = vsel %vm468, %v445, %v447
        %v480 = vsel %vm468, %v443, %v445
        %v481 = vsel %vm468, %v441, %v443
        %v482 = vsel %vm468, %v439, %v441
        %v483 = vsel %vm468, %v437, %v439
        %v484 = vsel %vm468, %v467, %v437
        %v485 = vld [vmem:[#allocation8] ss:$8 sm:$0xf]
        %v486 = vld [vmem:[#allocation8] ss:$8 sm:$0xf0]
        %v487 = vor.u32 %v485, %v486
        %v488 = vld [vmem:[%s298] ss:$8 sm:$0xf]
        %v489 = vld [vmem:[%s298] ss:$8 sm:$0xf0]
        %v490 = vor.u32 %v488, %v489
        %v491 = vld [vmem:[%s302] ss:$8 sm:$0xf]
        %v492 = vld [vmem:[%s302] ss:$8 sm:$0xf0]
        %v493 = vor.u32 %v491, %v492
        %v494 = vld [vmem:[%s306] ss:$8 sm:$0xf]
        %v495 = vld [vmem:[%s306] ss:$8 sm:$0xf0]
        %v496 = vor.u32 %v494, %v495
        %v497 = vmul.f32 %v487, %v493
        %v498 = vmul.f32 %v490, %v496
        %v501 = vlaneseq
        %v502 = vshrl.u32 %v501, 7
        %v503 = vsub.s32 0, %v502
        %v504 = vrot.slane %v497, %v503
        %v505 = vlaneseq
        %v506 = vshrl.u32 %v505, 7
        %v507 = vsub.s32 1, %v506
        %v508 = vrot.slane %v497, %v507
        %v509 = vlaneseq
        %v510 = vshrl.u32 %v509, 7
        %v511 = vsub.s32 2, %v510
        %v512 = vrot.slane %v497, %v511
        %v513 = vlaneseq
        %v514 = vshrl.u32 %v513, 7
        %v515 = vsub.s32 3, %v514
        %v516 = vrot.slane %v497, %v515
        %v517 = vlaneseq
        %v518 = vshrl.u32 %v517, 7
        %v519 = vsub.s32 4, %v518
        %v520 = vrot.slane %v497, %v519
        %v521 = vlaneseq
        %v522 = vshrl.u32 %v521, 7
        %v523 = vsub.s32 5, %v522
        %v524 = vrot.slane %v497, %v523
        %v525 = vlaneseq
        %v526 = vshrl.u32 %v525, 7
        %v527 = vsub.s32 6, %v526
        %v528 = vrot.slane %v497, %v527
        %v529 = vlaneseq
        %v530 = vshrl.u32 %v529, 7
        %v531 = vsub.s32 7, %v530
        %v532 = vrot.slane %v497, %v531
        %v533 = vlaneseq
        %v534 = vshrl.u32 %v533, 7
        %v535 = vsub.s32 0, %v534
        %v536 = vrot.slane %v498, %v535
        %v537 = vlaneseq
        %v538 = vshrl.u32 %v537, 7
        %v539 = vsub.s32 1, %v538
        %v540 = vrot.slane %v498, %v539
        %v541 = vlaneseq
        %v542 = vshrl.u32 %v541, 7
        %v543 = vsub.s32 2, %v542
        %v544 = vrot.slane %v498, %v543
        %v545 = vlaneseq
        %v546 = vshrl.u32 %v545, 7
        %v547 = vsub.s32 3, %v546
        %v548 = vrot.slane %v498, %v547
        %v549 = vlaneseq
        %v550 = vshrl.u32 %v549, 7
        %v551 = vsub.s32 4, %v550
        %v552 = vrot.slane %v498, %v551
        %v553 = vlaneseq
        %v554 = vshrl.u32 %v553, 7
        %v555 = vsub.s32 5, %v554
        %v556 = vrot.slane %v498, %v555
        %v557 = vlaneseq
        %v558 = vshrl.u32 %v557, 7
        %v559 = vsub.s32 6, %v558
        %v560 = vrot.slane %v498, %v559
        %v561 = vlaneseq
        %v562 = vshrl.u32 %v561, 7
        %v563 = vsub.s32 7, %v562
        %v564 = vrot.slane %v498, %v563
        %v581 = vmul.f32 %v470, %v504
        %v582 = vmul.f32 %v469, %v508
        %v583 = vmul.f32 %v484, %v512
        %v584 = vmul.f32 %v483, %v516
        %v585 = vmul.f32 %v482, %v520
        %v586 = vmul.f32 %v481, %v524
        %v587 = vmul.f32 %v480, %v528
        %v588 = vmul.f32 %v479, %v532
        %v589 = vmul.f32 %v478, %v536
        %v590 = vmul.f32 %v477, %v540
        %v591 = vmul.f32 %v476, %v544
        %v592 = vmul.f32 %v475, %v548
        %v593 = vmul.f32 %v474, %v552
        %v594 = vmul.f32 %v473, %v556
        %v595 = vmul.f32 %v472, %v560
        %v596 = vmul.f32 %v471, %v564
        %v613 = vrot.slane %v581, 4
        %v614 = vrot.slane %v582, 4
        %v615 = vrot.slane %v583, 4
        %v616 = vrot.slane %v584, 4
        %v617 = vrot.slane %v585, 4
        %v618 = vrot.slane %v586, 4
        %v619 = vrot.slane %v587, 4
        %v620 = vrot.slane %v588, 4
        %v621 = vrot.slane %v589, 4
        %v622 = vrot.slane %v590, 4
        %v623 = vrot.slane %v591, 4
        %v624 = vrot.slane %v592, 4
        %v625 = vrot.slane %v593, 4
        %v626 = vrot.slane %v594, 4
        %v627 = vrot.slane %v595, 4
        %v628 = vrot.slane %v596, 4
        %645 = vst [vmem:[#allocation2] sm:$0xf0] %v613
        %646 = vst [vmem:[#allocation2 + $0x8] sm:$0xf0] %v614
        %647 = vst [vmem:[#allocation2 + $0x10] sm:$0xf0] %v615
        %648 = vst [vmem:[#allocation2 + $0x18] sm:$0xf0] %v616
        %649 = vst [vmem:[#allocation2 + $0x20] sm:$0xf0] %v617
        %650 = vst [vmem:[#allocation2 + $0x28] sm:$0xf0] %v618
        %651 = vst [vmem:[#allocation2 + $0x30] sm:$0xf0] %v619
        %652 = vst [vmem:[#allocation2 + $0x38] sm:$0xf0] %v620
        %653 = vst [vmem:[#allocation2 + $0x40] sm:$0xf0] %v621
        %654 = vst [vmem:[#allocation2 + $0x48] sm:$0xf0] %v622
        %655 = vst [vmem:[#allocation2 + $0x50] sm:$0xf0] %v623
        %656 = vst [vmem:[#allocation2 + $0x58] sm:$0xf0] %v624
        %657 = vst [vmem:[#allocation2 + $0x60] sm:$0xf0] %v625
        %658 = vst [vmem:[#allocation2 + $0x68] sm:$0xf0] %v626
        %659 = vst [vmem:[#allocation2 + $0x70] sm:$0xf0] %v627
        %660 = vst [vmem:[#allocation2 + $0x78] sm:$0xf0] %v628
        %661 = vrot.lane.b32.xlu0 %v212, 15
        %v662 = vpop.permute.xlu0 %661
        %663 = vrot.lane.b32.xlu0 %v228, 15
        %v664 = vpop.permute.xlu0 %663
        %665 = vrot.lane.b32.xlu0 %v213, 15
        %v666 = vpop.permute.xlu0 %665
        %667 = vrot.lane.b32.xlu0 %v229, 15
        %v668 = vpop.permute.xlu0 %667
        %669 = vrot.lane.b32.xlu0 %v214, 15
        %v670 = vpop.permute.xlu0 %669
        %671 = vrot.lane.b32.xlu0 %v230, 15
        %v672 = vpop.permute.xlu0 %671
        %673 = vrot.lane.b32.xlu0 %v215, 15
        %v674 = vpop.permute.xlu0 %673
        %675 = vrot.lane.b32.xlu0 %v231, 15
        %v676 = vpop.permute.xlu0 %675
        %677 = vrot.lane.b32.xlu0 %v216, 15
        %v678 = vpop.permute.xlu0 %677
        %679 = vrot.lane.b32.xlu0 %v232, 15
        %v680 = vpop.permute.xlu0 %679
        %681 = vrot.lane.b32.xlu0 %v217, 15
        %v682 = vpop.permute.xlu0 %681
        %683 = vrot.lane.b32.xlu0 %v233, 15
        %v684 = vpop.permute.xlu0 %683
        %685 = vrot.lane.b32.xlu0 %v218, 15
        %v686 = vpop.permute.xlu0 %685
        %687 = vrot.lane.b32.xlu0 %v234, 15
        %v688 = vpop.permute.xlu0 %687
        %689 = vrot.lane.b32.xlu0 %v219, 15
        %v690 = vpop.permute.xlu0 %689
        %691 = vrot.lane.b32.xlu0 %v235, 15
        %v692 = vpop.permute.xlu0 %691
        %vm693 = vcmp.lt.s32.totalorder %v277, 15
        %v694 = vsel %vm693, %v690, %v692
        %v695 = vsel %vm693, %v688, %v690
        %v696 = vsel %vm693, %v686, %v688
        %v697 = vsel %vm693, %v684, %v686
        %v698 = vsel %vm693, %v682, %v684
        %v699 = vsel %vm693, %v680, %v682
        %v700 = vsel %vm693, %v678, %v680
        %v701 = vsel %vm693, %v676, %v678
        %v702 = vsel %vm693, %v674, %v676
        %v703 = vsel %vm693, %v672, %v674
        %v704 = vsel %vm693, %v670, %v672
        %v705 = vsel %vm693, %v668, %v670
        %v706 = vsel %vm693, %v666, %v668
        %v707 = vsel %vm693, %v664, %v666
        %v708 = vsel %vm693, %v662, %v664
        %v709 = vsel %vm693, %v692, %v662
        %v710 = vld [vmem:[#allocation8] ss:$8 sm:$0xf]
        %v711 = vld [vmem:[#allocation8] ss:$8 sm:$0xf0]
        %v712 = vor.u32 %v710, %v711
        %v713 = vld [vmem:[%s298] ss:$8 sm:$0xf]
        %v714 = vld [vmem:[%s298] ss:$8 sm:$0xf0]
        %v715 = vor.u32 %v713, %v714
        %v716 = vld [vmem:[%s302] ss:$8 sm:$0xf]
        %v717 = vld [vmem:[%s302] ss:$8 sm:$0xf0]
        %v718 = vor.u32 %v716, %v717
        %v719 = vld [vmem:[%s306] ss:$8 sm:$0xf]
        %v720 = vld [vmem:[%s306] ss:$8 sm:$0xf0]
        %v721 = vor.u32 %v719, %v720
        %v722 = vmul.f32 %v712, %v718
        %v723 = vmul.f32 %v715, %v721
        %s724 = scalar_lea.vmem [#allocation8], 5
        %v725 = vld [vmem:[%s724] ss:$8 sm:$0xf]
        %v726 = vld [vmem:[%s724] ss:$8 sm:$0xf0]
        %v727 = vor.u32 %v725, %v726
        %s728 = scalar_lea.vmem [#allocation8], 69
        %v729 = vld [vmem:[%s728] ss:$8 sm:$0xf]
        %v730 = vld [vmem:[%s728] ss:$8 sm:$0xf0]
        %v731 = vor.u32 %v729, %v730
        %v732 = vmul.f32 %v722, %v727
        %v733 = vmul.f32 %v723, %v731
        %v736 = vlaneseq
        %v737 = vshrl.u32 %v736, 7
        %v738 = vsub.s32 0, %v737
        %v739 = vrot.slane %v732, %v738
        %v740 = vlaneseq
        %v741 = vshrl.u32 %v740, 7
        %v742 = vsub.s32 1, %v741
        %v743 = vrot.slane %v732, %v742
        %v744 = vlaneseq
        %v745 = vshrl.u32 %v744, 7
        %v746 = vsub.s32 2, %v745
        %v747 = vrot.slane %v732, %v746
        %v748 = vlaneseq
        %v749 = vshrl.u32 %v748, 7
        %v750 = vsub.s32 3, %v749
        %v751 = vrot.slane %v732, %v750
        %v752 = vlaneseq
        %v753 = vshrl.u32 %v752, 7
        %v754 = vsub.s32 4, %v753
        %v755 = vrot.slane %v732, %v754
        %v756 = vlaneseq
        %v757 = vshrl.u32 %v756, 7
        %v758 = vsub.s32 5, %v757
        %v759 = vrot.slane %v732, %v758
        %v760 = vlaneseq
        %v761 = vshrl.u32 %v760, 7
        %v762 = vsub.s32 6, %v761
        %v763 = vrot.slane %v732, %v762
        %v764 = vlaneseq
        %v765 = vshrl.u32 %v764, 7
        %v766 = vsub.s32 7, %v765
        %v767 = vrot.slane %v732, %v766
        %v768 = vlaneseq
        %v769 = vshrl.u32 %v768, 7
        %v770 = vsub.s32 0, %v769
        %v771 = vrot.slane %v733, %v770
        %v772 = vlaneseq
        %v773 = vshrl.u32 %v772, 7
        %v774 = vsub.s32 1, %v773
        %v775 = vrot.slane %v733, %v774
        %v776 = vlaneseq
        %v777 = vshrl.u32 %v776, 7
        %v778 = vsub.s32 2, %v777
        %v779 = vrot.slane %v733, %v778
        %v780 = vlaneseq
        %v781 = vshrl.u32 %v780, 7
        %v782 = vsub.s32 3, %v781
        %v783 = vrot.slane %v733, %v782
        %v784 = vlaneseq
        %v785 = vshrl.u32 %v784, 7
        %v786 = vsub.s32 4, %v785
        %v787 = vrot.slane %v733, %v786
        %v788 = vlaneseq
        %v789 = vshrl.u32 %v788, 7
        %v790 = vsub.s32 5, %v789
        %v791 = vrot.slane %v733, %v790
        %v792 = vlaneseq
        %v793 = vshrl.u32 %v792, 7
        %v794 = vsub.s32 6, %v793
        %v795 = vrot.slane %v733, %v794
        %v796 = vlaneseq
        %v797 = vshrl.u32 %v796, 7
        %v798 = vsub.s32 7, %v797
        %v799 = vrot.slane %v733, %v798
        %v816 = vmul.f32 %v695, %v739
        %v817 = vmul.f32 %v694, %v743
        %v818 = vmul.f32 %v709, %v747
        %v819 = vmul.f32 %v708, %v751
        %v820 = vmul.f32 %v707, %v755
        %v821 = vmul.f32 %v706, %v759
        %v822 = vmul.f32 %v705, %v763
        %v823 = vmul.f32 %v704, %v767
        %v824 = vmul.f32 %v703, %v771
        %v825 = vmul.f32 %v702, %v775
        %v826 = vmul.f32 %v701, %v779
        %v827 = vmul.f32 %v700, %v783
        %v828 = vmul.f32 %v699, %v787
        %v829 = vmul.f32 %v698, %v791
        %v830 = vmul.f32 %v697, %v795
        %v831 = vmul.f32 %v696, %v799
        %832 = vst [vmem:[#allocation2 + $0x80] sm:$0xf] %v816
        %833 = vst [vmem:[#allocation2 + $0x88] sm:$0xf] %v817
        %834 = vst [vmem:[#allocation2 + $0x90] sm:$0xf] %v818
        %835 = vst [vmem:[#allocation2 + $0x98] sm:$0xf] %v819
        %836 = vst [vmem:[#allocation2 + $0xa0] sm:$0xf] %v820
        %837 = vst [vmem:[#allocation2 + $0xa8] sm:$0xf] %v821
        %838 = vst [vmem:[#allocation2 + $0xb0] sm:$0xf] %v822
        %839 = vst [vmem:[#allocation2 + $0xb8] sm:$0xf] %v823
        %840 = vst [vmem:[#allocation2 + $0xc0] sm:$0xf] %v824
        %841 = vst [vmem:[#allocation2 + $0xc8] sm:$0xf] %v825
        %842 = vst [vmem:[#allocation2 + $0xd0] sm:$0xf] %v826
        %843 = vst [vmem:[#allocation2 + $0xd8] sm:$0xf] %v827
        %844 = vst [vmem:[#allocation2 + $0xe0] sm:$0xf] %v828
        %845 = vst [vmem:[#allocation2 + $0xe8] sm:$0xf] %v829
        %846 = vst [vmem:[#allocation2 + $0xf0] sm:$0xf] %v830
        %847 = vst [vmem:[#allocation2 + $0xf8] sm:$0xf] %v831
        %848 = vrot.lane.b32.xlu0 %v212, 1
        %v849 = vpop.permute.xlu0 %848
        %850 = vrot.lane.b32.xlu0 %v228, 1
        %v851 = vpop.permute.xlu0 %850
        %852 = vrot.lane.b32.xlu0 %v213, 1
        %v853 = vpop.permute.xlu0 %852
        %854 = vrot.lane.b32.xlu0 %v229, 1
        %v855 = vpop.permute.xlu0 %854
        %856 = vrot.lane.b32.xlu0 %v214, 1
        %v857 = vpop.permute.xlu0 %856
        %858 = vrot.lane.b32.xlu0 %v230, 1
        %v859 = vpop.permute.xlu0 %858
        %860 = vrot.lane.b32.xlu0 %v215, 1
        %v861 = vpop.permute.xlu0 %860
        %862 = vrot.lane.b32.xlu0 %v231, 1
        %v863 = vpop.permute.xlu0 %862
        %864 = vrot.lane.b32.xlu0 %v216, 1
        %v865 = vpop.permute.xlu0 %864
        %866 = vrot.lane.b32.xlu0 %v232, 1
        %v867 = vpop.permute.xlu0 %866
        %868 = vrot.lane.b32.xlu0 %v217, 1
        %v869 = vpop.permute.xlu0 %868
        %870 = vrot.lane.b32.xlu0 %v233, 1
        %v871 = vpop.permute.xlu0 %870
        %872 = vrot.lane.b32.xlu0 %v218, 1
        %v873 = vpop.permute.xlu0 %872
        %874 = vrot.lane.b32.xlu0 %v234, 1
        %v875 = vpop.permute.xlu0 %874
        %876 = vrot.lane.b32.xlu0 %v219, 1
        %v877 = vpop.permute.xlu0 %876
        %878 = vrot.lane.b32.xlu0 %v235, 1
        %v879 = vpop.permute.xlu0 %878
        %vm880 = vcmp.lt.s32.totalorder %v277, 1
        %v881 = vsel %vm880, %v877, %v879
        %v882 = vsel %vm880, %v875, %v877
        %v883 = vsel %vm880, %v873, %v875
        %v884 = vsel %vm880, %v871, %v873
        %v885 = vsel %vm880, %v869, %v871
        %v886 = vsel %vm880, %v867, %v869
        %v887 = vsel %vm880, %v865, %v867
        %v888 = vsel %vm880, %v863, %v865
        %v889 = vsel %vm880, %v861, %v863
        %v890 = vsel %vm880, %v859, %v861
        %v891 = vsel %vm880, %v857, %v859
        %v892 = vsel %vm880, %v855, %v857
        %v893 = vsel %vm880, %v853, %v855
        %v894 = vsel %vm880, %v851, %v853
        %v895 = vsel %vm880, %v849, %v851
        %v896 = vsel %vm880, %v879, %v849
        %v897 = vld [vmem:[#allocation8] ss:$8 sm:$0xf]
        %v898 = vld [vmem:[#allocation8] ss:$8 sm:$0xf0]
        %v899 = vor.u32 %v897, %v898
        %v900 = vld [vmem:[%s298] ss:$8 sm:$0xf]
        %v901 = vld [vmem:[%s298] ss:$8 sm:$0xf0]
        %v902 = vor.u32 %v900, %v901
        %v903 = vld [vmem:[%s312] ss:$8 sm:$0xf]
        %v904 = vld [vmem:[%s312] ss:$8 sm:$0xf0]
        %v905 = vor.u32 %v903, %v904
        %v906 = vld [vmem:[%s316] ss:$8 sm:$0xf]
        %v907 = vld [vmem:[%s316] ss:$8 sm:$0xf0]
        %v908 = vor.u32 %v906, %v907
        %v909 = vmul.f32 %v899, %v905
        %v910 = vmul.f32 %v902, %v908
        %v913 = vlaneseq
        %v914 = vshrl.u32 %v913, 7
        %v915 = vsub.s32 0, %v914
        %v916 = vrot.slane %v909, %v915
        %v917 = vlaneseq
        %v918 = vshrl.u32 %v917, 7
        %v919 = vsub.s32 1, %v918
        %v920 = vrot.slane %v909, %v919
        %v921 = vlaneseq
        %v922 = vshrl.u32 %v921, 7
        %v923 = vsub.s32 2, %v922
        %v924 = vrot.slane %v909, %v923
        %v925 = vlaneseq
        %v926 = vshrl.u32 %v925, 7
        %v927 = vsub.s32 3, %v926
        %v928 = vrot.slane %v909, %v927
        %v929 = vlaneseq
        %v930 = vshrl.u32 %v929, 7
        %v931 = vsub.s32 4, %v930
        %v932 = vrot.slane %v909, %v931
        %v933 = vlaneseq
        %v934 = vshrl.u32 %v933, 7
        %v935 = vsub.s32 5, %v934
        %v936 = vrot.slane %v909, %v935
        %v937 = vlaneseq
        %v938 = vshrl.u32 %v937, 7
        %v939 = vsub.s32 6, %v938
        %v940 = vrot.slane %v909, %v939
        %v941 = vlaneseq
        %v942 = vshrl.u32 %v941, 7
        %v943 = vsub.s32 7, %v942
        %v944 = vrot.slane %v909, %v943
        %v945 = vlaneseq
        %v946 = vshrl.u32 %v945, 7
        %v947 = vsub.s32 0, %v946
        %v948 = vrot.slane %v910, %v947
        %v949 = vlaneseq
        %v950 = vshrl.u32 %v949, 7
        %v951 = vsub.s32 1, %v950
        %v952 = vrot.slane %v910, %v951
        %v953 = vlaneseq
        %v954 = vshrl.u32 %v953, 7
        %v955 = vsub.s32 2, %v954
        %v956 = vrot.slane %v910, %v955
        %v957 = vlaneseq
        %v958 = vshrl.u32 %v957, 7
        %v959 = vsub.s32 3, %v958
        %v960 = vrot.slane %v910, %v959
        %v961 = vlaneseq
        %v962 = vshrl.u32 %v961, 7
        %v963 = vsub.s32 4, %v962
        %v964 = vrot.slane %v910, %v963
        %v965 = vlaneseq
        %v966 = vshrl.u32 %v965, 7
        %v967 = vsub.s32 5, %v966
        %v968 = vrot.slane %v910, %v967
        %v969 = vlaneseq
        %v970 = vshrl.u32 %v969, 7
        %v971 = vsub.s32 6, %v970
        %v972 = vrot.slane %v910, %v971
        %v973 = vlaneseq
        %v974 = vshrl.u32 %v973, 7
        %v975 = vsub.s32 7, %v974
        %v976 = vrot.slane %v910, %v975
        %v993 = vmul.f32 %v882, %v916
        %v994 = vmul.f32 %v881, %v920
        %v995 = vmul.f32 %v896, %v924
        %v996 = vmul.f32 %v895, %v928
        %v997 = vmul.f32 %v894, %v932
        %v998 = vmul.f32 %v893, %v936
        %v999 = vmul.f32 %v892, %v940
        %v1000 = vmul.f32 %v891, %v944
        %v1001 = vmul.f32 %v890, %v948
        %v1002 = vmul.f32 %v889, %v952
        %v1003 = vmul.f32 %v888, %v956
        %v1004 = vmul.f32 %v887, %v960
        %v1005 = vmul.f32 %v886, %v964
        %v1006 = vmul.f32 %v885, %v968
        %v1007 = vmul.f32 %v884, %v972
        %v1008 = vmul.f32 %v883, %v976
        %v1025 = vrot.slane %v993, 4
        %v1026 = vrot.slane %v994, 4
        %v1027 = vrot.slane %v995, 4
        %v1028 = vrot.slane %v996, 4
        %v1029 = vrot.slane %v997, 4
        %v1030 = vrot.slane %v998, 4
        %v1031 = vrot.slane %v999, 4
        %v1032 = vrot.slane %v1000, 4
        %v1033 = vrot.slane %v1001, 4
        %v1034 = vrot.slane %v1002, 4
        %v1035 = vrot.slane %v1003, 4
        %v1036 = vrot.slane %v1004, 4
        %v1037 = vrot.slane %v1005, 4
        %v1038 = vrot.slane %v1006, 4
        %v1039 = vrot.slane %v1007, 4
        %v1040 = vrot.slane %v1008, 4
        %1057 = vst [vmem:[#allocation2 + $0x80] sm:$0xf0] %v1025
        %1058 = vst [vmem:[#allocation2 + $0x88] sm:$0xf0] %v1026
        %1059 = vst [vmem:[#allocation2 + $0x90] sm:$0xf0] %v1027
        %1060 = vst [vmem:[#allocation2 + $0x98] sm:$0xf0] %v1028
        %1061 = vst [vmem:[#allocation2 + $0xa0] sm:$0xf0] %v1029
        %1062 = vst [vmem:[#allocation2 + $0xa8] sm:$0xf0] %v1030
        %1063 = vst [vmem:[#allocation2 + $0xb0] sm:$0xf0] %v1031
        %1064 = vst [vmem:[#allocation2 + $0xb8] sm:$0xf0] %v1032
        %1065 = vst [vmem:[#allocation2 + $0xc0] sm:$0xf0] %v1033
        %1066 = vst [vmem:[#allocation2 + $0xc8] sm:$0xf0] %v1034
        %1067 = vst [vmem:[#allocation2 + $0xd0] sm:$0xf0] %v1035
        %1068 = vst [vmem:[#allocation2 + $0xd8] sm:$0xf0] %v1036
        %1069 = vst [vmem:[#allocation2 + $0xe0] sm:$0xf0] %v1037
        %1070 = vst [vmem:[#allocation2 + $0xe8] sm:$0xf0] %v1038
        %1071 = vst [vmem:[#allocation2 + $0xf0] sm:$0xf0] %v1039
        %1072 = vst [vmem:[#allocation2 + $0xf8] sm:$0xf0] %v1040
        %v1073 = vld [vmem:[#allocation8] ss:$8 sm:$0xf]
        %v1074 = vld [vmem:[#allocation8] ss:$8 sm:$0xf0]
        %v1075 = vor.u32 %v1073, %v1074
        %v1076 = vld [vmem:[%s298] ss:$8 sm:$0xf]
        %v1077 = vld [vmem:[%s298] ss:$8 sm:$0xf0]
        %v1078 = vor.u32 %v1076, %v1077
        %v1081 = vlaneseq
        %v1082 = vshrl.u32 %v1081, 7
        %v1083 = vsub.s32 0, %v1082
        %v1084 = vrot.slane %v1075, %v1083
        %v1085 = vlaneseq
        %v1086 = vshrl.u32 %v1085, 7
        %v1087 = vsub.s32 1, %v1086
        %v1088 = vrot.slane %v1075, %v1087
        %v1089 = vlaneseq
        %v1090 = vshrl.u32 %v1089, 7
        %v1091 = vsub.s32 2, %v1090
        %v1092 = vrot.slane %v1075, %v1091
        %v1093 = vlaneseq
        %v1094 = vshrl.u32 %v1093, 7
        %v1095 = vsub.s32 3, %v1094
        %v1096 = vrot.slane %v1075, %v1095
        %v1097 = vlaneseq
        %v1098 = vshrl.u32 %v1097, 7
        %v1099 = vsub.s32 4, %v1098
        %v1100 = vrot.slane %v1075, %v1099
        %v1101 = vlaneseq
        %v1102 = vshrl.u32 %v1101, 7
        %v1103 = vsub.s32 5, %v1102
        %v1104 = vrot.slane %v1075, %v1103
        %v1105 = vlaneseq
        %v1106 = vshrl.u32 %v1105, 7
        %v1107 = vsub.s32 6, %v1106
        %v1108 = vrot.slane %v1075, %v1107
        %v1109 = vlaneseq
        %v1110 = vshrl.u32 %v1109, 7
        %v1111 = vsub.s32 7, %v1110
        %v1112 = vrot.slane %v1075, %v1111
        %v1113 = vlaneseq
        %v1114 = vshrl.u32 %v1113, 7
        %v1115 = vsub.s32 0, %v1114
        %v1116 = vrot.slane %v1078, %v1115
        %v1117 = vlaneseq
        %v1118 = vshrl.u32 %v1117, 7
        %v1119 = vsub.s32 1, %v1118
        %v1120 = vrot.slane %v1078, %v1119
        %v1121 = vlaneseq
        %v1122 = vshrl.u32 %v1121, 7
        %v1123 = vsub.s32 2, %v1122
        %v1124 = vrot.slane %v1078, %v1123
        %v1125 = vlaneseq
        %v1126 = vshrl.u32 %v1125, 7
        %v1127 = vsub.s32 3, %v1126
        %v1128 = vrot.slane %v1078, %v1127
        %v1129 = vlaneseq
        %v1130 = vshrl.u32 %v1129, 7
        %v1131 = vsub.s32 4, %v1130
        %v1132 = vrot.slane %v1078, %v1131
        %v1133 = vlaneseq
        %v1134 = vshrl.u32 %v1133, 7
        %v1135 = vsub.s32 5, %v1134
        %v1136 = vrot.slane %v1078, %v1135
        %v1137 = vlaneseq
        %v1138 = vshrl.u32 %v1137, 7
        %v1139 = vsub.s32 6, %v1138
        %v1140 = vrot.slane %v1078, %v1139
        %v1141 = vlaneseq
        %v1142 = vshrl.u32 %v1141, 7
        %v1143 = vsub.s32 7, %v1142
        %v1144 = vrot.slane %v1078, %v1143
        %v1161 = vmul.f32 %v219, %v1084
        %v1162 = vmul.f32 %v235, %v1088
        %v1163 = vmul.f32 %v212, %v1092
        %v1164 = vmul.f32 %v228, %v1096
        %v1165 = vmul.f32 %v213, %v1100
        %v1166 = vmul.f32 %v229, %v1104
        %v1167 = vmul.f32 %v214, %v1108
        %v1168 = vmul.f32 %v230, %v1112
        %v1169 = vmul.f32 %v215, %v1116
        %v1170 = vmul.f32 %v231, %v1120
        %v1171 = vmul.f32 %v216, %v1124
        %v1172 = vmul.f32 %v232, %v1128
        %v1173 = vmul.f32 %v217, %v1132
        %v1174 = vmul.f32 %v233, %v1136
        %v1175 = vmul.f32 %v218, %v1140
        %v1176 = vmul.f32 %v234, %v1144
        %1177 = vst [vmem:[#allocation2 + $0x100] sm:$0xf] %v1161
        %1178 = vst [vmem:[#allocation2 + $0x108] sm:$0xf] %v1162
        %1179 = vst [vmem:[#allocation2 + $0x110] sm:$0xf] %v1163
        %1180 = vst [vmem:[#allocation2 + $0x118] sm:$0xf] %v1164
        %1181 = vst [vmem:[#allocation2 + $0x120] sm:$0xf] %v1165
        %1182 = vst [vmem:[#allocation2 + $0x128] sm:$0xf] %v1166
        %1183 = vst [vmem:[#allocation2 + $0x130] sm:$0xf] %v1167
        %1184 = vst [vmem:[#allocation2 + $0x138] sm:$0xf] %v1168
        %1185 = vst [vmem:[#allocation2 + $0x140] sm:$0xf] %v1169
        %1186 = vst [vmem:[#allocation2 + $0x148] sm:$0xf] %v1170
        %1187 = vst [vmem:[#allocation2 + $0x150] sm:$0xf] %v1171
        %1188 = vst [vmem:[#allocation2 + $0x158] sm:$0xf] %v1172
        %1189 = vst [vmem:[#allocation2 + $0x160] sm:$0xf] %v1173
        %1190 = vst [vmem:[#allocation2 + $0x168] sm:$0xf] %v1174
        %1191 = vst [vmem:[#allocation2 + $0x170] sm:$0xf] %v1175
        %1192 = vst [vmem:[#allocation2 + $0x178] sm:$0xf] %v1176
        %1193 = vrot.lane.b32.xlu0 %v212, 127
        %v1194 = vpop.permute.xlu0 %1193
        %1195 = vrot.lane.b32.xlu0 %v228, 127
        %v1196 = vpop.permute.xlu0 %1195
        %1197 = vrot.lane.b32.xlu0 %v213, 127
        %v1198 = vpop.permute.xlu0 %1197
        %1199 = vrot.lane.b32.xlu0 %v229, 127
        %v1200 = vpop.permute.xlu0 %1199
        %1201 = vrot.lane.b32.xlu0 %v214, 127
        %v1202 = vpop.permute.xlu0 %1201
        %1203 = vrot.lane.b32.xlu0 %v230, 127
        %v1204 = vpop.permute.xlu0 %1203
        %1205 = vrot.lane.b32.xlu0 %v215, 127
        %v1206 = vpop.permute.xlu0 %1205
        %1207 = vrot.lane.b32.xlu0 %v231, 127
        %v1208 = vpop.permute.xlu0 %1207
        %1209 = vrot.lane.b32.xlu0 %v216, 127
        %v1210 = vpop.permute.xlu0 %1209
        %1211 = vrot.lane.b32.xlu0 %v232, 127
        %v1212 = vpop.permute.xlu0 %1211
        %1213 = vrot.lane.b32.xlu0 %v217, 127
        %v1214 = vpop.permute.xlu0 %1213
        %1215 = vrot.lane.b32.xlu0 %v233, 127
        %v1216 = vpop.permute.xlu0 %1215
        %1217 = vrot.lane.b32.xlu0 %v218, 127
        %v1218 = vpop.permute.xlu0 %1217
        %1219 = vrot.lane.b32.xlu0 %v234, 127
        %v1220 = vpop.permute.xlu0 %1219
        %1221 = vrot.lane.b32.xlu0 %v219, 127
        %v1222 = vpop.permute.xlu0 %1221
        %1223 = vrot.lane.b32.xlu0 %v235, 127
        %v1224 = vpop.permute.xlu0 %1223
        %vm1225 = vcmp.lt.s32.totalorder %v277, 127
        %v1226 = vsel %vm1225, %v1222, %v1224
        %v1227 = vsel %vm1225, %v1220, %v1222
        %v1228 = vsel %vm1225, %v1218, %v1220
        %v1229 = vsel %vm1225, %v1216, %v1218
        %v1230 = vsel %vm1225, %v1214, %v1216
        %v1231 = vsel %vm1225, %v1212, %v1214
        %v1232 = vsel %vm1225, %v1210, %v1212
        %v1233 = vsel %vm1225, %v1208, %v1210
        %v1234 = vsel %vm1225, %v1206, %v1208
        %v1235 = vsel %vm1225, %v1204, %v1206
        %v1236 = vsel %vm1225, %v1202, %v1204
        %v1237 = vsel %vm1225, %v1200, %v1202
        %v1238 = vsel %vm1225, %v1198, %v1200
        %v1239 = vsel %vm1225, %v1196, %v1198
        %v1240 = vsel %vm1225, %v1194, %v1196
        %v1241 = vsel %vm1225, %v1224, %v1194
        %v1242 = vld [vmem:[#allocation8] ss:$8 sm:$0xf]
        %v1243 = vld [vmem:[#allocation8] ss:$8 sm:$0xf0]
        %v1244 = vor.u32 %v1242, %v1243
        %v1245 = vld [vmem:[%s298] ss:$8 sm:$0xf]
        %v1246 = vld [vmem:[%s298] ss:$8 sm:$0xf0]
        %v1247 = vor.u32 %v1245, %v1246
        %v1248 = vld [vmem:[%s724] ss:$8 sm:$0xf]
        %v1249 = vld [vmem:[%s724] ss:$8 sm:$0xf0]
        %v1250 = vor.u32 %v1248, %v1249
        %v1251 = vld [vmem:[%s728] ss:$8 sm:$0xf]
        %v1252 = vld [vmem:[%s728] ss:$8 sm:$0xf0]
        %v1253 = vor.u32 %v1251, %v1252
        %v1254 = vmul.f32 %v1244, %v1250
        %v1255 = vmul.f32 %v1247, %v1253
        %v1258 = vlaneseq
        %v1259 = vshrl.u32 %v1258, 7
        %v1260 = vsub.s32 0, %v1259
        %v1261 = vrot.slane %v1254, %v1260
        %v1262 = vlaneseq
        %v1263 = vshrl.u32 %v1262, 7
        %v1264 = vsub.s32 1, %v1263
        %v1265 = vrot.slane %v1254, %v1264
        %v1266 = vlaneseq
        %v1267 = vshrl.u32 %v1266, 7
        %v1268 = vsub.s32 2, %v1267
        %v1269 = vrot.slane %v1254, %v1268
        %v1270 = vlaneseq
        %v1271 = vshrl.u32 %v1270, 7
        %v1272 = vsub.s32 3, %v1271
        %v1273 = vrot.slane %v1254, %v1272
        %v1274 = vlaneseq
        %v1275 = vshrl.u32 %v1274, 7
        %v1276 = vsub.s32 4, %v1275
        %v1277 = vrot.slane %v1254, %v1276
        %v1278 = vlaneseq
        %v1279 = vshrl.u32 %v1278, 7
        %v1280 = vsub.s32 5, %v1279
        %v1281 = vrot.slane %v1254, %v1280
        %v1282 = vlaneseq
        %v1283 = vshrl.u32 %v1282, 7
        %v1284 = vsub.s32 6, %v1283
        %v1285 = vrot.slane %v1254, %v1284
        %v1286 = vlaneseq
        %v1287 = vshrl.u32 %v1286, 7
        %v1288 = vsub.s32 7, %v1287
        %v1289 = vrot.slane %v1254, %v1288
        %v1290 = vlaneseq
        %v1291 = vshrl.u32 %v1290, 7
        %v1292 = vsub.s32 0, %v1291
        %v1293 = vrot.slane %v1255, %v1292
        %v1294 = vlaneseq
        %v1295 = vshrl.u32 %v1294, 7
        %v1296 = vsub.s32 1, %v1295
        %v1297 = vrot.slane %v1255, %v1296
        %v1298 = vlaneseq
        %v1299 = vshrl.u32 %v1298, 7
        %v1300 = vsub.s32 2, %v1299
        %v1301 = vrot.slane %v1255, %v1300
        %v1302 = vlaneseq
        %v1303 = vshrl.u32 %v1302, 7
        %v1304 = vsub.s32 3, %v1303
        %v1305 = vrot.slane %v1255, %v1304
        %v1306 = vlaneseq
        %v1307 = vshrl.u32 %v1306, 7
        %v1308 = vsub.s32 4, %v1307
        %v1309 = vrot.slane %v1255, %v1308
        %v1310 = vlaneseq
        %v1311 = vshrl.u32 %v1310, 7
        %v1312 = vsub.s32 5, %v1311
        %v1313 = vrot.slane %v1255, %v1312
        %v1314 = vlaneseq
        %v1315 = vshrl.u32 %v1314, 7
        %v1316 = vsub.s32 6, %v1315
        %v1317 = vrot.slane %v1255, %v1316
        %v1318 = vlaneseq
        %v1319 = vshrl.u32 %v1318, 7
        %v1320 = vsub.s32 7, %v1319
        %v1321 = vrot.slane %v1255, %v1320
        %v1338 = vmul.f32 %v1226, %v1261
        %v1339 = vmul.f32 %v1241, %v1265
        %v1340 = vmul.f32 %v1240, %v1269
        %v1341 = vmul.f32 %v1239, %v1273
        %v1342 = vmul.f32 %v1238, %v1277
        %v1343 = vmul.f32 %v1237, %v1281
        %v1344 = vmul.f32 %v1236, %v1285
        %v1345 = vmul.f32 %v1235, %v1289
        %v1346 = vmul.f32 %v1234, %v1293
        %v1347 = vmul.f32 %v1233, %v1297
        %v1348 = vmul.f32 %v1232, %v1301
        %v1349 = vmul.f32 %v1231, %v1305
        %v1350 = vmul.f32 %v1230, %v1309
        %v1351 = vmul.f32 %v1229, %v1313
        %v1352 = vmul.f32 %v1228, %v1317
        %v1353 = vmul.f32 %v1227, %v1321
        %v1370 = vrot.slane %v1338, 4
        %v1371 = vrot.slane %v1339, 4
        %v1372 = vrot.slane %v1340, 4
        %v1373 = vrot.slane %v1341, 4
        %v1374 = vrot.slane %v1342, 4
        %v1375 = vrot.slane %v1343, 4
        %v1376 = vrot.slane %v1344, 4
        %v1377 = vrot.slane %v1345, 4
        %v1378 = vrot.slane %v1346, 4
        %v1379 = vrot.slane %v1347, 4
        %v1380 = vrot.slane %v1348, 4
        %v1381 = vrot.slane %v1349, 4
        %v1382 = vrot.slane %v1350, 4
        %v1383 = vrot.slane %v1351, 4
        %v1384 = vrot.slane %v1352, 4
        %v1385 = vrot.slane %v1353, 4
        %1402 = vst [vmem:[#allocation2 + $0x100] sm:$0xf0] %v1370
        %1403 = vst [vmem:[#allocation2 + $0x108] sm:$0xf0] %v1371
        %1404 = vst [vmem:[#allocation2 + $0x110] sm:$0xf0] %v1372
        %1405 = vst [vmem:[#allocation2 + $0x118] sm:$0xf0] %v1373
        %1406 = vst [vmem:[#allocation2 + $0x120] sm:$0xf0] %v1374
        %1407 = vst [vmem:[#allocation2 + $0x128] sm:$0xf0] %v1375
        %1408 = vst [vmem:[#allocation2 + $0x130] sm:$0xf0] %v1376
        %1409 = vst [vmem:[#allocation2 + $0x138] sm:$0xf0] %v1377
        %1410 = vst [vmem:[#allocation2 + $0x140] sm:$0xf0] %v1378
        %1411 = vst [vmem:[#allocation2 + $0x148] sm:$0xf0] %v1379
        %1412 = vst [vmem:[#allocation2 + $0x150] sm:$0xf0] %v1380
        %1413 = vst [vmem:[#allocation2 + $0x158] sm:$0xf0] %v1381
        %1414 = vst [vmem:[#allocation2 + $0x160] sm:$0xf0] %v1382
        %1415 = vst [vmem:[#allocation2 + $0x168] sm:$0xf0] %v1383
        %1416 = vst [vmem:[#allocation2 + $0x170] sm:$0xf0] %v1384
        %1417 = vst [vmem:[#allocation2 + $0x178] sm:$0xf0] %v1385
        %1418 = vrot.lane.b32.xlu0 %v212, 113
        %v1419 = vpop.permute.xlu0 %1418
        %1420 = vrot.lane.b32.xlu0 %v228, 113
        %v1421 = vpop.permute.xlu0 %1420
        %1422 = vrot.lane.b32.xlu0 %v213, 113
        %v1423 = vpop.permute.xlu0 %1422
        %1424 = vrot.lane.b32.xlu0 %v229, 113
        %v1425 = vpop.permute.xlu0 %1424
        %1426 = vrot.lane.b32.xlu0 %v214, 113
        %v1427 = vpop.permute.xlu0 %1426
        %1428 = vrot.lane.b32.xlu0 %v230, 113
        %v1429 = vpop.permute.xlu0 %1428
        %1430 = vrot.lane.b32.xlu0 %v215, 113
        %v1431 = vpop.permute.xlu0 %1430
        %1432 = vrot.lane.b32.xlu0 %v231, 113
        %v1433 = vpop.permute.xlu0 %1432
        %1434 = vrot.lane.b32.xlu0 %v216, 113
        %v1435 = vpop.permute.xlu0 %1434
        %1436 = vrot.lane.b32.xlu0 %v232, 113
        %v1437 = vpop.permute.xlu0 %1436
        %1438 = vrot.lane.b32.xlu0 %v217, 113
        %v1439 = vpop.permute.xlu0 %1438
        %1440 = vrot.lane.b32.xlu0 %v233, 113
        %v1441 = vpop.permute.xlu0 %1440
        %1442 = vrot.lane.b32.xlu0 %v218, 113
        %v1443 = vpop.permute.xlu0 %1442
        %1444 = vrot.lane.b32.xlu0 %v234, 113
        %v1445 = vpop.permute.xlu0 %1444
        %1446 = vrot.lane.b32.xlu0 %v219, 113
        %v1447 = vpop.permute.xlu0 %1446
        %1448 = vrot.lane.b32.xlu0 %v235, 113
        %v1449 = vpop.permute.xlu0 %1448
        %vm1450 = vcmp.lt.s32.totalorder %v277, 113
        %v1451 = vsel %vm1450, %v1447, %v1449
        %v1452 = vsel %vm1450, %v1445, %v1447
        %v1453 = vsel %vm1450, %v1443, %v1445
        %v1454 = vsel %vm1450, %v1441, %v1443
        %v1455 = vsel %vm1450, %v1439, %v1441
        %v1456 = vsel %vm1450, %v1437, %v1439
        %v1457 = vsel %vm1450, %v1435, %v1437
        %v1458 = vsel %vm1450, %v1433, %v1435
        %v1459 = vsel %vm1450, %v1431, %v1433
        %v1460 = vsel %vm1450, %v1429, %v1431
        %v1461 = vsel %vm1450, %v1427, %v1429
        %v1462 = vsel %vm1450, %v1425, %v1427
        %v1463 = vsel %vm1450, %v1423, %v1425
        %v1464 = vsel %vm1450, %v1421, %v1423
        %v1465 = vsel %vm1450, %v1419, %v1421
        %v1466 = vsel %vm1450, %v1449, %v1419
        %v1467 = vld [vmem:[#allocation8] ss:$8 sm:$0xf]
        %v1468 = vld [vmem:[#allocation8] ss:$8 sm:$0xf0]
        %v1469 = vor.u32 %v1467, %v1468
        %v1470 = vld [vmem:[%s298] ss:$8 sm:$0xf]
        %v1471 = vld [vmem:[%s298] ss:$8 sm:$0xf0]
        %v1472 = vor.u32 %v1470, %v1471
        %s1473 = scalar_lea.vmem [#allocation8], 3
        %v1474 = vld [vmem:[%s1473] ss:$8 sm:$0xf]
        %v1475 = vld [vmem:[%s1473] ss:$8 sm:$0xf0]
        %v1476 = vor.u32 %v1474, %v1475
        %s1477 = scalar_lea.vmem [#allocation8], 67
        %v1478 = vld [vmem:[%s1477] ss:$8 sm:$0xf]
        %v1479 = vld [vmem:[%s1477] ss:$8 sm:$0xf0]
        %v1480 = vor.u32 %v1478, %v1479
        %v1481 = vmul.f32 %v1469, %v1476
        %v1482 = vmul.f32 %v1472, %v1480
        %v1483 = vld [vmem:[%s312] ss:$8 sm:$0xf]
        %v1484 = vld [vmem:[%s312] ss:$8 sm:$0xf0]
        %v1485 = vor.u32 %v1483, %v1484
        %v1486 = vld [vmem:[%s316] ss:$8 sm:$0xf]
        %v1487 = vld [vmem:[%s316] ss:$8 sm:$0xf0]
        %v1488 = vor.u32 %v1486, %v1487
        %v1489 = vmul.f32 %v1481, %v1485
        %v1490 = vmul.f32 %v1482, %v1488
        %v1493 = vlaneseq
        %v1494 = vshrl.u32 %v1493, 7
        %v1495 = vsub.s32 0, %v1494
        %v1496 = vrot.slane %v1489, %v1495
        %v1497 = vlaneseq
        %v1498 = vshrl.u32 %v1497, 7
        %v1499 = vsub.s32 1, %v1498
        %v1500 = vrot.slane %v1489, %v1499
        %v1501 = vlaneseq
        %v1502 = vshrl.u32 %v1501, 7
        %v1503 = vsub.s32 2, %v1502
        %v1504 = vrot.slane %v1489, %v1503
        %v1505 = vlaneseq
        %v1506 = vshrl.u32 %v1505, 7
        %v1507 = vsub.s32 3, %v1506
        %v1508 = vrot.slane %v1489, %v1507
        %v1509 = vlaneseq
        %v1510 = vshrl.u32 %v1509, 7
        %v1511 = vsub.s32 4, %v1510
        %v1512 = vrot.slane %v1489, %v1511
        %v1513 = vlaneseq
        %v1514 = vshrl.u32 %v1513, 7
        %v1515 = vsub.s32 5, %v1514
        %v1516 = vrot.slane %v1489, %v1515
        %v1517 = vlaneseq
        %v1518 = vshrl.u32 %v1517, 7
        %v1519 = vsub.s32 6, %v1518
        %v1520 = vrot.slane %v1489, %v1519
        %v1521 = vlaneseq
        %v1522 = vshrl.u32 %v1521, 7
        %v1523 = vsub.s32 7, %v1522
        %v1524 = vrot.slane %v1489, %v1523
        %v1525 = vlaneseq
        %v1526 = vshrl.u32 %v1525, 7
        %v1527 = vsub.s32 0, %v1526
        %v1528 = vrot.slane %v1490, %v1527
        %v1529 = vlaneseq
        %v1530 = vshrl.u32 %v1529, 7
        %v1531 = vsub.s32 1, %v1530
        %v1532 = vrot.slane %v1490, %v1531
        %v1533 = vlaneseq
        %v1534 = vshrl.u32 %v1533, 7
        %v1535 = vsub.s32 2, %v1534
        %v1536 = vrot.slane %v1490, %v1535
        %v1537 = vlaneseq
        %v1538 = vshrl.u32 %v1537, 7
        %v1539 = vsub.s32 3, %v1538
        %v1540 = vrot.slane %v1490, %v1539
        %v1541 = vlaneseq
        %v1542 = vshrl.u32 %v1541, 7
        %v1543 = vsub.s32 4, %v1542
        %v1544 = vrot.slane %v1490, %v1543
        %v1545 = vlaneseq
        %v1546 = vshrl.u32 %v1545, 7
        %v1547 = vsub.s32 5, %v1546
        %v1548 = vrot.slane %v1490, %v1547
        %v1549 = vlaneseq
        %v1550 = vshrl.u32 %v1549, 7
        %v1551 = vsub.s32 6, %v1550
        %v1552 = vrot.slane %v1490, %v1551
        %v1553 = vlaneseq
        %v1554 = vshrl.u32 %v1553, 7
        %v1555 = vsub.s32 7, %v1554
        %v1556 = vrot.slane %v1490, %v1555
        %v1573 = vmul.f32 %v1451, %v1496
        %v1574 = vmul.f32 %v1466, %v1500
        %v1575 = vmul.f32 %v1465, %v1504
        %v1576 = vmul.f32 %v1464, %v1508
        %v1577 = vmul.f32 %v1463, %v1512
        %v1578 = vmul.f32 %v1462, %v1516
        %v1579 = vmul.f32 %v1461, %v1520
        %v1580 = vmul.f32 %v1460, %v1524
        %v1581 = vmul.f32 %v1459, %v1528
        %v1582 = vmul.f32 %v1458, %v1532
        %v1583 = vmul.f32 %v1457, %v1536
        %v1584 = vmul.f32 %v1456, %v1540
        %v1585 = vmul.f32 %v1455, %v1544
        %v1586 = vmul.f32 %v1454, %v1548
        %v1587 = vmul.f32 %v1453, %v1552
        %v1588 = vmul.f32 %v1452, %v1556
        %1589 = vst [vmem:[#allocation2 + $0x180] sm:$0xf] %v1573
        %1590 = vst [vmem:[#allocation2 + $0x188] sm:$0xf] %v1574
        %1591 = vst [vmem:[#allocation2 + $0x190] sm:$0xf] %v1575
        %1592 = vst [vmem:[#allocation2 + $0x198] sm:$0xf] %v1576
        %1593 = vst [vmem:[#allocation2 + $0x1a0] sm:$0xf] %v1577
        %1594 = vst [vmem:[#allocation2 + $0x1a8] sm:$0xf] %v1578
        %1595 = vst [vmem:[#allocation2 + $0x1b0] sm:$0xf] %v1579
        %1596 = vst [vmem:[#allocation2 + $0x1b8] sm:$0xf] %v1580
        %1597 = vst [vmem:[#allocation2 + $0x1c0] sm:$0xf] %v1581
        %1598 = vst [vmem:[#allocation2 + $0x1c8] sm:$0xf] %v1582
        %1599 = vst [vmem:[#allocation2 + $0x1d0] sm:$0xf] %v1583
        %1600 = vst [vmem:[#allocation2 + $0x1d8] sm:$0xf] %v1584
        %1601 = vst [vmem:[#allocation2 + $0x1e0] sm:$0xf] %v1585
        %1602 = vst [vmem:[#allocation2 + $0x1e8] sm:$0xf] %v1586
        %1603 = vst [vmem:[#allocation2 + $0x1f0] sm:$0xf] %v1587
        %1604 = vst [vmem:[#allocation2 + $0x1f8] sm:$0xf] %v1588
        %1605 = vrot.lane.b32.xlu0 %v212, 112
        %v1606 = vpop.permute.xlu0 %1605
        %1607 = vrot.lane.b32.xlu0 %v228, 112
        %v1608 = vpop.permute.xlu0 %1607
        %1609 = vrot.lane.b32.xlu0 %v213, 112
        %v1610 = vpop.permute.xlu0 %1609
        %1611 = vrot.lane.b32.xlu0 %v229, 112
        %v1612 = vpop.permute.xlu0 %1611
        %1613 = vrot.lane.b32.xlu0 %v214, 112
        %v1614 = vpop.permute.xlu0 %1613
        %1615 = vrot.lane.b32.xlu0 %v230, 112
        %v1616 = vpop.permute.xlu0 %1615
        %1617 = vrot.lane.b32.xlu0 %v215, 112
        %v1618 = vpop.permute.xlu0 %1617
        %1619 = vrot.lane.b32.xlu0 %v231, 112
        %v1620 = vpop.permute.xlu0 %1619
        %1621 = vrot.lane.b32.xlu0 %v216, 112
        %v1622 = vpop.permute.xlu0 %1621
        %1623 = vrot.lane.b32.xlu0 %v232, 112
        %v1624 = vpop.permute.xlu0 %1623
        %1625 = vrot.lane.b32.xlu0 %v217, 112
        %v1626 = vpop.permute.xlu0 %1625
        %1627 = vrot.lane.b32.xlu0 %v233, 112
        %v1628 = vpop.permute.xlu0 %1627
        %1629 = vrot.lane.b32.xlu0 %v218, 112
        %v1630 = vpop.permute.xlu0 %1629
        %1631 = vrot.lane.b32.xlu0 %v234, 112
        %v1632 = vpop.permute.xlu0 %1631
        %1633 = vrot.lane.b32.xlu0 %v219, 112
        %v1634 = vpop.permute.xlu0 %1633
        %1635 = vrot.lane.b32.xlu0 %v235, 112
        %v1636 = vpop.permute.xlu0 %1635
        %vm1637 = vcmp.lt.s32.totalorder %v277, 112
        %v1638 = vsel %vm1637, %v1634, %v1636
        %v1639 = vsel %vm1637, %v1632, %v1634
        %v1640 = vsel %vm1637, %v1630, %v1632
        %v1641 = vsel %vm1637, %v1628, %v1630
        %v1642 = vsel %vm1637, %v1626, %v1628
        %v1643 = vsel %vm1637, %v1624, %v1626
        %v1644 = vsel %vm1637, %v1622, %v1624
        %v1645 = vsel %vm1637, %v1620, %v1622
        %v1646 = vsel %vm1637, %v1618, %v1620
        %v1647 = vsel %vm1637, %v1616, %v1618
        %v1648 = vsel %vm1637, %v1614, %v1616
        %v1649 = vsel %vm1637, %v1612, %v1614
        %v1650 = vsel %vm1637, %v1610, %v1612
        %v1651 = vsel %vm1637, %v1608, %v1610
        %v1652 = vsel %vm1637, %v1606, %v1608
        %v1653 = vsel %vm1637, %v1636, %v1606
        %v1654 = vld [vmem:[#allocation8] ss:$8 sm:$0xf]
        %v1655 = vld [vmem:[#allocation8] ss:$8 sm:$0xf0]
        %v1656 = vor.u32 %v1654, %v1655
        %v1657 = vld [vmem:[%s298] ss:$8 sm:$0xf]
        %v1658 = vld [vmem:[%s298] ss:$8 sm:$0xf0]
        %v1659 = vor.u32 %v1657, %v1658
        %v1660 = vld [vmem:[%s1473] ss:$8 sm:$0xf]
        %v1661 = vld [vmem:[%s1473] ss:$8 sm:$0xf0]
        %v1662 = vor.u32 %v1660, %v1661
        %v1663 = vld [vmem:[%s1477] ss:$8 sm:$0xf]
        %v1664 = vld [vmem:[%s1477] ss:$8 sm:$0xf0]
        %v1665 = vor.u32 %v1663, %v1664
        %v1666 = vmul.f32 %v1656, %v1662
        %v1667 = vmul.f32 %v1659, %v1665
        %v1670 = vlaneseq
        %v1671 = vshrl.u32 %v1670, 7
        %v1672 = vsub.s32 0, %v1671
        %v1673 = vrot.slane %v1666, %v1672
        %v1674 = vlaneseq
        %v1675 = vshrl.u32 %v1674, 7
        %v1676 = vsub.s32 1, %v1675
        %v1677 = vrot.slane %v1666, %v1676
        %v1678 = vlaneseq
        %v1679 = vshrl.u32 %v1678, 7
        %v1680 = vsub.s32 2, %v1679
        %v1681 = vrot.slane %v1666, %v1680
        %v1682 = vlaneseq
        %v1683 = vshrl.u32 %v1682, 7
        %v1684 = vsub.s32 3, %v1683
        %v1685 = vrot.slane %v1666, %v1684
        %v1686 = vlaneseq
        %v1687 = vshrl.u32 %v1686, 7
        %v1688 = vsub.s32 4, %v1687
        %v1689 = vrot.slane %v1666, %v1688
        %v1690 = vlaneseq
        %v1691 = vshrl.u32 %v1690, 7
        %v1692 = vsub.s32 5, %v1691
        %v1693 = vrot.slane %v1666, %v1692
        %v1694 = vlaneseq
        %v1695 = vshrl.u32 %v1694, 7
        %v1696 = vsub.s32 6, %v1695
        %v1697 = vrot.slane %v1666, %v1696
        %v1698 = vlaneseq
        %v1699 = vshrl.u32 %v1698, 7
        %v1700 = vsub.s32 7, %v1699
        %v1701 = vrot.slane %v1666, %v1700
        %v1702 = vlaneseq
        %v1703 = vshrl.u32 %v1702, 7
        %v1704 = vsub.s32 0, %v1703
        %v1705 = vrot.slane %v1667, %v1704
        %v1706 = vlaneseq
        %v1707 = vshrl.u32 %v1706, 7
        %v1708 = vsub.s32 1, %v1707
        %v1709 = vrot.slane %v1667, %v1708
        %v1710 = vlaneseq
        %v1711 = vshrl.u32 %v1710, 7
        %v1712 = vsub.s32 2, %v1711
        %v1713 = vrot.slane %v1667, %v1712
        %v1714 = vlaneseq
        %v1715 = vshrl.u32 %v1714, 7
        %v1716 = vsub.s32 3, %v1715
        %v1717 = vrot.slane %v1667, %v1716
        %v1718 = vlaneseq
        %v1719 = vshrl.u32 %v1718, 7
        %v1720 = vsub.s32 4, %v1719
        %v1721 = vrot.slane %v1667, %v1720
        %v1722 = vlaneseq
        %v1723 = vshrl.u32 %v1722, 7
        %v1724 = vsub.s32 5, %v1723
        %v1725 = vrot.slane %v1667, %v1724
        %v1726 = vlaneseq
        %v1727 = vshrl.u32 %v1726, 7
        %v1728 = vsub.s32 6, %v1727
        %v1729 = vrot.slane %v1667, %v1728
        %v1730 = vlaneseq
        %v1731 = vshrl.u32 %v1730, 7
        %v1732 = vsub.s32 7, %v1731
        %v1733 = vrot.slane %v1667, %v1732
        %v1750 = vmul.f32 %v1638, %v1673
        %v1751 = vmul.f32 %v1653, %v1677
        %v1752 = vmul.f32 %v1652, %v1681
        %v1753 = vmul.f32 %v1651, %v1685
        %v1754 = vmul.f32 %v1650, %v1689
        %v1755 = vmul.f32 %v1649, %v1693
        %v1756 = vmul.f32 %v1648, %v1697
        %v1757 = vmul.f32 %v1647, %v1701
        %v1758 = vmul.f32 %v1646, %v1705
        %v1759 = vmul.f32 %v1645, %v1709
        %v1760 = vmul.f32 %v1644, %v1713
        %v1761 = vmul.f32 %v1643, %v1717
        %v1762 = vmul.f32 %v1642, %v1721
        %v1763 = vmul.f32 %v1641, %v1725
        %v1764 = vmul.f32 %v1640, %v1729
        %v1765 = vmul.f32 %v1639, %v1733
        %v1782 = vrot.slane %v1750, 4
        %v1783 = vrot.slane %v1751, 4
        %v1784 = vrot.slane %v1752, 4
        %v1785 = vrot.slane %v1753, 4
        %v1786 = vrot.slane %v1754, 4
        %v1787 = vrot.slane %v1755, 4
        %v1788 = vrot.slane %v1756, 4
        %v1789 = vrot.slane %v1757, 4
        %v1790 = vrot.slane %v1758, 4
        %v1791 = vrot.slane %v1759, 4
        %v1792 = vrot.slane %v1760, 4
        %v1793 = vrot.slane %v1761, 4
        %v1794 = vrot.slane %v1762, 4
        %v1795 = vrot.slane %v1763, 4
        %v1796 = vrot.slane %v1764, 4
        %v1797 = vrot.slane %v1765, 4
        %1814 = vst [vmem:[#allocation2 + $0x180] sm:$0xf0] %v1782
        %1815 = vst [vmem:[#allocation2 + $0x188] sm:$0xf0] %v1783
        %1816 = vst [vmem:[#allocation2 + $0x190] sm:$0xf0] %v1784
        %1817 = vst [vmem:[#allocation2 + $0x198] sm:$0xf0] %v1785
        %1818 = vst [vmem:[#allocation2 + $0x1a0] sm:$0xf0] %v1786
        %1819 = vst [vmem:[#allocation2 + $0x1a8] sm:$0xf0] %v1787
        %1820 = vst [vmem:[#allocation2 + $0x1b0] sm:$0xf0] %v1788
        %1821 = vst [vmem:[#allocation2 + $0x1b8] sm:$0xf0] %v1789
        %1822 = vst [vmem:[#allocation2 + $0x1c0] sm:$0xf0] %v1790
        %1823 = vst [vmem:[#allocation2 + $0x1c8] sm:$0xf0] %v1791
        %1824 = vst [vmem:[#allocation2 + $0x1d0] sm:$0xf0] %v1792
        %1825 = vst [vmem:[#allocation2 + $0x1d8] sm:$0xf0] %v1793
        %1826 = vst [vmem:[#allocation2 + $0x1e0] sm:$0xf0] %v1794
        %1827 = vst [vmem:[#allocation2 + $0x1e8] sm:$0xf0] %v1795
        %1828 = vst [vmem:[#allocation2 + $0x1f0] sm:$0xf0] %v1796
        %1829 = vst [vmem:[#allocation2 + $0x1f8] sm:$0xf0] %v1797
        %1830 = vrot.lane.b32.xlu0 %v212, 111
        %v1831 = vpop.permute.xlu0 %1830
        %1832 = vrot.lane.b32.xlu0 %v228, 111
        %v1833 = vpop.permute.xlu0 %1832
        %1834 = vrot.lane.b32.xlu0 %v213, 111
        %v1835 = vpop.permute.xlu0 %1834
        %1836 = vrot.lane.b32.xlu0 %v229, 111
        %v1837 = vpop.permute.xlu0 %1836
        %1838 = vrot.lane.b32.xlu0 %v214, 111
        %v1839 = vpop.permute.xlu0 %1838
        %1840 = vrot.lane.b32.xlu0 %v230, 111
        %v1841 = vpop.permute.xlu0 %1840
        %1842 = vrot.lane.b32.xlu0 %v215, 111
        %v1843 = vpop.permute.xlu0 %1842
        %1844 = vrot.lane.b32.xlu0 %v231, 111
        %v1845 = vpop.permute.xlu0 %1844
        %1846 = vrot.lane.b32.xlu0 %v216, 111
        %v1847 = vpop.permute.xlu0 %1846
        %1848 = vrot.lane.b32.xlu0 %v232, 111
        %v1849 = vpop.permute.xlu0 %1848
        %1850 = vrot.lane.b32.xlu0 %v217, 111
        %v1851 = vpop.permute.xlu0 %1850
        %1852 = vrot.lane.b32.xlu0 %v233, 111
        %v1853 = vpop.permute.xlu0 %1852
        %1854 = vrot.lane.b32.xlu0 %v218, 111
        %v1855 = vpop.permute.xlu0 %1854
        %1856 = vrot.lane.b32.xlu0 %v234, 111
        %v1857 = vpop.permute.xlu0 %1856
        %1858 = vrot.lane.b32.xlu0 %v219, 111
        %v1859 = vpop.permute.xlu0 %1858
        %1860 = vrot.lane.b32.xlu0 %v235, 111
        %v1861 = vpop.permute.xlu0 %1860
        %vm1862 = vcmp.lt.s32.totalorder %v277, 111
        %v1863 = vsel %vm1862, %v1859, %v1861
        %v1864 = vsel %vm1862, %v1857, %v1859
        %v1865 = vsel %vm1862, %v1855, %v1857
        %v1866 = vsel %vm1862, %v1853, %v1855
        %v1867 = vsel %vm1862, %v1851, %v1853
        %v1868 = vsel %vm1862, %v1849, %v1851
        %v1869 = vsel %vm1862, %v1847, %v1849
        %v1870 = vsel %vm1862, %v1845, %v1847
        %v1871 = vsel %vm1862, %v1843, %v1845
        %v1872 = vsel %vm1862, %v1841, %v1843
        %v1873 = vsel %vm1862, %v1839, %v1841
        %v1874 = vsel %vm1862, %v1837, %v1839
        %v1875 = vsel %vm1862, %v1835, %v1837
        %v1876 = vsel %vm1862, %v1833, %v1835
        %v1877 = vsel %vm1862, %v1831, %v1833
        %v1878 = vsel %vm1862, %v1861, %v1831
        %v1879 = vld [vmem:[#allocation8] ss:$8 sm:$0xf]
        %v1880 = vld [vmem:[#allocation8] ss:$8 sm:$0xf0]
        %v1881 = vor.u32 %v1879, %v1880
        %v1882 = vld [vmem:[%s298] ss:$8 sm:$0xf]
        %v1883 = vld [vmem:[%s298] ss:$8 sm:$0xf0]
        %v1884 = vor.u32 %v1882, %v1883
        %v1885 = vld [vmem:[%s1473] ss:$8 sm:$0xf]
        %v1886 = vld [vmem:[%s1473] ss:$8 sm:$0xf0]
        %v1887 = vor.u32 %v1885, %v1886
        %v1888 = vld [vmem:[%s1477] ss:$8 sm:$0xf]
        %v1889 = vld [vmem:[%s1477] ss:$8 sm:$0xf0]
        %v1890 = vor.u32 %v1888, %v1889
        %v1891 = vmul.f32 %v1881, %v1887
        %v1892 = vmul.f32 %v1884, %v1890
        %v1893 = vld [vmem:[%s724] ss:$8 sm:$0xf]
        %v1894 = vld [vmem:[%s724] ss:$8 sm:$0xf0]
        %v1895 = vor.u32 %v1893, %v1894
        %v1896 = vld [vmem:[%s728] ss:$8 sm:$0xf]
        %v1897 = vld [vmem:[%s728] ss:$8 sm:$0xf0]
        %v1898 = vor.u32 %v1896, %v1897
        %v1899 = vmul.f32 %v1891, %v1895
        %v1900 = vmul.f32 %v1892, %v1898
        %v1903 = vlaneseq
        %v1904 = vshrl.u32 %v1903, 7
        %v1905 = vsub.s32 0, %v1904
        %v1906 = vrot.slane %v1899, %v1905
        %v1907 = vlaneseq
        %v1908 = vshrl.u32 %v1907, 7
        %v1909 = vsub.s32 1, %v1908
        %v1910 = vrot.slane %v1899, %v1909
        %v1911 = vlaneseq
        %v1912 = vshrl.u32 %v1911, 7
        %v1913 = vsub.s32 2, %v1912
        %v1914 = vrot.slane %v1899, %v1913
        %v1915 = vlaneseq
        %v1916 = vshrl.u32 %v1915, 7
        %v1917 = vsub.s32 3, %v1916
        %v1918 = vrot.slane %v1899, %v1917
        %v1919 = vlaneseq
        %v1920 = vshrl.u32 %v1919, 7
        %v1921 = vsub.s32 4, %v1920
        %v1922 = vrot.slane %v1899, %v1921
        %v1923 = vlaneseq
        %v1924 = vshrl.u32 %v1923, 7
        %v1925 = vsub.s32 5, %v1924
        %v1926 = vrot.slane %v1899, %v1925
        %v1927 = vlaneseq
        %v1928 = vshrl.u32 %v1927, 7
        %v1929 = vsub.s32 6, %v1928
        %v1930 = vrot.slane %v1899, %v1929
        %v1931 = vlaneseq
        %v1932 = vshrl.u32 %v1931, 7
        %v1933 = vsub.s32 7, %v1932
        %v1934 = vrot.slane %v1899, %v1933
        %v1935 = vlaneseq
        %v1936 = vshrl.u32 %v1935, 7
        %v1937 = vsub.s32 0, %v1936
        %v1938 = vrot.slane %v1900, %v1937
        %v1939 = vlaneseq
        %v1940 = vshrl.u32 %v1939, 7
        %v1941 = vsub.s32 1, %v1940
        %v1942 = vrot.slane %v1900, %v1941
        %v1943 = vlaneseq
        %v1944 = vshrl.u32 %v1943, 7
        %v1945 = vsub.s32 2, %v1944
        %v1946 = vrot.slane %v1900, %v1945
        %v1947 = vlaneseq
        %v1948 = vshrl.u32 %v1947, 7
        %v1949 = vsub.s32 3, %v1948
        %v1950 = vrot.slane %v1900, %v1949
        %v1951 = vlaneseq
        %v1952 = vshrl.u32 %v1951, 7
        %v1953 = vsub.s32 4, %v1952
        %v1954 = vrot.slane %v1900, %v1953
        %v1955 = vlaneseq
        %v1956 = vshrl.u32 %v1955, 7
        %v1957 = vsub.s32 5, %v1956
        %v1958 = vrot.slane %v1900, %v1957
        %v1959 = vlaneseq
        %v1960 = vshrl.u32 %v1959, 7
        %v1961 = vsub.s32 6, %v1960
        %v1962 = vrot.slane %v1900, %v1961
        %v1963 = vlaneseq
        %v1964 = vshrl.u32 %v1963, 7
        %v1965 = vsub.s32 7, %v1964
        %v1966 = vrot.slane %v1900, %v1965
        %v1983 = vmul.f32 %v1863, %v1906
        %v1984 = vmul.f32 %v1878, %v1910
        %v1985 = vmul.f32 %v1877, %v1914
        %v1986 = vmul.f32 %v1876, %v1918
        %v1987 = vmul.f32 %v1875, %v1922
        %v1988 = vmul.f32 %v1874, %v1926
        %v1989 = vmul.f32 %v1873, %v1930
        %v1990 = vmul.f32 %v1872, %v1934
        %v1991 = vmul.f32 %v1871, %v1938
        %v1992 = vmul.f32 %v1870, %v1942
        %v1993 = vmul.f32 %v1869, %v1946
        %v1994 = vmul.f32 %v1868, %v1950
        %v1995 = vmul.f32 %v1867, %v1954
        %v1996 = vmul.f32 %v1866, %v1958
        %v1997 = vmul.f32 %v1865, %v1962
        %v1998 = vmul.f32 %v1864, %v1966
        %1999 = vst [vmem:[#allocation2 + $0x200] sm:$0xf] %v1983
        %2000 = vst [vmem:[#allocation2 + $0x208] sm:$0xf] %v1984
        %2001 = vst [vmem:[#allocation2 + $0x210] sm:$0xf] %v1985
        %2002 = vst [vmem:[#allocation2 + $0x218] sm:$0xf] %v1986
        %2003 = vst [vmem:[#allocation2 + $0x220] sm:$0xf] %v1987
        %2004 = vst [vmem:[#allocation2 + $0x228] sm:$0xf] %v1988
        %2005 = vst [vmem:[#allocation2 + $0x230] sm:$0xf] %v1989
        %2006 = vst [vmem:[#allocation2 + $0x238] sm:$0xf] %v1990
        %2007 = vst [vmem:[#allocation2 + $0x240] sm:$0xf] %v1991
        %2008 = vst [vmem:[#allocation2 + $0x248] sm:$0xf] %v1992
        %2009 = vst [vmem:[#allocation2 + $0x250] sm:$0xf] %v1993
        %2010 = vst [vmem:[#allocation2 + $0x258] sm:$0xf] %v1994
        %2011 = vst [vmem:[#allocation2 + $0x260] sm:$0xf] %v1995
        %2012 = vst [vmem:[#allocation2 + $0x268] sm:$0xf] %v1996
        %2013 = vst [vmem:[#allocation2 + $0x270] sm:$0xf] %v1997
        %2014 = vst [vmem:[#allocation2 + $0x278] sm:$0xf] %v1998
        %v2015 = vld [vmem:[%s302] ss:$8 sm:$0xf]
        %v2016 = vld [vmem:[%s302] ss:$8 sm:$0xf0]
        %v2017 = vor.u32 %v2015, %v2016
        %v2018 = vld [vmem:[%s306] ss:$8 sm:$0xf]
        %v2019 = vld [vmem:[%s306] ss:$8 sm:$0xf0]
        %v2020 = vor.u32 %v2018, %v2019
        %v2021 = vld [vmem:[%s312] ss:$8 sm:$0xf]
        %v2022 = vld [vmem:[%s312] ss:$8 sm:$0xf0]
        %v2023 = vor.u32 %v2021, %v2022
        %v2024 = vld [vmem:[%s316] ss:$8 sm:$0xf]
        %v2025 = vld [vmem:[%s316] ss:$8 sm:$0xf0]
        %v2026 = vor.u32 %v2024, %v2025
        %v2027 = vmul.f32 %v2017, %v2023
        %v2028 = vmul.f32 %v2020, %v2026
        %v2031 = vlaneseq
        %v2032 = vshrl.u32 %v2031, 7
        %v2033 = vsub.s32 0, %v2032
        %v2034 = vrot.slane %v2027, %v2033
        %v2035 = vlaneseq
        %v2036 = vshrl.u32 %v2035, 7
        %v2037 = vsub.s32 1, %v2036
        %v2038 = vrot.slane %v2027, %v2037
        %v2039 = vlaneseq
        %v2040 = vshrl.u32 %v2039, 7
        %v2041 = vsub.s32 2, %v2040
        %v2042 = vrot.slane %v2027, %v2041
        %v2043 = vlaneseq
        %v2044 = vshrl.u32 %v2043, 7
        %v2045 = vsub.s32 3, %v2044
        %v2046 = vrot.slane %v2027, %v2045
        %v2047 = vlaneseq
        %v2048 = vshrl.u32 %v2047, 7
        %v2049 = vsub.s32 4, %v2048
        %v2050 = vrot.slane %v2027, %v2049
        %v2051 = vlaneseq
        %v2052 = vshrl.u32 %v2051, 7
        %v2053 = vsub.s32 5, %v2052
        %v2054 = vrot.slane %v2027, %v2053
        %v2055 = vlaneseq
        %v2056 = vshrl.u32 %v2055, 7
        %v2057 = vsub.s32 6, %v2056
        %v2058 = vrot.slane %v2027, %v2057
        %v2059 = vlaneseq
        %v2060 = vshrl.u32 %v2059, 7
        %v2061 = vsub.s32 7, %v2060
        %v2062 = vrot.slane %v2027, %v2061
        %v2063 = vlaneseq
        %v2064 = vshrl.u32 %v2063, 7
        %v2065 = vsub.s32 0, %v2064
        %v2066 = vrot.slane %v2028, %v2065
        %v2067 = vlaneseq
        %v2068 = vshrl.u32 %v2067, 7
        %v2069 = vsub.s32 1, %v2068
        %v2070 = vrot.slane %v2028, %v2069
        %v2071 = vlaneseq
        %v2072 = vshrl.u32 %v2071, 7
        %v2073 = vsub.s32 2, %v2072
        %v2074 = vrot.slane %v2028, %v2073
        %v2075 = vlaneseq
        %v2076 = vshrl.u32 %v2075, 7
        %v2077 = vsub.s32 3, %v2076
        %v2078 = vrot.slane %v2028, %v2077
        %v2079 = vlaneseq
        %v2080 = vshrl.u32 %v2079, 7
        %v2081 = vsub.s32 4, %v2080
        %v2082 = vrot.slane %v2028, %v2081
        %v2083 = vlaneseq
        %v2084 = vshrl.u32 %v2083, 7
        %v2085 = vsub.s32 5, %v2084
        %v2086 = vrot.slane %v2028, %v2085
        %v2087 = vlaneseq
        %v2088 = vshrl.u32 %v2087, 7
        %v2089 = vsub.s32 6, %v2088
        %v2090 = vrot.slane %v2028, %v2089
        %v2091 = vlaneseq
        %v2092 = vshrl.u32 %v2091, 7
        %v2093 = vsub.s32 7, %v2092
        %v2094 = vrot.slane %v2028, %v2093
        %v2111 = vmul.f32 %v294, %v2034
        %v2112 = vmul.f32 %v293, %v2038
        %v2113 = vmul.f32 %v292, %v2042
        %v2114 = vmul.f32 %v291, %v2046
        %v2115 = vmul.f32 %v290, %v2050
        %v2116 = vmul.f32 %v289, %v2054
        %v2117 = vmul.f32 %v288, %v2058
        %v2118 = vmul.f32 %v287, %v2062
        %v2119 = vmul.f32 %v286, %v2066
        %v2120 = vmul.f32 %v285, %v2070
        %v2121 = vmul.f32 %v284, %v2074
        %v2122 = vmul.f32 %v283, %v2078
        %v2123 = vmul.f32 %v282, %v2082
        %v2124 = vmul.f32 %v281, %v2086
        %v2125 = vmul.f32 %v280, %v2090
        %v2126 = vmul.f32 %v279, %v2094
        %v2143 = vrot.slane %v2111, 4
        %v2144 = vrot.slane %v2112, 4
        %v2145 = vrot.slane %v2113, 4
        %v2146 = vrot.slane %v2114, 4
        %v2147 = vrot.slane %v2115, 4
        %v2148 = vrot.slane %v2116, 4
        %v2149 = vrot.slane %v2117, 4
        %v2150 = vrot.slane %v2118, 4
        %v2151 = vrot.slane %v2119, 4
        %v2152 = vrot.slane %v2120, 4
        %v2153 = vrot.slane %v2121, 4
        %v2154 = vrot.slane %v2122, 4
        %v2155 = vrot.slane %v2123, 4
        %v2156 = vrot.slane %v2124, 4
        %v2157 = vrot.slane %v2125, 4
        %v2158 = vrot.slane %v2126, 4
        %2175 = vst [vmem:[#allocation2 + $0x200] sm:$0xf0] %v2143
        %2176 = vst [vmem:[#allocation2 + $0x208] sm:$0xf0] %v2144
        %2177 = vst [vmem:[#allocation2 + $0x210] sm:$0xf0] %v2145
        %2178 = vst [vmem:[#allocation2 + $0x218] sm:$0xf0] %v2146
        %2179 = vst [vmem:[#allocation2 + $0x220] sm:$0xf0] %v2147
        %2180 = vst [vmem:[#allocation2 + $0x228] sm:$0xf0] %v2148
        %2181 = vst [vmem:[#allocation2 + $0x230] sm:$0xf0] %v2149
        %2182 = vst [vmem:[#allocation2 + $0x238] sm:$0xf0] %v2150
        %2183 = vst [vmem:[#allocation2 + $0x240] sm:$0xf0] %v2151
        %2184 = vst [vmem:[#allocation2 + $0x248] sm:$0xf0] %v2152
        %2185 = vst [vmem:[#allocation2 + $0x250] sm:$0xf0] %v2153
        %2186 = vst [vmem:[#allocation2 + $0x258] sm:$0xf0] %v2154
        %2187 = vst [vmem:[#allocation2 + $0x260] sm:$0xf0] %v2155
        %2188 = vst [vmem:[#allocation2 + $0x268] sm:$0xf0] %v2156
        %2189 = vst [vmem:[#allocation2 + $0x270] sm:$0xf0] %v2157
        %2190 = vst [vmem:[#allocation2 + $0x278] sm:$0xf0] %v2158
        %v2191 = vld [vmem:[%s302] ss:$8 sm:$0xf]
        %v2192 = vld [vmem:[%s302] ss:$8 sm:$0xf0]
        %v2193 = vor.u32 %v2191, %v2192
        %v2194 = vld [vmem:[%s306] ss:$8 sm:$0xf]
        %v2195 = vld [vmem:[%s306] ss:$8 sm:$0xf0]
        %v2196 = vor.u32 %v2194, %v2195
        %v2199 = vlaneseq
        %v2200 = vshrl.u32 %v2199, 7
        %v2201 = vsub.s32 0, %v2200
        %v2202 = vrot.slane %v2193, %v2201
        %v2203 = vlaneseq
        %v2204 = vshrl.u32 %v2203, 7
        %v2205 = vsub.s32 1, %v2204
        %v2206 = vrot.slane %v2193, %v2205
        %v2207 = vlaneseq
        %v2208 = vshrl.u32 %v2207, 7
        %v2209 = vsub.s32 2, %v2208
        %v2210 = vrot.slane %v2193, %v2209
        %v2211 = vlaneseq
        %v2212 = vshrl.u32 %v2211, 7
        %v2213 = vsub.s32 3, %v2212
        %v2214 = vrot.slane %v2193, %v2213
        %v2215 = vlaneseq
        %v2216 = vshrl.u32 %v2215, 7
        %v2217 = vsub.s32 4, %v2216
        %v2218 = vrot.slane %v2193, %v2217
        %v2219 = vlaneseq
        %v2220 = vshrl.u32 %v2219, 7
        %v2221 = vsub.s32 5, %v2220
        %v2222 = vrot.slane %v2193, %v2221
        %v2223 = vlaneseq
        %v2224 = vshrl.u32 %v2223, 7
        %v2225 = vsub.s32 6, %v2224
        %v2226 = vrot.slane %v2193, %v2225
        %v2227 = vlaneseq
        %v2228 = vshrl.u32 %v2227, 7
        %v2229 = vsub.s32 7, %v2228
        %v2230 = vrot.slane %v2193, %v2229
        %v2231 = vlaneseq
        %v2232 = vshrl.u32 %v2231, 7
        %v2233 = vsub.s32 0, %v2232
        %v2234 = vrot.slane %v2196, %v2233
        %v2235 = vlaneseq
        %v2236 = vshrl.u32 %v2235, 7
        %v2237 = vsub.s32 1, %v2236
        %v2238 = vrot.slane %v2196, %v2237
        %v2239 = vlaneseq
        %v2240 = vshrl.u32 %v2239, 7
        %v2241 = vsub.s32 2, %v2240
        %v2242 = vrot.slane %v2196, %v2241
        %v2243 = vlaneseq
        %v2244 = vshrl.u32 %v2243, 7
        %v2245 = vsub.s32 3, %v2244
        %v2246 = vrot.slane %v2196, %v2245
        %v2247 = vlaneseq
        %v2248 = vshrl.u32 %v2247, 7
        %v2249 = vsub.s32 4, %v2248
        %v2250 = vrot.slane %v2196, %v2249
        %v2251 = vlaneseq
        %v2252 = vshrl.u32 %v2251, 7
        %v2253 = vsub.s32 5, %v2252
        %v2254 = vrot.slane %v2196, %v2253
        %v2255 = vlaneseq
        %v2256 = vshrl.u32 %v2255, 7
        %v2257 = vsub.s32 6, %v2256
        %v2258 = vrot.slane %v2196, %v2257
        %v2259 = vlaneseq
        %v2260 = vshrl.u32 %v2259, 7
        %v2261 = vsub.s32 7, %v2260
        %v2262 = vrot.slane %v2196, %v2261
        %v2279 = vmul.f32 %v484, %v2202
        %v2280 = vmul.f32 %v483, %v2206
        %v2281 = vmul.f32 %v482, %v2210
        %v2282 = vmul.f32 %v481, %v2214
        %v2283 = vmul.f32 %v480, %v2218
        %v2284 = vmul.f32 %v479, %v2222
        %v2285 = vmul.f32 %v478, %v2226
        %v2286 = vmul.f32 %v477, %v2230
        %v2287 = vmul.f32 %v476, %v2234
        %v2288 = vmul.f32 %v475, %v2238
        %v2289 = vmul.f32 %v474, %v2242
        %v2290 = vmul.f32 %v473, %v2246
        %v2291 = vmul.f32 %v472, %v2250
        %v2292 = vmul.f32 %v471, %v2254
        %v2293 = vmul.f32 %v470, %v2258
        %v2294 = vmul.f32 %v469, %v2262
        %2295 = vst [vmem:[#allocation2 + $0x280] sm:$0xf] %v2279
        %2296 = vst [vmem:[#allocation2 + $0x288] sm:$0xf] %v2280
        %2297 = vst [vmem:[#allocation2 + $0x290] sm:$0xf] %v2281
        %2298 = vst [vmem:[#allocation2 + $0x298] sm:$0xf] %v2282
        %2299 = vst [vmem:[#allocation2 + $0x2a0] sm:$0xf] %v2283
        %2300 = vst [vmem:[#allocation2 + $0x2a8] sm:$0xf] %v2284
        %2301 = vst [vmem:[#allocation2 + $0x2b0] sm:$0xf] %v2285
        %2302 = vst [vmem:[#allocation2 + $0x2b8] sm:$0xf] %v2286
        %2303 = vst [vmem:[#allocation2 + $0x2c0] sm:$0xf] %v2287
        %2304 = vst [vmem:[#allocation2 + $0x2c8] sm:$0xf] %v2288
        %2305 = vst [vmem:[#allocation2 + $0x2d0] sm:$0xf] %v2289
        %2306 = vst [vmem:[#allocation2 + $0x2d8] sm:$0xf] %v2290
        %2307 = vst [vmem:[#allocation2 + $0x2e0] sm:$0xf] %v2291
        %2308 = vst [vmem:[#allocation2 + $0x2e8] sm:$0xf] %v2292
        %2309 = vst [vmem:[#allocation2 + $0x2f0] sm:$0xf] %v2293
        %2310 = vst [vmem:[#allocation2 + $0x2f8] sm:$0xf] %v2294
        %v2311 = vld [vmem:[%s302] ss:$8 sm:$0xf]
        %v2312 = vld [vmem:[%s302] ss:$8 sm:$0xf0]
        %v2313 = vor.u32 %v2311, %v2312
        %v2314 = vld [vmem:[%s306] ss:$8 sm:$0xf]
        %v2315 = vld [vmem:[%s306] ss:$8 sm:$0xf0]
        %v2316 = vor.u32 %v2314, %v2315
        %v2317 = vld [vmem:[%s724] ss:$8 sm:$0xf]
        %v2318 = vld [vmem:[%s724] ss:$8 sm:$0xf0]
        %v2319 = vor.u32 %v2317, %v2318
        %v2320 = vld [vmem:[%s728] ss:$8 sm:$0xf]
        %v2321 = vld [vmem:[%s728] ss:$8 sm:$0xf0]
        %v2322 = vor.u32 %v2320, %v2321
        %v2323 = vmul.f32 %v2313, %v2319
        %v2324 = vmul.f32 %v2316, %v2322
        %v2327 = vlaneseq
        %v2328 = vshrl.u32 %v2327, 7
        %v2329 = vsub.s32 0, %v2328
        %v2330 = vrot.slane %v2323, %v2329
        %v2331 = vlaneseq
        %v2332 = vshrl.u32 %v2331, 7
        %v2333 = vsub.s32 1, %v2332
        %v2334 = vrot.slane %v2323, %v2333
        %v2335 = vlaneseq
        %v2336 = vshrl.u32 %v2335, 7
        %v2337 = vsub.s32 2, %v2336
        %v2338 = vrot.slane %v2323, %v2337
        %v2339 = vlaneseq
        %v2340 = vshrl.u32 %v2339, 7
        %v2341 = vsub.s32 3, %v2340
        %v2342 = vrot.slane %v2323, %v2341
        %v2343 = vlaneseq
        %v2344 = vshrl.u32 %v2343, 7
        %v2345 = vsub.s32 4, %v2344
        %v2346 = vrot.slane %v2323, %v2345
        %v2347 = vlaneseq
        %v2348 = vshrl.u32 %v2347, 7
        %v2349 = vsub.s32 5, %v2348
        %v2350 = vrot.slane %v2323, %v2349
        %v2351 = vlaneseq
        %v2352 = vshrl.u32 %v2351, 7
        %v2353 = vsub.s32 6, %v2352
        %v2354 = vrot.slane %v2323, %v2353
        %v2355 = vlaneseq
        %v2356 = vshrl.u32 %v2355, 7
        %v2357 = vsub.s32 7, %v2356
        %v2358 = vrot.slane %v2323, %v2357
        %v2359 = vlaneseq
        %v2360 = vshrl.u32 %v2359, 7
        %v2361 = vsub.s32 0, %v2360
        %v2362 = vrot.slane %v2324, %v2361
        %v2363 = vlaneseq
        %v2364 = vshrl.u32 %v2363, 7
        %v2365 = vsub.s32 1, %v2364
        %v2366 = vrot.slane %v2324, %v2365
        %v2367 = vlaneseq
        %v2368 = vshrl.u32 %v2367, 7
        %v2369 = vsub.s32 2, %v2368
        %v2370 = vrot.slane %v2324, %v2369
        %v2371 = vlaneseq
        %v2372 = vshrl.u32 %v2371, 7
        %v2373 = vsub.s32 3, %v2372
        %v2374 = vrot.slane %v2324, %v2373
        %v2375 = vlaneseq
        %v2376 = vshrl.u32 %v2375, 7
        %v2377 = vsub.s32 4, %v2376
        %v2378 = vrot.slane %v2324, %v2377
        %v2379 = vlaneseq
        %v2380 = vshrl.u32 %v2379, 7
        %v2381 = vsub.s32 5, %v2380
        %v2382 = vrot.slane %v2324, %v2381
        %v2383 = vlaneseq
        %v2384 = vshrl.u32 %v2383, 7
        %v2385 = vsub.s32 6, %v2384
        %v2386 = vrot.slane %v2324, %v2385
        %v2387 = vlaneseq
        %v2388 = vshrl.u32 %v2387, 7
        %v2389 = vsub.s32 7, %v2388
        %v2390 = vrot.slane %v2324, %v2389
        %v2407 = vmul.f32 %v709, %v2330
        %v2408 = vmul.f32 %v708, %v2334
        %v2409 = vmul.f32 %v707, %v2338
        %v2410 = vmul.f32 %v706, %v2342
        %v2411 = vmul.f32 %v705, %v2346
        %v2412 = vmul.f32 %v704, %v2350
        %v2413 = vmul.f32 %v703, %v2354
        %v2414 = vmul.f32 %v702, %v2358
        %v2415 = vmul.f32 %v701, %v2362
        %v2416 = vmul.f32 %v700, %v2366
        %v2417 = vmul.f32 %v699, %v2370
        %v2418 = vmul.f32 %v698, %v2374
        %v2419 = vmul.f32 %v697, %v2378
        %v2420 = vmul.f32 %v696, %v2382
        %v2421 = vmul.f32 %v695, %v2386
        %v2422 = vmul.f32 %v694, %v2390
        %v2439 = vrot.slane %v2407, 4
        %v2440 = vrot.slane %v2408, 4
        %v2441 = vrot.slane %v2409, 4
        %v2442 = vrot.slane %v2410, 4
        %v2443 = vrot.slane %v2411, 4
        %v2444 = vrot.slane %v2412, 4
        %v2445 = vrot.slane %v2413, 4
        %v2446 = vrot.slane %v2414, 4
        %v2447 = vrot.slane %v2415, 4
        %v2448 = vrot.slane %v2416, 4
        %v2449 = vrot.slane %v2417, 4
        %v2450 = vrot.slane %v2418, 4
        %v2451 = vrot.slane %v2419, 4
        %v2452 = vrot.slane %v2420, 4
        %v2453 = vrot.slane %v2421, 4
        %v2454 = vrot.slane %v2422, 4
        %2471 = vst [vmem:[#allocation2 + $0x280] sm:$0xf0] %v2439
        %2472 = vst [vmem:[#allocation2 + $0x288] sm:$0xf0] %v2440
        %2473 = vst [vmem:[#allocation2 + $0x290] sm:$0xf0] %v2441
        %2474 = vst [vmem:[#allocation2 + $0x298] sm:$0xf0] %v2442
        %2475 = vst [vmem:[#allocation2 + $0x2a0] sm:$0xf0] %v2443
        %2476 = vst [vmem:[#allocation2 + $0x2a8] sm:$0xf0] %v2444
        %2477 = vst [vmem:[#allocation2 + $0x2b0] sm:$0xf0] %v2445
        %2478 = vst [vmem:[#allocation2 + $0x2b8] sm:$0xf0] %v2446
        %2479 = vst [vmem:[#allocation2 + $0x2c0] sm:$0xf0] %v2447
        %2480 = vst [vmem:[#allocation2 + $0x2c8] sm:$0xf0] %v2448
        %2481 = vst [vmem:[#allocation2 + $0x2d0] sm:$0xf0] %v2449
        %2482 = vst [vmem:[#allocation2 + $0x2d8] sm:$0xf0] %v2450
        %2483 = vst [vmem:[#allocation2 + $0x2e0] sm:$0xf0] %v2451
        %2484 = vst [vmem:[#allocation2 + $0x2e8] sm:$0xf0] %v2452
        %2485 = vst [vmem:[#allocation2 + $0x2f0] sm:$0xf0] %v2453
        %2486 = vst [vmem:[#allocation2 + $0x2f8] sm:$0xf0] %v2454
        %v2487 = vld [vmem:[%s312] ss:$8 sm:$0xf]
        %v2488 = vld [vmem:[%s312] ss:$8 sm:$0xf0]
        %v2489 = vor.u32 %v2487, %v2488
        %v2490 = vld [vmem:[%s316] ss:$8 sm:$0xf]
        %v2491 = vld [vmem:[%s316] ss:$8 sm:$0xf0]
        %v2492 = vor.u32 %v2490, %v2491
        %v2495 = vlaneseq
        %v2496 = vshrl.u32 %v2495, 7
        %v2497 = vsub.s32 0, %v2496
        %v2498 = vrot.slane %v2489, %v2497
        %v2499 = vlaneseq
        %v2500 = vshrl.u32 %v2499, 7
        %v2501 = vsub.s32 1, %v2500
        %v2502 = vrot.slane %v2489, %v2501
        %v2503 = vlaneseq
        %v2504 = vshrl.u32 %v2503, 7
        %v2505 = vsub.s32 2, %v2504
        %v2506 = vrot.slane %v2489, %v2505
        %v2507 = vlaneseq
        %v2508 = vshrl.u32 %v2507, 7
        %v2509 = vsub.s32 3, %v2508
        %v2510 = vrot.slane %v2489, %v2509
        %v2511 = vlaneseq
        %v2512 = vshrl.u32 %v2511, 7
        %v2513 = vsub.s32 4, %v2512
        %v2514 = vrot.slane %v2489, %v2513
        %v2515 = vlaneseq
        %v2516 = vshrl.u32 %v2515, 7
        %v2517 = vsub.s32 5, %v2516
        %v2518 = vrot.slane %v2489, %v2517
        %v2519 = vlaneseq
        %v2520 = vshrl.u32 %v2519, 7
        %v2521 = vsub.s32 6, %v2520
        %v2522 = vrot.slane %v2489, %v2521
        %v2523 = vlaneseq
        %v2524 = vshrl.u32 %v2523, 7
        %v2525 = vsub.s32 7, %v2524
        %v2526 = vrot.slane %v2489, %v2525
        %v2527 = vlaneseq
        %v2528 = vshrl.u32 %v2527, 7
        %v2529 = vsub.s32 0, %v2528
        %v2530 = vrot.slane %v2492, %v2529
        %v2531 = vlaneseq
        %v2532 = vshrl.u32 %v2531, 7
        %v2533 = vsub.s32 1, %v2532
        %v2534 = vrot.slane %v2492, %v2533
        %v2535 = vlaneseq
        %v2536 = vshrl.u32 %v2535, 7
        %v2537 = vsub.s32 2, %v2536
        %v2538 = vrot.slane %v2492, %v2537
        %v2539 = vlaneseq
        %v2540 = vshrl.u32 %v2539, 7
        %v2541 = vsub.s32 3, %v2540
        %v2542 = vrot.slane %v2492, %v2541
        %v2543 = vlaneseq
        %v2544 = vshrl.u32 %v2543, 7
        %v2545 = vsub.s32 4, %v2544
        %v2546 = vrot.slane %v2492, %v2545
        %v2547 = vlaneseq
        %v2548 = vshrl.u32 %v2547, 7
        %v2549 = vsub.s32 5, %v2548
        %v2550 = vrot.slane %v2492, %v2549
        %v2551 = vlaneseq
        %v2552 = vshrl.u32 %v2551, 7
        %v2553 = vsub.s32 6, %v2552
        %v2554 = vrot.slane %v2492, %v2553
        %v2555 = vlaneseq
        %v2556 = vshrl.u32 %v2555, 7
        %v2557 = vsub.s32 7, %v2556
        %v2558 = vrot.slane %v2492, %v2557
        %v2575 = vmul.f32 %v896, %v2498
        %v2576 = vmul.f32 %v895, %v2502
        %v2577 = vmul.f32 %v894, %v2506
        %v2578 = vmul.f32 %v893, %v2510
        %v2579 = vmul.f32 %v892, %v2514
        %v2580 = vmul.f32 %v891, %v2518
        %v2581 = vmul.f32 %v890, %v2522
        %v2582 = vmul.f32 %v889, %v2526
        %v2583 = vmul.f32 %v888, %v2530
        %v2584 = vmul.f32 %v887, %v2534
        %v2585 = vmul.f32 %v886, %v2538
        %v2586 = vmul.f32 %v885, %v2542
        %v2587 = vmul.f32 %v884, %v2546
        %v2588 = vmul.f32 %v883, %v2550
        %v2589 = vmul.f32 %v882, %v2554
        %v2590 = vmul.f32 %v881, %v2558
        %2591 = vst [vmem:[#allocation2 + $0x300] sm:$0xf] %v2575
        %2592 = vst [vmem:[#allocation2 + $0x308] sm:$0xf] %v2576
        %2593 = vst [vmem:[#allocation2 + $0x310] sm:$0xf] %v2577
        %2594 = vst [vmem:[#allocation2 + $0x318] sm:$0xf] %v2578
        %2595 = vst [vmem:[#allocation2 + $0x320] sm:$0xf] %v2579
        %2596 = vst [vmem:[#allocation2 + $0x328] sm:$0xf] %v2580
        %2597 = vst [vmem:[#allocation2 + $0x330] sm:$0xf] %v2581
        %2598 = vst [vmem:[#allocation2 + $0x338] sm:$0xf] %v2582
        %2599 = vst [vmem:[#allocation2 + $0x340] sm:$0xf] %v2583
        %2600 = vst [vmem:[#allocation2 + $0x348] sm:$0xf] %v2584
        %2601 = vst [vmem:[#allocation2 + $0x350] sm:$0xf] %v2585
        %2602 = vst [vmem:[#allocation2 + $0x358] sm:$0xf] %v2586
        %2603 = vst [vmem:[#allocation2 + $0x360] sm:$0xf] %v2587
        %2604 = vst [vmem:[#allocation2 + $0x368] sm:$0xf] %v2588
        %2605 = vst [vmem:[#allocation2 + $0x370] sm:$0xf] %v2589
        %2606 = vst [vmem:[#allocation2 + $0x378] sm:$0xf] %v2590
        %v2607 = vcombine.low %v212, %v212
        %v2608 = vcombine.low %v213, %v213
        %v2609 = vcombine.low %v214, %v214
        %v2610 = vcombine.low %v215, %v215
        %v2611 = vcombine.low %v216, %v216
        %v2612 = vcombine.low %v217, %v217
        %v2613 = vcombine.low %v218, %v218
        %v2614 = vcombine.low %v219, %v219
        %2623 = vst [vmem:[#allocation2 + $0x300] sm:$0xf0] %v2607
        %2624 = vst [vmem:[#allocation2 + $0x308] sm:$0xf0] %v212
        %2625 = vst [vmem:[#allocation2 + $0x310] sm:$0xf0] %v2608
        %2626 = vst [vmem:[#allocation2 + $0x318] sm:$0xf0] %v213
        %2627 = vst [vmem:[#allocation2 + $0x320] sm:$0xf0] %v2609
        %2628 = vst [vmem:[#allocation2 + $0x328] sm:$0xf0] %v214
        %2629 = vst [vmem:[#allocation2 + $0x330] sm:$0xf0] %v2610
        %2630 = vst [vmem:[#allocation2 + $0x338] sm:$0xf0] %v215
        %2631 = vst [vmem:[#allocation2 + $0x340] sm:$0xf0] %v2611
        %2632 = vst [vmem:[#allocation2 + $0x348] sm:$0xf0] %v216
        %2633 = vst [vmem:[#allocation2 + $0x350] sm:$0xf0] %v2612
        %2634 = vst [vmem:[#allocation2 + $0x358] sm:$0xf0] %v217
        %2635 = vst [vmem:[#allocation2 + $0x360] sm:$0xf0] %v2613
        %2636 = vst [vmem:[#allocation2 + $0x368] sm:$0xf0] %v218
        %2637 = vst [vmem:[#allocation2 + $0x370] sm:$0xf0] %v2614
        %2638 = vst [vmem:[#allocation2 + $0x378] sm:$0xf0] %v219
        %v2639 = vld [vmem:[%s724] ss:$8 sm:$0xf]
        %v2640 = vld [vmem:[%s724] ss:$8 sm:$0xf0]
        %v2641 = vor.u32 %v2639, %v2640
        %v2642 = vld [vmem:[%s728] ss:$8 sm:$0xf]
        %v2643 = vld [vmem:[%s728] ss:$8 sm:$0xf0]
        %v2644 = vor.u32 %v2642, %v2643
        %v2647 = vlaneseq
        %v2648 = vshrl.u32 %v2647, 7
        %v2649 = vsub.s32 0, %v2648
        %v2650 = vrot.slane %v2641, %v2649
        %v2651 = vlaneseq
        %v2652 = vshrl.u32 %v2651, 7
        %v2653 = vsub.s32 1, %v2652
        %v2654 = vrot.slane %v2641, %v2653
        %v2655 = vlaneseq
        %v2656 = vshrl.u32 %v2655, 7
        %v2657 = vsub.s32 2, %v2656
        %v2658 = vrot.slane %v2641, %v2657
        %v2659 = vlaneseq
        %v2660 = vshrl.u32 %v2659, 7
        %v2661 = vsub.s32 3, %v2660
        %v2662 = vrot.slane %v2641, %v2661
        %v2663 = vlaneseq
        %v2664 = vshrl.u32 %v2663, 7
        %v2665 = vsub.s32 4, %v2664
        %v2666 = vrot.slane %v2641, %v2665
        %v2667 = vlaneseq
        %v2668 = vshrl.u32 %v2667, 7
        %v2669 = vsub.s32 5, %v2668
        %v2670 = vrot.slane %v2641, %v2669
        %v2671 = vlaneseq
        %v2672 = vshrl.u32 %v2671, 7
        %v2673 = vsub.s32 6, %v2672
        %v2674 = vrot.slane %v2641, %v2673
        %v2675 = vlaneseq
        %v2676 = vshrl.u32 %v2675, 7
        %v2677 = vsub.s32 7, %v2676
        %v2678 = vrot.slane %v2641, %v2677
        %v2679 = vlaneseq
        %v2680 = vshrl.u32 %v2679, 7
        %v2681 = vsub.s32 0, %v2680
        %v2682 = vrot.slane %v2644, %v2681
        %v2683 = vlaneseq
        %v2684 = vshrl.u32 %v2683, 7
        %v2685 = vsub.s32 1, %v2684
        %v2686 = vrot.slane %v2644, %v2685
        %v2687 = vlaneseq
        %v2688 = vshrl.u32 %v2687, 7
        %v2689 = vsub.s32 2, %v2688
        %v2690 = vrot.slane %v2644, %v2689
        %v2691 = vlaneseq
        %v2692 = vshrl.u32 %v2691, 7
        %v2693 = vsub.s32 3, %v2692
        %v2694 = vrot.slane %v2644, %v2693
        %v2695 = vlaneseq
        %v2696 = vshrl.u32 %v2695, 7
        %v2697 = vsub.s32 4, %v2696
        %v2698 = vrot.slane %v2644, %v2697
        %v2699 = vlaneseq
        %v2700 = vshrl.u32 %v2699, 7
        %v2701 = vsub.s32 5, %v2700
        %v2702 = vrot.slane %v2644, %v2701
        %v2703 = vlaneseq
        %v2704 = vshrl.u32 %v2703, 7
        %v2705 = vsub.s32 6, %v2704
        %v2706 = vrot.slane %v2644, %v2705
        %v2707 = vlaneseq
        %v2708 = vshrl.u32 %v2707, 7
        %v2709 = vsub.s32 7, %v2708
        %v2710 = vrot.slane %v2644, %v2709
        %v2727 = vmul.f32 %v1240, %v2650
        %v2728 = vmul.f32 %v1239, %v2654
        %v2729 = vmul.f32 %v1238, %v2658
        %v2730 = vmul.f32 %v1237, %v2662
        %v2731 = vmul.f32 %v1236, %v2666
        %v2732 = vmul.f32 %v1235, %v2670
        %v2733 = vmul.f32 %v1234, %v2674
        %v2734 = vmul.f32 %v1233, %v2678
        %v2735 = vmul.f32 %v1232, %v2682
        %v2736 = vmul.f32 %v1231, %v2686
        %v2737 = vmul.f32 %v1230, %v2690
        %v2738 = vmul.f32 %v1229, %v2694
        %v2739 = vmul.f32 %v1228, %v2698
        %v2740 = vmul.f32 %v1227, %v2702
        %v2741 = vmul.f32 %v1226, %v2706
        %v2742 = vmul.f32 %v1241, %v2710
        %2743 = vst [vmem:[#allocation2 + $0x380] sm:$0xf] %v2727
        %2744 = vst [vmem:[#allocation2 + $0x388] sm:$0xf] %v2728
        %2745 = vst [vmem:[#allocation2 + $0x390] sm:$0xf] %v2729
        %2746 = vst [vmem:[#allocation2 + $0x398] sm:$0xf] %v2730
        %2747 = vst [vmem:[#allocation2 + $0x3a0] sm:$0xf] %v2731
        %2748 = vst [vmem:[#allocation2 + $0x3a8] sm:$0xf] %v2732
        %2749 = vst [vmem:[#allocation2 + $0x3b0] sm:$0xf] %v2733
        %2750 = vst [vmem:[#allocation2 + $0x3b8] sm:$0xf] %v2734
        %2751 = vst [vmem:[#allocation2 + $0x3c0] sm:$0xf] %v2735
        %2752 = vst [vmem:[#allocation2 + $0x3c8] sm:$0xf] %v2736
        %2753 = vst [vmem:[#allocation2 + $0x3d0] sm:$0xf] %v2737
        %2754 = vst [vmem:[#allocation2 + $0x3d8] sm:$0xf] %v2738
        %2755 = vst [vmem:[#allocation2 + $0x3e0] sm:$0xf] %v2739
        %2756 = vst [vmem:[#allocation2 + $0x3e8] sm:$0xf] %v2740
        %2757 = vst [vmem:[#allocation2 + $0x3f0] sm:$0xf] %v2741
        %2758 = vst [vmem:[#allocation2 + $0x3f8] sm:$0xf] %v2742
        %v2759 = vld [vmem:[%s1473] ss:$8 sm:$0xf]
        %v2760 = vld [vmem:[%s1473] ss:$8 sm:$0xf0]
        %v2761 = vor.u32 %v2759, %v2760
        %v2762 = vld [vmem:[%s1477] ss:$8 sm:$0xf]
        %v2763 = vld [vmem:[%s1477] ss:$8 sm:$0xf0]
        %v2764 = vor.u32 %v2762, %v2763
        %v2765 = vld [vmem:[%s312] ss:$8 sm:$0xf]
        %v2766 = vld [vmem:[%s312] ss:$8 sm:$0xf0]
        %v2767 = vor.u32 %v2765, %v2766
        %v2768 = vld [vmem:[%s316] ss:$8 sm:$0xf]
        %v2769 = vld [vmem:[%s316] ss:$8 sm:$0xf0]
        %v2770 = vor.u32 %v2768, %v2769
        %v2771 = vmul.f32 %v2761, %v2767
        %v2772 = vmul.f32 %v2764, %v2770
        %v2775 = vlaneseq
        %v2776 = vshrl.u32 %v2775, 7
        %v2777 = vsub.s32 0, %v2776
        %v2778 = vrot.slane %v2771, %v2777
        %v2779 = vlaneseq
        %v2780 = vshrl.u32 %v2779, 7
        %v2781 = vsub.s32 1, %v2780
        %v2782 = vrot.slane %v2771, %v2781
        %v2783 = vlaneseq
        %v2784 = vshrl.u32 %v2783, 7
        %v2785 = vsub.s32 2, %v2784
        %v2786 = vrot.slane %v2771, %v2785
        %v2787 = vlaneseq
        %v2788 = vshrl.u32 %v2787, 7
        %v2789 = vsub.s32 3, %v2788
        %v2790 = vrot.slane %v2771, %v2789
        %v2791 = vlaneseq
        %v2792 = vshrl.u32 %v2791, 7
        %v2793 = vsub.s32 4, %v2792
        %v2794 = vrot.slane %v2771, %v2793
        %v2795 = vlaneseq
        %v2796 = vshrl.u32 %v2795, 7
        %v2797 = vsub.s32 5, %v2796
        %v2798 = vrot.slane %v2771, %v2797
        %v2799 = vlaneseq
        %v2800 = vshrl.u32 %v2799, 7
        %v2801 = vsub.s32 6, %v2800
        %v2802 = vrot.slane %v2771, %v2801
        %v2803 = vlaneseq
        %v2804 = vshrl.u32 %v2803, 7
        %v2805 = vsub.s32 7, %v2804
        %v2806 = vrot.slane %v2771, %v2805
        %v2807 = vlaneseq
        %v2808 = vshrl.u32 %v2807, 7
        %v2809 = vsub.s32 0, %v2808
        %v2810 = vrot.slane %v2772, %v2809
        %v2811 = vlaneseq
        %v2812 = vshrl.u32 %v2811, 7
        %v2813 = vsub.s32 1, %v2812
        %v2814 = vrot.slane %v2772, %v2813
        %v2815 = vlaneseq
        %v2816 = vshrl.u32 %v2815, 7
        %v2817 = vsub.s32 2, %v2816
        %v2818 = vrot.slane %v2772, %v2817
        %v2819 = vlaneseq
        %v2820 = vshrl.u32 %v2819, 7
        %v2821 = vsub.s32 3, %v2820
        %v2822 = vrot.slane %v2772, %v2821
        %v2823 = vlaneseq
        %v2824 = vshrl.u32 %v2823, 7
        %v2825 = vsub.s32 4, %v2824
        %v2826 = vrot.slane %v2772, %v2825
        %v2827 = vlaneseq
        %v2828 = vshrl.u32 %v2827, 7
        %v2829 = vsub.s32 5, %v2828
        %v2830 = vrot.slane %v2772, %v2829
        %v2831 = vlaneseq
        %v2832 = vshrl.u32 %v2831, 7
        %v2833 = vsub.s32 6, %v2832
        %v2834 = vrot.slane %v2772, %v2833
        %v2835 = vlaneseq
        %v2836 = vshrl.u32 %v2835, 7
        %v2837 = vsub.s32 7, %v2836
        %v2838 = vrot.slane %v2772, %v2837
        %v2855 = vmul.f32 %v1465, %v2778
        %v2856 = vmul.f32 %v1464, %v2782
        %v2857 = vmul.f32 %v1463, %v2786
        %v2858 = vmul.f32 %v1462, %v2790
        %v2859 = vmul.f32 %v1461, %v2794
        %v2860 = vmul.f32 %v1460, %v2798
        %v2861 = vmul.f32 %v1459, %v2802
        %v2862 = vmul.f32 %v1458, %v2806
        %v2863 = vmul.f32 %v1457, %v2810
        %v2864 = vmul.f32 %v1456, %v2814
        %v2865 = vmul.f32 %v1455, %v2818
        %v2866 = vmul.f32 %v1454, %v2822
        %v2867 = vmul.f32 %v1453, %v2826
        %v2868 = vmul.f32 %v1452, %v2830
        %v2869 = vmul.f32 %v1451, %v2834
        %v2870 = vmul.f32 %v1466, %v2838
        %v2887 = vrot.slane %v2855, 4
        %v2888 = vrot.slane %v2856, 4
        %v2889 = vrot.slane %v2857, 4
        %v2890 = vrot.slane %v2858, 4
        %v2891 = vrot.slane %v2859, 4
        %v2892 = vrot.slane %v2860, 4
        %v2893 = vrot.slane %v2861, 4
        %v2894 = vrot.slane %v2862, 4
        %v2895 = vrot.slane %v2863, 4
        %v2896 = vrot.slane %v2864, 4
        %v2897 = vrot.slane %v2865, 4
        %v2898 = vrot.slane %v2866, 4
        %v2899 = vrot.slane %v2867, 4
        %v2900 = vrot.slane %v2868, 4
        %v2901 = vrot.slane %v2869, 4
        %v2902 = vrot.slane %v2870, 4
        %2919 = vst [vmem:[#allocation2 + $0x380] sm:$0xf0] %v2887
        %2920 = vst [vmem:[#allocation2 + $0x388] sm:$0xf0] %v2888
        %2921 = vst [vmem:[#allocation2 + $0x390] sm:$0xf0] %v2889
        %2922 = vst [vmem:[#allocation2 + $0x398] sm:$0xf0] %v2890
        %2923 = vst [vmem:[#allocation2 + $0x3a0] sm:$0xf0] %v2891
        %2924 = vst [vmem:[#allocation2 + $0x3a8] sm:$0xf0] %v2892
        %2925 = vst [vmem:[#allocation2 + $0x3b0] sm:$0xf0] %v2893
        %2926 = vst [vmem:[#allocation2 + $0x3b8] sm:$0xf0] %v2894
        %2927 = vst [vmem:[#allocation2 + $0x3c0] sm:$0xf0] %v2895
        %2928 = vst [vmem:[#allocation2 + $0x3c8] sm:$0xf0] %v2896
        %2929 = vst [vmem:[#allocation2 + $0x3d0] sm:$0xf0] %v2897
        %2930 = vst [vmem:[#allocation2 + $0x3d8] sm:$0xf0] %v2898
        %2931 = vst [vmem:[#allocation2 + $0x3e0] sm:$0xf0] %v2899
        %2932 = vst [vmem:[#allocation2 + $0x3e8] sm:$0xf0] %v2900
        %2933 = vst [vmem:[#allocation2 + $0x3f0] sm:$0xf0] %v2901
        %2934 = vst [vmem:[#allocation2 + $0x3f8] sm:$0xf0] %v2902
        %v2935 = vld [vmem:[%s1473] ss:$8 sm:$0xf]
        %v2936 = vld [vmem:[%s1473] ss:$8 sm:$0xf0]
        %v2937 = vor.u32 %v2935, %v2936
        %v2938 = vld [vmem:[%s1477] ss:$8 sm:$0xf]
        %v2939 = vld [vmem:[%s1477] ss:$8 sm:$0xf0]
        %v2940 = vor.u32 %v2938, %v2939
        %v2943 = vlaneseq
        %v2944 = vshrl.u32 %v2943, 7
        %v2945 = vsub.s32 0, %v2944
        %v2946 = vrot.slane %v2937, %v2945
        %v2947 = vlaneseq
        %v2948 = vshrl.u32 %v2947, 7
        %v2949 = vsub.s32 1, %v2948
        %v2950 = vrot.slane %v2937, %v2949
        %v2951 = vlaneseq
        %v2952 = vshrl.u32 %v2951, 7
        %v2953 = vsub.s32 2, %v2952
        %v2954 = vrot.slane %v2937, %v2953
        %v2955 = vlaneseq
        %v2956 = vshrl.u32 %v2955, 7
        %v2957 = vsub.s32 3, %v2956
        %v2958 = vrot.slane %v2937, %v2957
        %v2959 = vlaneseq
        %v2960 = vshrl.u32 %v2959, 7
        %v2961 = vsub.s32 4, %v2960
        %v2962 = vrot.slane %v2937, %v2961
        %v2963 = vlaneseq
        %v2964 = vshrl.u32 %v2963, 7
        %v2965 = vsub.s32 5, %v2964
        %v2966 = vrot.slane %v2937, %v2965
        %v2967 = vlaneseq
        %v2968 = vshrl.u32 %v2967, 7
        %v2969 = vsub.s32 6, %v2968
        %v2970 = vrot.slane %v2937, %v2969
        %v2971 = vlaneseq
        %v2972 = vshrl.u32 %v2971, 7
        %v2973 = vsub.s32 7, %v2972
        %v2974 = vrot.slane %v2937, %v2973
        %v2975 = vlaneseq
        %v2976 = vshrl.u32 %v2975, 7
        %v2977 = vsub.s32 0, %v2976
        %v2978 = vrot.slane %v2940, %v2977
        %v2979 = vlaneseq
        %v2980 = vshrl.u32 %v2979, 7
        %v2981 = vsub.s32 1, %v2980
        %v2982 = vrot.slane %v2940, %v2981
        %v2983 = vlaneseq
        %v2984 = vshrl.u32 %v2983, 7
        %v2985 = vsub.s32 2, %v2984
        %v2986 = vrot.slane %v2940, %v2985
        %v2987 = vlaneseq
        %v2988 = vshrl.u32 %v2987, 7
        %v2989 = vsub.s32 3, %v2988
        %v2990 = vrot.slane %v2940, %v2989
        %v2991 = vlaneseq
        %v2992 = vshrl.u32 %v2991, 7
        %v2993 = vsub.s32 4, %v2992
        %v2994 = vrot.slane %v2940, %v2993
        %v2995 = vlaneseq
        %v2996 = vshrl.u32 %v2995, 7
        %v2997 = vsub.s32 5, %v2996
        %v2998 = vrot.slane %v2940, %v2997
        %v2999 = vlaneseq
        %v3000 = vshrl.u32 %v2999, 7
        %v3001 = vsub.s32 6, %v3000
        %v3002 = vrot.slane %v2940, %v3001
        %v3003 = vlaneseq
        %v3004 = vshrl.u32 %v3003, 7
        %v3005 = vsub.s32 7, %v3004
        %v3006 = vrot.slane %v2940, %v3005
        %v3023 = vmul.f32 %v1652, %v2946
        %v3024 = vmul.f32 %v1651, %v2950
        %v3025 = vmul.f32 %v1650, %v2954
        %v3026 = vmul.f32 %v1649, %v2958
        %v3027 = vmul.f32 %v1648, %v2962
        %v3028 = vmul.f32 %v1647, %v2966
        %v3029 = vmul.f32 %v1646, %v2970
        %v3030 = vmul.f32 %v1645, %v2974
        %v3031 = vmul.f32 %v1644, %v2978
        %v3032 = vmul.f32 %v1643, %v2982
        %v3033 = vmul.f32 %v1642, %v2986
        %v3034 = vmul.f32 %v1641, %v2990
        %v3035 = vmul.f32 %v1640, %v2994
        %v3036 = vmul.f32 %v1639, %v2998
        %v3037 = vmul.f32 %v1638, %v3002
        %v3038 = vmul.f32 %v1653, %v3006
        %3039 = vst [vmem:[#allocation2 + $0x400] sm:$0xf] %v3023
        %3040 = vst [vmem:[#allocation2 + $0x408] sm:$0xf] %v3024
        %3041 = vst [vmem:[#allocation2 + $0x410] sm:$0xf] %v3025
        %3042 = vst [vmem:[#allocation2 + $0x418] sm:$0xf] %v3026
        %3043 = vst [vmem:[#allocation2 + $0x420] sm:$0xf] %v3027
        %3044 = vst [vmem:[#allocation2 + $0x428] sm:$0xf] %v3028
        %3045 = vst [vmem:[#allocation2 + $0x430] sm:$0xf] %v3029
        %3046 = vst [vmem:[#allocation2 + $0x438] sm:$0xf] %v3030
        %3047 = vst [vmem:[#allocation2 + $0x440] sm:$0xf] %v3031
        %3048 = vst [vmem:[#allocation2 + $0x448] sm:$0xf] %v3032
        %3049 = vst [vmem:[#allocation2 + $0x450] sm:$0xf] %v3033
        %3050 = vst [vmem:[#allocation2 + $0x458] sm:$0xf] %v3034
        %3051 = vst [vmem:[#allocation2 + $0x460] sm:$0xf] %v3035
        %3052 = vst [vmem:[#allocation2 + $0x468] sm:$0xf] %v3036
        %3053 = vst [vmem:[#allocation2 + $0x470] sm:$0xf] %v3037
        %3054 = vst [vmem:[#allocation2 + $0x478] sm:$0xf] %v3038
        %v3055 = vld [vmem:[%s1473] ss:$8 sm:$0xf]
        %v3056 = vld [vmem:[%s1473] ss:$8 sm:$0xf0]
        %v3057 = vor.u32 %v3055, %v3056
        %v3058 = vld [vmem:[%s1477] ss:$8 sm:$0xf]
        %v3059 = vld [vmem:[%s1477] ss:$8 sm:$0xf0]
        %v3060 = vor.u32 %v3058, %v3059
        %v3061 = vld [vmem:[%s724] ss:$8 sm:$0xf]
        %v3062 = vld [vmem:[%s724] ss:$8 sm:$0xf0]
        %v3063 = vor.u32 %v3061, %v3062
        %v3064 = vld [vmem:[%s728] ss:$8 sm:$0xf]
        %v3065 = vld [vmem:[%s728] ss:$8 sm:$0xf0]
        %v3066 = vor.u32 %v3064, %v3065
        %v3067 = vmul.f32 %v3057, %v3063
        %v3068 = vmul.f32 %v3060, %v3066
        %v3071 = vlaneseq
        %v3072 = vshrl.u32 %v3071, 7
        %v3073 = vsub.s32 0, %v3072
        %v3074 = vrot.slane %v3067, %v3073
        %v3075 = vlaneseq
        %v3076 = vshrl.u32 %v3075, 7
        %v3077 = vsub.s32 1, %v3076
        %v3078 = vrot.slane %v3067, %v3077
        %v3079 = vlaneseq
        %v3080 = vshrl.u32 %v3079, 7
        %v3081 = vsub.s32 2, %v3080
        %v3082 = vrot.slane %v3067, %v3081
        %v3083 = vlaneseq
        %v3084 = vshrl.u32 %v3083, 7
        %v3085 = vsub.s32 3, %v3084
        %v3086 = vrot.slane %v3067, %v3085
        %v3087 = vlaneseq
        %v3088 = vshrl.u32 %v3087, 7
        %v3089 = vsub.s32 4, %v3088
        %v3090 = vrot.slane %v3067, %v3089
        %v3091 = vlaneseq
        %v3092 = vshrl.u32 %v3091, 7
        %v3093 = vsub.s32 5, %v3092
        %v3094 = vrot.slane %v3067, %v3093
        %v3095 = vlaneseq
        %v3096 = vshrl.u32 %v3095, 7
        %v3097 = vsub.s32 6, %v3096
        %v3098 = vrot.slane %v3067, %v3097
        %v3099 = vlaneseq
        %v3100 = vshrl.u32 %v3099, 7
        %v3101 = vsub.s32 7, %v3100
        %v3102 = vrot.slane %v3067, %v3101
        %v3103 = vlaneseq
        %v3104 = vshrl.u32 %v3103, 7
        %v3105 = vsub.s32 0, %v3104
        %v3106 = vrot.slane %v3068, %v3105
        %v3107 = vlaneseq
        %v3108 = vshrl.u32 %v3107, 7
        %v3109 = vsub.s32 1, %v3108
        %v3110 = vrot.slane %v3068, %v3109
        %v3111 = vlaneseq
        %v3112 = vshrl.u32 %v3111, 7
        %v3113 = vsub.s32 2, %v3112
        %v3114 = vrot.slane %v3068, %v3113
        %v3115 = vlaneseq
        %v3116 = vshrl.u32 %v3115, 7
        %v3117 = vsub.s32 3, %v3116
        %v3118 = vrot.slane %v3068, %v3117
        %v3119 = vlaneseq
        %v3120 = vshrl.u32 %v3119, 7
        %v3121 = vsub.s32 4, %v3120
        %v3122 = vrot.slane %v3068, %v3121
        %v3123 = vlaneseq
        %v3124 = vshrl.u32 %v3123, 7
        %v3125 = vsub.s32 5, %v3124
        %v3126 = vrot.slane %v3068, %v3125
        %v3127 = vlaneseq
        %v3128 = vshrl.u32 %v3127, 7
        %v3129 = vsub.s32 6, %v3128
        %v3130 = vrot.slane %v3068, %v3129
        %v3131 = vlaneseq
        %v3132 = vshrl.u32 %v3131, 7
        %v3133 = vsub.s32 7, %v3132
        %v3134 = vrot.slane %v3068, %v3133
        %v3151 = vmul.f32 %v1877, %v3074
        %v3152 = vmul.f32 %v1876, %v3078
        %v3153 = vmul.f32 %v1875, %v3082
        %v3154 = vmul.f32 %v1874, %v3086
        %v3155 = vmul.f32 %v1873, %v3090
        %v3156 = vmul.f32 %v1872, %v3094
        %v3157 = vmul.f32 %v1871, %v3098
        %v3158 = vmul.f32 %v1870, %v3102
        %v3159 = vmul.f32 %v1869, %v3106
        %v3160 = vmul.f32 %v1868, %v3110
        %v3161 = vmul.f32 %v1867, %v3114
        %v3162 = vmul.f32 %v1866, %v3118
        %v3163 = vmul.f32 %v1865, %v3122
        %v3164 = vmul.f32 %v1864, %v3126
        %v3165 = vmul.f32 %v1863, %v3130
        %v3166 = vmul.f32 %v1878, %v3134
        %v3183 = vrot.slane %v3151, 4
        %v3184 = vrot.slane %v3152, 4
        %v3185 = vrot.slane %v3153, 4
        %v3186 = vrot.slane %v3154, 4
        %v3187 = vrot.slane %v3155, 4
        %v3188 = vrot.slane %v3156, 4
        %v3189 = vrot.slane %v3157, 4
        %v3190 = vrot.slane %v3158, 4
        %v3191 = vrot.slane %v3159, 4
        %v3192 = vrot.slane %v3160, 4
        %v3193 = vrot.slane %v3161, 4
        %v3194 = vrot.slane %v3162, 4
        %v3195 = vrot.slane %v3163, 4
        %v3196 = vrot.slane %v3164, 4
        %v3197 = vrot.slane %v3165, 4
        %v3198 = vrot.slane %v3166, 4
        %3215 = vst [vmem:[#allocation2 + $0x400] sm:$0xf0] %v3183
        %3216 = vst [vmem:[#allocation2 + $0x408] sm:$0xf0] %v3184
        %3217 = vst [vmem:[#allocation2 + $0x410] sm:$0xf0] %v3185
        %3218 = vst [vmem:[#allocation2 + $0x418] sm:$0xf0] %v3186
        %3219 = vst [vmem:[#allocation2 + $0x420] sm:$0xf0] %v3187
        %3220 = vst [vmem:[#allocation2 + $0x428] sm:$0xf0] %v3188
        %3221 = vst [vmem:[#allocation2 + $0x430] sm:$0xf0] %v3189
        %3222 = vst [vmem:[#allocation2 + $0x438] sm:$0xf0] %v3190
        %3223 = vst [vmem:[#allocation2 + $0x440] sm:$0xf0] %v3191
        %3224 = vst [vmem:[#allocation2 + $0x448] sm:$0xf0] %v3192
        %3225 = vst [vmem:[#allocation2 + $0x450] sm:$0xf0] %v3193
        %3226 = vst [vmem:[#allocation2 + $0x458] sm:$0xf0] %v3194
        %3227 = vst [vmem:[#allocation2 + $0x460] sm:$0xf0] %v3195
        %3228 = vst [vmem:[#allocation2 + $0x468] sm:$0xf0] %v3196
        %3229 = vst [vmem:[#allocation2 + $0x470] sm:$0xf0] %v3197
        %3230 = vst [vmem:[#allocation2 + $0x478] sm:$0xf0] %v3198
        %s3231 = scalar_lea.vmem [#allocation8], 1
        %v3232 = vld [vmem:[%s3231] ss:$8 sm:$0xf]
        %v3233 = vld [vmem:[%s3231] ss:$8 sm:$0xf0]
        %v3234 = vor.u32 %v3232, %v3233
        %s3235 = scalar_lea.vmem [#allocation8], 65
        %v3236 = vld [vmem:[%s3235] ss:$8 sm:$0xf]
        %v3237 = vld [vmem:[%s3235] ss:$8 sm:$0xf0]
        %v3238 = vor.u32 %v3236, %v3237
        %v3239 = vld [vmem:[%s302] ss:$8 sm:$0xf]
        %v3240 = vld [vmem:[%s302] ss:$8 sm:$0xf0]
        %v3241 = vor.u32 %v3239, %v3240
        %v3242 = vld [vmem:[%s306] ss:$8 sm:$0xf]
        %v3243 = vld [vmem:[%s306] ss:$8 sm:$0xf0]
        %v3244 = vor.u32 %v3242, %v3243
        %v3245 = vmul.f32 %v3234, %v3241
        %v3246 = vmul.f32 %v3238, %v3244
        %v3247 = vld [vmem:[%s312] ss:$8 sm:$0xf]
        %v3248 = vld [vmem:[%s312] ss:$8 sm:$0xf0]
        %v3249 = vor.u32 %v3247, %v3248
        %v3250 = vld [vmem:[%s316] ss:$8 sm:$0xf]
        %v3251 = vld [vmem:[%s316] ss:$8 sm:$0xf0]
        %v3252 = vor.u32 %v3250, %v3251
        %v3253 = vmul.f32 %v3245, %v3249
        %v3254 = vmul.f32 %v3246, %v3252
        %v3257 = vlaneseq
        %v3258 = vshrl.u32 %v3257, 7
        %v3259 = vsub.s32 0, %v3258
        %v3260 = vrot.slane %v3253, %v3259
        %v3261 = vlaneseq
        %v3262 = vshrl.u32 %v3261, 7
        %v3263 = vsub.s32 1, %v3262
        %v3264 = vrot.slane %v3253, %v3263
        %v3265 = vlaneseq
        %v3266 = vshrl.u32 %v3265, 7
        %v3267 = vsub.s32 2, %v3266
        %v3268 = vrot.slane %v3253, %v3267
        %v3269 = vlaneseq
        %v3270 = vshrl.u32 %v3269, 7
        %v3271 = vsub.s32 3, %v3270
        %v3272 = vrot.slane %v3253, %v3271
        %v3273 = vlaneseq
        %v3274 = vshrl.u32 %v3273, 7
        %v3275 = vsub.s32 4, %v3274
        %v3276 = vrot.slane %v3253, %v3275
        %v3277 = vlaneseq
        %v3278 = vshrl.u32 %v3277, 7
        %v3279 = vsub.s32 5, %v3278
        %v3280 = vrot.slane %v3253, %v3279
        %v3281 = vlaneseq
        %v3282 = vshrl.u32 %v3281, 7
        %v3283 = vsub.s32 6, %v3282
        %v3284 = vrot.slane %v3253, %v3283
        %v3285 = vlaneseq
        %v3286 = vshrl.u32 %v3285, 7
        %v3287 = vsub.s32 7, %v3286
        %v3288 = vrot.slane %v3253, %v3287
        %v3289 = vlaneseq
        %v3290 = vshrl.u32 %v3289, 7
        %v3291 = vsub.s32 0, %v3290
        %v3292 = vrot.slane %v3254, %v3291
        %v3293 = vlaneseq
        %v3294 = vshrl.u32 %v3293, 7
        %v3295 = vsub.s32 1, %v3294
        %v3296 = vrot.slane %v3254, %v3295
        %v3297 = vlaneseq
        %v3298 = vshrl.u32 %v3297, 7
        %v3299 = vsub.s32 2, %v3298
        %v3300 = vrot.slane %v3254, %v3299
        %v3301 = vlaneseq
        %v3302 = vshrl.u32 %v3301, 7
        %v3303 = vsub.s32 3, %v3302
        %v3304 = vrot.slane %v3254, %v3303
        %v3305 = vlaneseq
        %v3306 = vshrl.u32 %v3305, 7
        %v3307 = vsub.s32 4, %v3306
        %v3308 = vrot.slane %v3254, %v3307
        %v3309 = vlaneseq
        %v3310 = vshrl.u32 %v3309, 7
        %v3311 = vsub.s32 5, %v3310
        %v3312 = vrot.slane %v3254, %v3311
        %v3313 = vlaneseq
        %v3314 = vshrl.u32 %v3313, 7
        %v3315 = vsub.s32 6, %v3314
        %v3316 = vrot.slane %v3254, %v3315
        %v3317 = vlaneseq
        %v3318 = vshrl.u32 %v3317, 7
        %v3319 = vsub.s32 7, %v3318
        %v3320 = vrot.slane %v3254, %v3319
        %v3337 = vmul.f32 %v292, %v3260
        %v3338 = vmul.f32 %v291, %v3264
        %v3339 = vmul.f32 %v290, %v3268
        %v3340 = vmul.f32 %v289, %v3272
        %v3341 = vmul.f32 %v288, %v3276
        %v3342 = vmul.f32 %v287, %v3280
        %v3343 = vmul.f32 %v286, %v3284
        %v3344 = vmul.f32 %v285, %v3288
        %v3345 = vmul.f32 %v284, %v3292
        %v3346 = vmul.f32 %v283, %v3296
        %v3347 = vmul.f32 %v282, %v3300
        %v3348 = vmul.f32 %v281, %v3304
        %v3349 = vmul.f32 %v280, %v3308
        %v3350 = vmul.f32 %v279, %v3312
        %v3351 = vmul.f32 %v294, %v3316
        %v3352 = vmul.f32 %v293, %v3320
        %3353 = vst [vmem:[#allocation2 + $0x480] sm:$0xf] %v3337
        %3354 = vst [vmem:[#allocation2 + $0x488] sm:$0xf] %v3338
        %3355 = vst [vmem:[#allocation2 + $0x490] sm:$0xf] %v3339
        %3356 = vst [vmem:[#allocation2 + $0x498] sm:$0xf] %v3340
        %3357 = vst [vmem:[#allocation2 + $0x4a0] sm:$0xf] %v3341
        %3358 = vst [vmem:[#allocation2 + $0x4a8] sm:$0xf] %v3342
        %3359 = vst [vmem:[#allocation2 + $0x4b0] sm:$0xf] %v3343
        %3360 = vst [vmem:[#allocation2 + $0x4b8] sm:$0xf] %v3344
        %3361 = vst [vmem:[#allocation2 + $0x4c0] sm:$0xf] %v3345
        %3362 = vst [vmem:[#allocation2 + $0x4c8] sm:$0xf] %v3346
        %3363 = vst [vmem:[#allocation2 + $0x4d0] sm:$0xf] %v3347
        %3364 = vst [vmem:[#allocation2 + $0x4d8] sm:$0xf] %v3348
        %3365 = vst [vmem:[#allocation2 + $0x4e0] sm:$0xf] %v3349
        %3366 = vst [vmem:[#allocation2 + $0x4e8] sm:$0xf] %v3350
        %3367 = vst [vmem:[#allocation2 + $0x4f0] sm:$0xf] %v3351
        %3368 = vst [vmem:[#allocation2 + $0x4f8] sm:$0xf] %v3352
        %v3369 = vld [vmem:[%s3231] ss:$8 sm:$0xf]
        %v3370 = vld [vmem:[%s3231] ss:$8 sm:$0xf0]
        %v3371 = vor.u32 %v3369, %v3370
        %v3372 = vld [vmem:[%s3235] ss:$8 sm:$0xf]
        %v3373 = vld [vmem:[%s3235] ss:$8 sm:$0xf0]
        %v3374 = vor.u32 %v3372, %v3373
        %v3375 = vld [vmem:[%s302] ss:$8 sm:$0xf]
        %v3376 = vld [vmem:[%s302] ss:$8 sm:$0xf0]
        %v3377 = vor.u32 %v3375, %v3376
        %v3378 = vld [vmem:[%s306] ss:$8 sm:$0xf]
        %v3379 = vld [vmem:[%s306] ss:$8 sm:$0xf0]
        %v3380 = vor.u32 %v3378, %v3379
        %v3381 = vmul.f32 %v3371, %v3377
        %v3382 = vmul.f32 %v3374, %v3380
        %v3385 = vlaneseq
        %v3386 = vshrl.u32 %v3385, 7
        %v3387 = vsub.s32 0, %v3386
        %v3388 = vrot.slane %v3381, %v3387
        %v3389 = vlaneseq
        %v3390 = vshrl.u32 %v3389, 7
        %v3391 = vsub.s32 1, %v3390
        %v3392 = vrot.slane %v3381, %v3391
        %v3393 = vlaneseq
        %v3394 = vshrl.u32 %v3393, 7
        %v3395 = vsub.s32 2, %v3394
        %v3396 = vrot.slane %v3381, %v3395
        %v3397 = vlaneseq
        %v3398 = vshrl.u32 %v3397, 7
        %v3399 = vsub.s32 3, %v3398
        %v3400 = vrot.slane %v3381, %v3399
        %v3401 = vlaneseq
        %v3402 = vshrl.u32 %v3401, 7
        %v3403 = vsub.s32 4, %v3402
        %v3404 = vrot.slane %v3381, %v3403
        %v3405 = vlaneseq
        %v3406 = vshrl.u32 %v3405, 7
        %v3407 = vsub.s32 5, %v3406
        %v3408 = vrot.slane %v3381, %v3407
        %v3409 = vlaneseq
        %v3410 = vshrl.u32 %v3409, 7
        %v3411 = vsub.s32 6, %v3410
        %v3412 = vrot.slane %v3381, %v3411
        %v3413 = vlaneseq
        %v3414 = vshrl.u32 %v3413, 7
        %v3415 = vsub.s32 7, %v3414
        %v3416 = vrot.slane %v3381, %v3415
        %v3417 = vlaneseq
        %v3418 = vshrl.u32 %v3417, 7
        %v3419 = vsub.s32 0, %v3418
        %v3420 = vrot.slane %v3382, %v3419
        %v3421 = vlaneseq
        %v3422 = vshrl.u32 %v3421, 7
        %v3423 = vsub.s32 1, %v3422
        %v3424 = vrot.slane %v3382, %v3423
        %v3425 = vlaneseq
        %v3426 = vshrl.u32 %v3425, 7
        %v3427 = vsub.s32 2, %v3426
        %v3428 = vrot.slane %v3382, %v3427
        %v3429 = vlaneseq
        %v3430 = vshrl.u32 %v3429, 7
        %v3431 = vsub.s32 3, %v3430
        %v3432 = vrot.slane %v3382, %v3431
        %v3433 = vlaneseq
        %v3434 = vshrl.u32 %v3433, 7
        %v3435 = vsub.s32 4, %v3434
        %v3436 = vrot.slane %v3382, %v3435
        %v3437 = vlaneseq
        %v3438 = vshrl.u32 %v3437, 7
        %v3439 = vsub.s32 5, %v3438
        %v3440 = vrot.slane %v3382, %v3439
        %v3441 = vlaneseq
        %v3442 = vshrl.u32 %v3441, 7
        %v3443 = vsub.s32 6, %v3442
        %v3444 = vrot.slane %v3382, %v3443
        %v3445 = vlaneseq
        %v3446 = vshrl.u32 %v3445, 7
        %v3447 = vsub.s32 7, %v3446
        %v3448 = vrot.slane %v3382, %v3447
        %v3465 = vmul.f32 %v482, %v3388
        %v3466 = vmul.f32 %v481, %v3392
        %v3467 = vmul.f32 %v480, %v3396
        %v3468 = vmul.f32 %v479, %v3400
        %v3469 = vmul.f32 %v478, %v3404
        %v3470 = vmul.f32 %v477, %v3408
        %v3471 = vmul.f32 %v476, %v3412
        %v3472 = vmul.f32 %v475, %v3416
        %v3473 = vmul.f32 %v474, %v3420
        %v3474 = vmul.f32 %v473, %v3424
        %v3475 = vmul.f32 %v472, %v3428
        %v3476 = vmul.f32 %v471, %v3432
        %v3477 = vmul.f32 %v470, %v3436
        %v3478 = vmul.f32 %v469, %v3440
        %v3479 = vmul.f32 %v484, %v3444
        %v3480 = vmul.f32 %v483, %v3448
        %v3497 = vrot.slane %v3465, 4
        %v3498 = vrot.slane %v3466, 4
        %v3499 = vrot.slane %v3467, 4
        %v3500 = vrot.slane %v3468, 4
        %v3501 = vrot.slane %v3469, 4
        %v3502 = vrot.slane %v3470, 4
        %v3503 = vrot.slane %v3471, 4
        %v3504 = vrot.slane %v3472, 4
        %v3505 = vrot.slane %v3473, 4
        %v3506 = vrot.slane %v3474, 4
        %v3507 = vrot.slane %v3475, 4
        %v3508 = vrot.slane %v3476, 4
        %v3509 = vrot.slane %v3477, 4
        %v3510 = vrot.slane %v3478, 4
        %v3511 = vrot.slane %v3479, 4
        %v3512 = vrot.slane %v3480, 4
        %3529 = vst [vmem:[#allocation2 + $0x480] sm:$0xf0] %v3497
        %3530 = vst [vmem:[#allocation2 + $0x488] sm:$0xf0] %v3498
        %3531 = vst [vmem:[#allocation2 + $0x490] sm:$0xf0] %v3499
        %3532 = vst [vmem:[#allocation2 + $0x498] sm:$0xf0] %v3500
        %3533 = vst [vmem:[#allocation2 + $0x4a0] sm:$0xf0] %v3501
        %3534 = vst [vmem:[#allocation2 + $0x4a8] sm:$0xf0] %v3502
        %3535 = vst [vmem:[#allocation2 + $0x4b0] sm:$0xf0] %v3503
        %3536 = vst [vmem:[#allocation2 + $0x4b8] sm:$0xf0] %v3504
        %3537 = vst [vmem:[#allocation2 + $0x4c0] sm:$0xf0] %v3505
        %3538 = vst [vmem:[#allocation2 + $0x4c8] sm:$0xf0] %v3506
        %3539 = vst [vmem:[#allocation2 + $0x4d0] sm:$0xf0] %v3507
        %3540 = vst [vmem:[#allocation2 + $0x4d8] sm:$0xf0] %v3508
        %3541 = vst [vmem:[#allocation2 + $0x4e0] sm:$0xf0] %v3509
        %3542 = vst [vmem:[#allocation2 + $0x4e8] sm:$0xf0] %v3510
        %3543 = vst [vmem:[#allocation2 + $0x4f0] sm:$0xf0] %v3511
        %3544 = vst [vmem:[#allocation2 + $0x4f8] sm:$0xf0] %v3512
        %v3545 = vld [vmem:[%s3231] ss:$8 sm:$0xf]
        %v3546 = vld [vmem:[%s3231] ss:$8 sm:$0xf0]
        %v3547 = vor.u32 %v3545, %v3546
        %v3548 = vld [vmem:[%s3235] ss:$8 sm:$0xf]
        %v3549 = vld [vmem:[%s3235] ss:$8 sm:$0xf0]
        %v3550 = vor.u32 %v3548, %v3549
        %v3551 = vld [vmem:[%s302] ss:$8 sm:$0xf]
        %v3552 = vld [vmem:[%s302] ss:$8 sm:$0xf0]
        %v3553 = vor.u32 %v3551, %v3552
        %v3554 = vld [vmem:[%s306] ss:$8 sm:$0xf]
        %v3555 = vld [vmem:[%s306] ss:$8 sm:$0xf0]
        %v3556 = vor.u32 %v3554, %v3555
        %v3557 = vmul.f32 %v3547, %v3553
        %v3558 = vmul.f32 %v3550, %v3556
        %v3559 = vld [vmem:[%s724] ss:$8 sm:$0xf]
        %v3560 = vld [vmem:[%s724] ss:$8 sm:$0xf0]
        %v3561 = vor.u32 %v3559, %v3560
        %v3562 = vld [vmem:[%s728] ss:$8 sm:$0xf]
        %v3563 = vld [vmem:[%s728] ss:$8 sm:$0xf0]
        %v3564 = vor.u32 %v3562, %v3563
        %v3565 = vmul.f32 %v3557, %v3561
        %v3566 = vmul.f32 %v3558, %v3564
        %v3569 = vlaneseq
        %v3570 = vshrl.u32 %v3569, 7
        %v3571 = vsub.s32 0, %v3570
        %v3572 = vrot.slane %v3565, %v3571
        %v3573 = vlaneseq
        %v3574 = vshrl.u32 %v3573, 7
        %v3575 = vsub.s32 1, %v3574
        %v3576 = vrot.slane %v3565, %v3575
        %v3577 = vlaneseq
        %v3578 = vshrl.u32 %v3577, 7
        %v3579 = vsub.s32 2, %v3578
        %v3580 = vrot.slane %v3565, %v3579
        %v3581 = vlaneseq
        %v3582 = vshrl.u32 %v3581, 7
        %v3583 = vsub.s32 3, %v3582
        %v3584 = vrot.slane %v3565, %v3583
        %v3585 = vlaneseq
        %v3586 = vshrl.u32 %v3585, 7
        %v3587 = vsub.s32 4, %v3586
        %v3588 = vrot.slane %v3565, %v3587
        %v3589 = vlaneseq
        %v3590 = vshrl.u32 %v3589, 7
        %v3591 = vsub.s32 5, %v3590
        %v3592 = vrot.slane %v3565, %v3591
        %v3593 = vlaneseq
        %v3594 = vshrl.u32 %v3593, 7
        %v3595 = vsub.s32 6, %v3594
        %v3596 = vrot.slane %v3565, %v3595
        %v3597 = vlaneseq
        %v3598 = vshrl.u32 %v3597, 7
        %v3599 = vsub.s32 7, %v3598
        %v3600 = vrot.slane %v3565, %v3599
        %v3601 = vlaneseq
        %v3602 = vshrl.u32 %v3601, 7
        %v3603 = vsub.s32 0, %v3602
        %v3604 = vrot.slane %v3566, %v3603
        %v3605 = vlaneseq
        %v3606 = vshrl.u32 %v3605, 7
        %v3607 = vsub.s32 1, %v3606
        %v3608 = vrot.slane %v3566, %v3607
        %v3609 = vlaneseq
        %v3610 = vshrl.u32 %v3609, 7
        %v3611 = vsub.s32 2, %v3610
        %v3612 = vrot.slane %v3566, %v3611
        %v3613 = vlaneseq
        %v3614 = vshrl.u32 %v3613, 7
        %v3615 = vsub.s32 3, %v3614
        %v3616 = vrot.slane %v3566, %v3615
        %v3617 = vlaneseq
        %v3618 = vshrl.u32 %v3617, 7
        %v3619 = vsub.s32 4, %v3618
        %v3620 = vrot.slane %v3566, %v3619
        %v3621 = vlaneseq
        %v3622 = vshrl.u32 %v3621, 7
        %v3623 = vsub.s32 5, %v3622
        %v3624 = vrot.slane %v3566, %v3623
        %v3625 = vlaneseq
        %v3626 = vshrl.u32 %v3625, 7
        %v3627 = vsub.s32 6, %v3626
        %v3628 = vrot.slane %v3566, %v3627
        %v3629 = vlaneseq
        %v3630 = vshrl.u32 %v3629, 7
        %v3631 = vsub.s32 7, %v3630
        %v3632 = vrot.slane %v3566, %v3631
        %v3649 = vmul.f32 %v707, %v3572
        %v3650 = vmul.f32 %v706, %v3576
        %v3651 = vmul.f32 %v705, %v3580
        %v3652 = vmul.f32 %v704, %v3584
        %v3653 = vmul.f32 %v703, %v3588
        %v3654 = vmul.f32 %v702, %v3592
        %v3655 = vmul.f32 %v701, %v3596
        %v3656 = vmul.f32 %v700, %v3600
        %v3657 = vmul.f32 %v699, %v3604
        %v3658 = vmul.f32 %v698, %v3608
        %v3659 = vmul.f32 %v697, %v3612
        %v3660 = vmul.f32 %v696, %v3616
        %v3661 = vmul.f32 %v695, %v3620
        %v3662 = vmul.f32 %v694, %v3624
        %v3663 = vmul.f32 %v709, %v3628
        %v3664 = vmul.f32 %v708, %v3632
        %3665 = vst [vmem:[#allocation2 + $0x500] sm:$0xf] %v3649
        %3666 = vst [vmem:[#allocation2 + $0x508] sm:$0xf] %v3650
        %3667 = vst [vmem:[#allocation2 + $0x510] sm:$0xf] %v3651
        %3668 = vst [vmem:[#allocation2 + $0x518] sm:$0xf] %v3652
        %3669 = vst [vmem:[#allocation2 + $0x520] sm:$0xf] %v3653
        %3670 = vst [vmem:[#allocation2 + $0x528] sm:$0xf] %v3654
        %3671 = vst [vmem:[#allocation2 + $0x530] sm:$0xf] %v3655
        %3672 = vst [vmem:[#allocation2 + $0x538] sm:$0xf] %v3656
        %3673 = vst [vmem:[#allocation2 + $0x540] sm:$0xf] %v3657
        %3674 = vst [vmem:[#allocation2 + $0x548] sm:$0xf] %v3658
        %3675 = vst [vmem:[#allocation2 + $0x550] sm:$0xf] %v3659
        %3676 = vst [vmem:[#allocation2 + $0x558] sm:$0xf] %v3660
        %3677 = vst [vmem:[#allocation2 + $0x560] sm:$0xf] %v3661
        %3678 = vst [vmem:[#allocation2 + $0x568] sm:$0xf] %v3662
        %3679 = vst [vmem:[#allocation2 + $0x570] sm:$0xf] %v3663
        %3680 = vst [vmem:[#allocation2 + $0x578] sm:$0xf] %v3664
        %v3681 = vld [vmem:[%s3231] ss:$8 sm:$0xf]
        %v3682 = vld [vmem:[%s3231] ss:$8 sm:$0xf0]
        %v3683 = vor.u32 %v3681, %v3682
        %v3684 = vld [vmem:[%s3235] ss:$8 sm:$0xf]
        %v3685 = vld [vmem:[%s3235] ss:$8 sm:$0xf0]
        %v3686 = vor.u32 %v3684, %v3685
        %v3687 = vld [vmem:[%s312] ss:$8 sm:$0xf]
        %v3688 = vld [vmem:[%s312] ss:$8 sm:$0xf0]
        %v3689 = vor.u32 %v3687, %v3688
        %v3690 = vld [vmem:[%s316] ss:$8 sm:$0xf]
        %v3691 = vld [vmem:[%s316] ss:$8 sm:$0xf0]
        %v3692 = vor.u32 %v3690, %v3691
        %v3693 = vmul.f32 %v3683, %v3689
        %v3694 = vmul.f32 %v3686, %v3692
        %v3697 = vlaneseq
        %v3698 = vshrl.u32 %v3697, 7
        %v3699 = vsub.s32 0, %v3698
        %v3700 = vrot.slane %v3693, %v3699
        %v3701 = vlaneseq
        %v3702 = vshrl.u32 %v3701, 7
        %v3703 = vsub.s32 1, %v3702
        %v3704 = vrot.slane %v3693, %v3703
        %v3705 = vlaneseq
        %v3706 = vshrl.u32 %v3705, 7
        %v3707 = vsub.s32 2, %v3706
        %v3708 = vrot.slane %v3693, %v3707
        %v3709 = vlaneseq
        %v3710 = vshrl.u32 %v3709, 7
        %v3711 = vsub.s32 3, %v3710
        %v3712 = vrot.slane %v3693, %v3711
        %v3713 = vlaneseq
        %v3714 = vshrl.u32 %v3713, 7
        %v3715 = vsub.s32 4, %v3714
        %v3716 = vrot.slane %v3693, %v3715
        %v3717 = vlaneseq
        %v3718 = vshrl.u32 %v3717, 7
        %v3719 = vsub.s32 5, %v3718
        %v3720 = vrot.slane %v3693, %v3719
        %v3721 = vlaneseq
        %v3722 = vshrl.u32 %v3721, 7
        %v3723 = vsub.s32 6, %v3722
        %v3724 = vrot.slane %v3693, %v3723
        %v3725 = vlaneseq
        %v3726 = vshrl.u32 %v3725, 7
        %v3727 = vsub.s32 7, %v3726
        %v3728 = vrot.slane %v3693, %v3727
        %v3729 = vlaneseq
        %v3730 = vshrl.u32 %v3729, 7
        %v3731 = vsub.s32 0, %v3730
        %v3732 = vrot.slane %v3694, %v3731
        %v3733 = vlaneseq
        %v3734 = vshrl.u32 %v3733, 7
        %v3735 = vsub.s32 1, %v3734
        %v3736 = vrot.slane %v3694, %v3735
        %v3737 = vlaneseq
        %v3738 = vshrl.u32 %v3737, 7
        %v3739 = vsub.s32 2, %v3738
        %v3740 = vrot.slane %v3694, %v3739
        %v3741 = vlaneseq
        %v3742 = vshrl.u32 %v3741, 7
        %v3743 = vsub.s32 3, %v3742
        %v3744 = vrot.slane %v3694, %v3743
        %v3745 = vlaneseq
        %v3746 = vshrl.u32 %v3745, 7
        %v3747 = vsub.s32 4, %v3746
        %v3748 = vrot.slane %v3694, %v3747
        %v3749 = vlaneseq
        %v3750 = vshrl.u32 %v3749, 7
        %v3751 = vsub.s32 5, %v3750
        %v3752 = vrot.slane %v3694, %v3751
        %v3753 = vlaneseq
        %v3754 = vshrl.u32 %v3753, 7
        %v3755 = vsub.s32 6, %v3754
        %v3756 = vrot.slane %v3694, %v3755
        %v3757 = vlaneseq
        %v3758 = vshrl.u32 %v3757, 7
        %v3759 = vsub.s32 7, %v3758
        %v3760 = vrot.slane %v3694, %v3759
        %v3777 = vmul.f32 %v894, %v3700
        %v3778 = vmul.f32 %v893, %v3704
        %v3779 = vmul.f32 %v892, %v3708
        %v3780 = vmul.f32 %v891, %v3712
        %v3781 = vmul.f32 %v890, %v3716
        %v3782 = vmul.f32 %v889, %v3720
        %v3783 = vmul.f32 %v888, %v3724
        %v3784 = vmul.f32 %v887, %v3728
        %v3785 = vmul.f32 %v886, %v3732
        %v3786 = vmul.f32 %v885, %v3736
        %v3787 = vmul.f32 %v884, %v3740
        %v3788 = vmul.f32 %v883, %v3744
        %v3789 = vmul.f32 %v882, %v3748
        %v3790 = vmul.f32 %v881, %v3752
        %v3791 = vmul.f32 %v896, %v3756
        %v3792 = vmul.f32 %v895, %v3760
        %v3809 = vrot.slane %v3777, 4
        %v3810 = vrot.slane %v3778, 4
        %v3811 = vrot.slane %v3779, 4
        %v3812 = vrot.slane %v3780, 4
        %v3813 = vrot.slane %v3781, 4
        %v3814 = vrot.slane %v3782, 4
        %v3815 = vrot.slane %v3783, 4
        %v3816 = vrot.slane %v3784, 4
        %v3817 = vrot.slane %v3785, 4
        %v3818 = vrot.slane %v3786, 4
        %v3819 = vrot.slane %v3787, 4
        %v3820 = vrot.slane %v3788, 4
        %v3821 = vrot.slane %v3789, 4
        %v3822 = vrot.slane %v3790, 4
        %v3823 = vrot.slane %v3791, 4
        %v3824 = vrot.slane %v3792, 4
        %3841 = vst [vmem:[#allocation2 + $0x500] sm:$0xf0] %v3809
        %3842 = vst [vmem:[#allocation2 + $0x508] sm:$0xf0] %v3810
        %3843 = vst [vmem:[#allocation2 + $0x510] sm:$0xf0] %v3811
        %3844 = vst [vmem:[#allocation2 + $0x518] sm:$0xf0] %v3812
        %3845 = vst [vmem:[#allocation2 + $0x520] sm:$0xf0] %v3813
        %3846 = vst [vmem:[#allocation2 + $0x528] sm:$0xf0] %v3814
        %3847 = vst [vmem:[#allocation2 + $0x530] sm:$0xf0] %v3815
        %3848 = vst [vmem:[#allocation2 + $0x538] sm:$0xf0] %v3816
        %3849 = vst [vmem:[#allocation2 + $0x540] sm:$0xf0] %v3817
        %3850 = vst [vmem:[#allocation2 + $0x548] sm:$0xf0] %v3818
        %3851 = vst [vmem:[#allocation2 + $0x550] sm:$0xf0] %v3819
        %3852 = vst [vmem:[#allocation2 + $0x558] sm:$0xf0] %v3820
        %3853 = vst [vmem:[#allocation2 + $0x560] sm:$0xf0] %v3821
        %3854 = vst [vmem:[#allocation2 + $0x568] sm:$0xf0] %v3822
        %3855 = vst [vmem:[#allocation2 + $0x570] sm:$0xf0] %v3823
        %3856 = vst [vmem:[#allocation2 + $0x578] sm:$0xf0] %v3824
        %v3857 = vld [vmem:[%s3231] ss:$8 sm:$0xf]
        %v3858 = vld [vmem:[%s3231] ss:$8 sm:$0xf0]
        %v3859 = vor.u32 %v3857, %v3858
        %v3860 = vld [vmem:[%s3235] ss:$8 sm:$0xf]
        %v3861 = vld [vmem:[%s3235] ss:$8 sm:$0xf0]
        %v3862 = vor.u32 %v3860, %v3861
        %v3865 = vlaneseq
        %v3866 = vshrl.u32 %v3865, 7
        %v3867 = vsub.s32 0, %v3866
        %v3868 = vrot.slane %v3859, %v3867
        %v3869 = vlaneseq
        %v3870 = vshrl.u32 %v3869, 7
        %v3871 = vsub.s32 1, %v3870
        %v3872 = vrot.slane %v3859, %v3871
        %v3873 = vlaneseq
        %v3874 = vshrl.u32 %v3873, 7
        %v3875 = vsub.s32 2, %v3874
        %v3876 = vrot.slane %v3859, %v3875
        %v3877 = vlaneseq
        %v3878 = vshrl.u32 %v3877, 7
        %v3879 = vsub.s32 3, %v3878
        %v3880 = vrot.slane %v3859, %v3879
        %v3881 = vlaneseq
        %v3882 = vshrl.u32 %v3881, 7
        %v3883 = vsub.s32 4, %v3882
        %v3884 = vrot.slane %v3859, %v3883
        %v3885 = vlaneseq
        %v3886 = vshrl.u32 %v3885, 7
        %v3887 = vsub.s32 5, %v3886
        %v3888 = vrot.slane %v3859, %v3887
        %v3889 = vlaneseq
        %v3890 = vshrl.u32 %v3889, 7
        %v3891 = vsub.s32 6, %v3890
        %v3892 = vrot.slane %v3859, %v3891
        %v3893 = vlaneseq
        %v3894 = vshrl.u32 %v3893, 7
        %v3895 = vsub.s32 7, %v3894
        %v3896 = vrot.slane %v3859, %v3895
        %v3897 = vlaneseq
        %v3898 = vshrl.u32 %v3897, 7
        %v3899 = vsub.s32 0, %v3898
        %v3900 = vrot.slane %v3862, %v3899
        %v3901 = vlaneseq
        %v3902 = vshrl.u32 %v3901, 7
        %v3903 = vsub.s32 1, %v3902
        %v3904 = vrot.slane %v3862, %v3903
        %v3905 = vlaneseq
        %v3906 = vshrl.u32 %v3905, 7
        %v3907 = vsub.s32 2, %v3906
        %v3908 = vrot.slane %v3862, %v3907
        %v3909 = vlaneseq
        %v3910 = vshrl.u32 %v3909, 7
        %v3911 = vsub.s32 3, %v3910
        %v3912 = vrot.slane %v3862, %v3911
        %v3913 = vlaneseq
        %v3914 = vshrl.u32 %v3913, 7
        %v3915 = vsub.s32 4, %v3914
        %v3916 = vrot.slane %v3862, %v3915
        %v3917 = vlaneseq
        %v3918 = vshrl.u32 %v3917, 7
        %v3919 = vsub.s32 5, %v3918
        %v3920 = vrot.slane %v3862, %v3919
        %v3921 = vlaneseq
        %v3922 = vshrl.u32 %v3921, 7
        %v3923 = vsub.s32 6, %v3922
        %v3924 = vrot.slane %v3862, %v3923
        %v3925 = vlaneseq
        %v3926 = vshrl.u32 %v3925, 7
        %v3927 = vsub.s32 7, %v3926
        %v3928 = vrot.slane %v3862, %v3927
        %v3945 = vmul.f32 %v213, %v3868
        %v3946 = vmul.f32 %v229, %v3872
        %v3947 = vmul.f32 %v214, %v3876
        %v3948 = vmul.f32 %v230, %v3880
        %v3949 = vmul.f32 %v215, %v3884
        %v3950 = vmul.f32 %v231, %v3888
        %v3951 = vmul.f32 %v216, %v3892
        %v3952 = vmul.f32 %v232, %v3896
        %v3953 = vmul.f32 %v217, %v3900
        %v3954 = vmul.f32 %v233, %v3904
        %v3955 = vmul.f32 %v218, %v3908
        %v3956 = vmul.f32 %v234, %v3912
        %v3957 = vmul.f32 %v219, %v3916
        %v3958 = vmul.f32 %v235, %v3920
        %v3959 = vmul.f32 %v212, %v3924
        %v3960 = vmul.f32 %v228, %v3928
        %3961 = vst [vmem:[#allocation2 + $0x580] sm:$0xf] %v3945
        %3962 = vst [vmem:[#allocation2 + $0x588] sm:$0xf] %v3946
        %3963 = vst [vmem:[#allocation2 + $0x590] sm:$0xf] %v3947
        %3964 = vst [vmem:[#allocation2 + $0x598] sm:$0xf] %v3948
        %3965 = vst [vmem:[#allocation2 + $0x5a0] sm:$0xf] %v3949
        %3966 = vst [vmem:[#allocation2 + $0x5a8] sm:$0xf] %v3950
        %3967 = vst [vmem:[#allocation2 + $0x5b0] sm:$0xf] %v3951
        %3968 = vst [vmem:[#allocation2 + $0x5b8] sm:$0xf] %v3952
        %3969 = vst [vmem:[#allocation2 + $0x5c0] sm:$0xf] %v3953
        %3970 = vst [vmem:[#allocation2 + $0x5c8] sm:$0xf] %v3954
        %3971 = vst [vmem:[#allocation2 + $0x5d0] sm:$0xf] %v3955
        %3972 = vst [vmem:[#allocation2 + $0x5d8] sm:$0xf] %v3956
        %3973 = vst [vmem:[#allocation2 + $0x5e0] sm:$0xf] %v3957
        %3974 = vst [vmem:[#allocation2 + $0x5e8] sm:$0xf] %v3958
        %3975 = vst [vmem:[#allocation2 + $0x5f0] sm:$0xf] %v3959
        %3976 = vst [vmem:[#allocation2 + $0x5f8] sm:$0xf] %v3960
        %v3977 = vld [vmem:[%s3231] ss:$8 sm:$0xf]
        %v3978 = vld [vmem:[%s3231] ss:$8 sm:$0xf0]
        %v3979 = vor.u32 %v3977, %v3978
        %v3980 = vld [vmem:[%s3235] ss:$8 sm:$0xf]
        %v3981 = vld [vmem:[%s3235] ss:$8 sm:$0xf0]
        %v3982 = vor.u32 %v3980, %v3981
        %v3983 = vld [vmem:[%s724] ss:$8 sm:$0xf]
        %v3984 = vld [vmem:[%s724] ss:$8 sm:$0xf0]
        %v3985 = vor.u32 %v3983, %v3984
        %v3986 = vld [vmem:[%s728] ss:$8 sm:$0xf]
        %v3987 = vld [vmem:[%s728] ss:$8 sm:$0xf0]
        %v3988 = vor.u32 %v3986, %v3987
        %v3989 = vmul.f32 %v3979, %v3985
        %v3990 = vmul.f32 %v3982, %v3988
        %v3993 = vlaneseq
        %v3994 = vshrl.u32 %v3993, 7
        %v3995 = vsub.s32 0, %v3994
        %v3996 = vrot.slane %v3989, %v3995
        %v3997 = vlaneseq
        %v3998 = vshrl.u32 %v3997, 7
        %v3999 = vsub.s32 1, %v3998
        %v4000 = vrot.slane %v3989, %v3999
        %v4001 = vlaneseq
        %v4002 = vshrl.u32 %v4001, 7
        %v4003 = vsub.s32 2, %v4002
        %v4004 = vrot.slane %v3989, %v4003
        %v4005 = vlaneseq
        %v4006 = vshrl.u32 %v4005, 7
        %v4007 = vsub.s32 3, %v4006
        %v4008 = vrot.slane %v3989, %v4007
        %v4009 = vlaneseq
        %v4010 = vshrl.u32 %v4009, 7
        %v4011 = vsub.s32 4, %v4010
        %v4012 = vrot.slane %v3989, %v4011
        %v4013 = vlaneseq
        %v4014 = vshrl.u32 %v4013, 7
        %v4015 = vsub.s32 5, %v4014
        %v4016 = vrot.slane %v3989, %v4015
        %v4017 = vlaneseq
        %v4018 = vshrl.u32 %v4017, 7
        %v4019 = vsub.s32 6, %v4018
        %v4020 = vrot.slane %v3989, %v4019
        %v4021 = vlaneseq
        %v4022 = vshrl.u32 %v4021, 7
        %v4023 = vsub.s32 7, %v4022
        %v4024 = vrot.slane %v3989, %v4023
        %v4025 = vlaneseq
        %v4026 = vshrl.u32 %v4025, 7
        %v4027 = vsub.s32 0, %v4026
        %v4028 = vrot.slane %v3990, %v4027
        %v4029 = vlaneseq
        %v4030 = vshrl.u32 %v4029, 7
        %v4031 = vsub.s32 1, %v4030
        %v4032 = vrot.slane %v3990, %v4031
        %v4033 = vlaneseq
        %v4034 = vshrl.u32 %v4033, 7
        %v4035 = vsub.s32 2, %v4034
        %v4036 = vrot.slane %v3990, %v4035
        %v4037 = vlaneseq
        %v4038 = vshrl.u32 %v4037, 7
        %v4039 = vsub.s32 3, %v4038
        %v4040 = vrot.slane %v3990, %v4039
        %v4041 = vlaneseq
        %v4042 = vshrl.u32 %v4041, 7
        %v4043 = vsub.s32 4, %v4042
        %v4044 = vrot.slane %v3990, %v4043
        %v4045 = vlaneseq
        %v4046 = vshrl.u32 %v4045, 7
        %v4047 = vsub.s32 5, %v4046
        %v4048 = vrot.slane %v3990, %v4047
        %v4049 = vlaneseq
        %v4050 = vshrl.u32 %v4049, 7
        %v4051 = vsub.s32 6, %v4050
        %v4052 = vrot.slane %v3990, %v4051
        %v4053 = vlaneseq
        %v4054 = vshrl.u32 %v4053, 7
        %v4055 = vsub.s32 7, %v4054
        %v4056 = vrot.slane %v3990, %v4055
        %v4073 = vmul.f32 %v1238, %v3996
        %v4074 = vmul.f32 %v1237, %v4000
        %v4075 = vmul.f32 %v1236, %v4004
        %v4076 = vmul.f32 %v1235, %v4008
        %v4077 = vmul.f32 %v1234, %v4012
        %v4078 = vmul.f32 %v1233, %v4016
        %v4079 = vmul.f32 %v1232, %v4020
        %v4080 = vmul.f32 %v1231, %v4024
        %v4081 = vmul.f32 %v1230, %v4028
        %v4082 = vmul.f32 %v1229, %v4032
        %v4083 = vmul.f32 %v1228, %v4036
        %v4084 = vmul.f32 %v1227, %v4040
        %v4085 = vmul.f32 %v1226, %v4044
        %v4086 = vmul.f32 %v1241, %v4048
        %v4087 = vmul.f32 %v1240, %v4052
        %v4088 = vmul.f32 %v1239, %v4056
        %v4105 = vrot.slane %v4073, 4
        %v4106 = vrot.slane %v4074, 4
        %v4107 = vrot.slane %v4075, 4
        %v4108 = vrot.slane %v4076, 4
        %v4109 = vrot.slane %v4077, 4
        %v4110 = vrot.slane %v4078, 4
        %v4111 = vrot.slane %v4079, 4
        %v4112 = vrot.slane %v4080, 4
        %v4113 = vrot.slane %v4081, 4
        %v4114 = vrot.slane %v4082, 4
        %v4115 = vrot.slane %v4083, 4
        %v4116 = vrot.slane %v4084, 4
        %v4117 = vrot.slane %v4085, 4
        %v4118 = vrot.slane %v4086, 4
        %v4119 = vrot.slane %v4087, 4
        %v4120 = vrot.slane %v4088, 4
        %4137 = vst [vmem:[#allocation2 + $0x580] sm:$0xf0] %v4105
        %4138 = vst [vmem:[#allocation2 + $0x588] sm:$0xf0] %v4106
        %4139 = vst [vmem:[#allocation2 + $0x590] sm:$0xf0] %v4107
        %4140 = vst [vmem:[#allocation2 + $0x598] sm:$0xf0] %v4108
        %4141 = vst [vmem:[#allocation2 + $0x5a0] sm:$0xf0] %v4109
        %4142 = vst [vmem:[#allocation2 + $0x5a8] sm:$0xf0] %v4110
        %4143 = vst [vmem:[#allocation2 + $0x5b0] sm:$0xf0] %v4111
        %4144 = vst [vmem:[#allocation2 + $0x5b8] sm:$0xf0] %v4112
        %4145 = vst [vmem:[#allocation2 + $0x5c0] sm:$0xf0] %v4113
        %4146 = vst [vmem:[#allocation2 + $0x5c8] sm:$0xf0] %v4114
        %4147 = vst [vmem:[#allocation2 + $0x5d0] sm:$0xf0] %v4115
        %4148 = vst [vmem:[#allocation2 + $0x5d8] sm:$0xf0] %v4116
        %4149 = vst [vmem:[#allocation2 + $0x5e0] sm:$0xf0] %v4117
        %4150 = vst [vmem:[#allocation2 + $0x5e8] sm:$0xf0] %v4118
        %4151 = vst [vmem:[#allocation2 + $0x5f0] sm:$0xf0] %v4119
        %4152 = vst [vmem:[#allocation2 + $0x5f8] sm:$0xf0] %v4120
        %v4153 = vld [vmem:[%s3231] ss:$8 sm:$0xf]
        %v4154 = vld [vmem:[%s3231] ss:$8 sm:$0xf0]
        %v4155 = vor.u32 %v4153, %v4154
        %v4156 = vld [vmem:[%s3235] ss:$8 sm:$0xf]
        %v4157 = vld [vmem:[%s3235] ss:$8 sm:$0xf0]
        %v4158 = vor.u32 %v4156, %v4157
        %v4159 = vld [vmem:[%s1473] ss:$8 sm:$0xf]
        %v4160 = vld [vmem:[%s1473] ss:$8 sm:$0xf0]
        %v4161 = vor.u32 %v4159, %v4160
        %v4162 = vld [vmem:[%s1477] ss:$8 sm:$0xf]
        %v4163 = vld [vmem:[%s1477] ss:$8 sm:$0xf0]
        %v4164 = vor.u32 %v4162, %v4163
        %v4165 = vmul.f32 %v4155, %v4161
        %v4166 = vmul.f32 %v4158, %v4164
        %v4167 = vld [vmem:[%s312] ss:$8 sm:$0xf]
        %v4168 = vld [vmem:[%s312] ss:$8 sm:$0xf0]
        %v4169 = vor.u32 %v4167, %v4168
        %v4170 = vld [vmem:[%s316] ss:$8 sm:$0xf]
        %v4171 = vld [vmem:[%s316] ss:$8 sm:$0xf0]
        %v4172 = vor.u32 %v4170, %v4171
        %v4173 = vmul.f32 %v4165, %v4169
        %v4174 = vmul.f32 %v4166, %v4172
        %v4177 = vlaneseq
        %v4178 = vshrl.u32 %v4177, 7
        %v4179 = vsub.s32 0, %v4178
        %v4180 = vrot.slane %v4173, %v4179
        %v4181 = vlaneseq
        %v4182 = vshrl.u32 %v4181, 7
        %v4183 = vsub.s32 1, %v4182
        %v4184 = vrot.slane %v4173, %v4183
        %v4185 = vlaneseq
        %v4186 = vshrl.u32 %v4185, 7
        %v4187 = vsub.s32 2, %v4186
        %v4188 = vrot.slane %v4173, %v4187
        %v4189 = vlaneseq
        %v4190 = vshrl.u32 %v4189, 7
        %v4191 = vsub.s32 3, %v4190
        %v4192 = vrot.slane %v4173, %v4191
        %v4193 = vlaneseq
        %v4194 = vshrl.u32 %v4193, 7
        %v4195 = vsub.s32 4, %v4194
        %v4196 = vrot.slane %v4173, %v4195
        %v4197 = vlaneseq
        %v4198 = vshrl.u32 %v4197, 7
        %v4199 = vsub.s32 5, %v4198
        %v4200 = vrot.slane %v4173, %v4199
        %v4201 = vlaneseq
        %v4202 = vshrl.u32 %v4201, 7
        %v4203 = vsub.s32 6, %v4202
        %v4204 = vrot.slane %v4173, %v4203
        %v4205 = vlaneseq
        %v4206 = vshrl.u32 %v4205, 7
        %v4207 = vsub.s32 7, %v4206
        %v4208 = vrot.slane %v4173, %v4207
        %v4209 = vlaneseq
        %v4210 = vshrl.u32 %v4209, 7
        %v4211 = vsub.s32 0, %v4210
        %v4212 = vrot.slane %v4174, %v4211
        %v4213 = vlaneseq
        %v4214 = vshrl.u32 %v4213, 7
        %v4215 = vsub.s32 1, %v4214
        %v4216 = vrot.slane %v4174, %v4215
        %v4217 = vlaneseq
        %v4218 = vshrl.u32 %v4217, 7
        %v4219 = vsub.s32 2, %v4218
        %v4220 = vrot.slane %v4174, %v4219
        %v4221 = vlaneseq
        %v4222 = vshrl.u32 %v4221, 7
        %v4223 = vsub.s32 3, %v4222
        %v4224 = vrot.slane %v4174, %v4223
        %v4225 = vlaneseq
        %v4226 = vshrl.u32 %v4225, 7
        %v4227 = vsub.s32 4, %v4226
        %v4228 = vrot.slane %v4174, %v4227
        %v4229 = vlaneseq
        %v4230 = vshrl.u32 %v4229, 7
        %v4231 = vsub.s32 5, %v4230
        %v4232 = vrot.slane %v4174, %v4231
        %v4233 = vlaneseq
        %v4234 = vshrl.u32 %v4233, 7
        %v4235 = vsub.s32 6, %v4234
        %v4236 = vrot.slane %v4174, %v4235
        %v4237 = vlaneseq
        %v4238 = vshrl.u32 %v4237, 7
        %v4239 = vsub.s32 7, %v4238
        %v4240 = vrot.slane %v4174, %v4239
        %v4257 = vmul.f32 %v1463, %v4180
        %v4258 = vmul.f32 %v1462, %v4184
        %v4259 = vmul.f32 %v1461, %v4188
        %v4260 = vmul.f32 %v1460, %v4192
        %v4261 = vmul.f32 %v1459, %v4196
        %v4262 = vmul.f32 %v1458, %v4200
        %v4263 = vmul.f32 %v1457, %v4204
        %v4264 = vmul.f32 %v1456, %v4208
        %v4265 = vmul.f32 %v1455, %v4212
        %v4266 = vmul.f32 %v1454, %v4216
        %v4267 = vmul.f32 %v1453, %v4220
        %v4268 = vmul.f32 %v1452, %v4224
        %v4269 = vmul.f32 %v1451, %v4228
        %v4270 = vmul.f32 %v1466, %v4232
        %v4271 = vmul.f32 %v1465, %v4236
        %v4272 = vmul.f32 %v1464, %v4240
        %4273 = vst [vmem:[#allocation2 + $0x600] sm:$0xf] %v4257
        %4274 = vst [vmem:[#allocation2 + $0x608] sm:$0xf] %v4258
        %4275 = vst [vmem:[#allocation2 + $0x610] sm:$0xf] %v4259
        %4276 = vst [vmem:[#allocation2 + $0x618] sm:$0xf] %v4260
        %4277 = vst [vmem:[#allocation2 + $0x620] sm:$0xf] %v4261
        %4278 = vst [vmem:[#allocation2 + $0x628] sm:$0xf] %v4262
        %4279 = vst [vmem:[#allocation2 + $0x630] sm:$0xf] %v4263
        %4280 = vst [vmem:[#allocation2 + $0x638] sm:$0xf] %v4264
        %4281 = vst [vmem:[#allocation2 + $0x640] sm:$0xf] %v4265
        %4282 = vst [vmem:[#allocation2 + $0x648] sm:$0xf] %v4266
        %4283 = vst [vmem:[#allocation2 + $0x650] sm:$0xf] %v4267
        %4284 = vst [vmem:[#allocation2 + $0x658] sm:$0xf] %v4268
        %4285 = vst [vmem:[#allocation2 + $0x660] sm:$0xf] %v4269
        %4286 = vst [vmem:[#allocation2 + $0x668] sm:$0xf] %v4270
        %4287 = vst [vmem:[#allocation2 + $0x670] sm:$0xf] %v4271
        %4288 = vst [vmem:[#allocation2 + $0x678] sm:$0xf] %v4272
        %v4289 = vld [vmem:[%s3231] ss:$8 sm:$0xf]
        %v4290 = vld [vmem:[%s3231] ss:$8 sm:$0xf0]
        %v4291 = vor.u32 %v4289, %v4290
        %v4292 = vld [vmem:[%s3235] ss:$8 sm:$0xf]
        %v4293 = vld [vmem:[%s3235] ss:$8 sm:$0xf0]
        %v4294 = vor.u32 %v4292, %v4293
        %v4295 = vld [vmem:[%s1473] ss:$8 sm:$0xf]
        %v4296 = vld [vmem:[%s1473] ss:$8 sm:$0xf0]
        %v4297 = vor.u32 %v4295, %v4296
        %v4298 = vld [vmem:[%s1477] ss:$8 sm:$0xf]
        %v4299 = vld [vmem:[%s1477] ss:$8 sm:$0xf0]
        %v4300 = vor.u32 %v4298, %v4299
        %v4301 = vmul.f32 %v4291, %v4297
        %v4302 = vmul.f32 %v4294, %v4300
        %v4305 = vlaneseq
        %v4306 = vshrl.u32 %v4305, 7
        %v4307 = vsub.s32 0, %v4306
        %v4308 = vrot.slane %v4301, %v4307
        %v4309 = vlaneseq
        %v4310 = vshrl.u32 %v4309, 7
        %v4311 = vsub.s32 1, %v4310
        %v4312 = vrot.slane %v4301, %v4311
        %v4313 = vlaneseq
        %v4314 = vshrl.u32 %v4313, 7
        %v4315 = vsub.s32 2, %v4314
        %v4316 = vrot.slane %v4301, %v4315
        %v4317 = vlaneseq
        %v4318 = vshrl.u32 %v4317, 7
        %v4319 = vsub.s32 3, %v4318
        %v4320 = vrot.slane %v4301, %v4319
        %v4321 = vlaneseq
        %v4322 = vshrl.u32 %v4321, 7
        %v4323 = vsub.s32 4, %v4322
        %v4324 = vrot.slane %v4301, %v4323
        %v4325 = vlaneseq
        %v4326 = vshrl.u32 %v4325, 7
        %v4327 = vsub.s32 5, %v4326
        %v4328 = vrot.slane %v4301, %v4327
        %v4329 = vlaneseq
        %v4330 = vshrl.u32 %v4329, 7
        %v4331 = vsub.s32 6, %v4330
        %v4332 = vrot.slane %v4301, %v4331
        %v4333 = vlaneseq
        %v4334 = vshrl.u32 %v4333, 7
        %v4335 = vsub.s32 7, %v4334
        %v4336 = vrot.slane %v4301, %v4335
        %v4337 = vlaneseq
        %v4338 = vshrl.u32 %v4337, 7
        %v4339 = vsub.s32 0, %v4338
        %v4340 = vrot.slane %v4302, %v4339
        %v4341 = vlaneseq
        %v4342 = vshrl.u32 %v4341, 7
        %v4343 = vsub.s32 1, %v4342
        %v4344 = vrot.slane %v4302, %v4343
        %v4345 = vlaneseq
        %v4346 = vshrl.u32 %v4345, 7
        %v4347 = vsub.s32 2, %v4346
        %v4348 = vrot.slane %v4302, %v4347
        %v4349 = vlaneseq
        %v4350 = vshrl.u32 %v4349, 7
        %v4351 = vsub.s32 3, %v4350
        %v4352 = vrot.slane %v4302, %v4351
        %v4353 = vlaneseq
        %v4354 = vshrl.u32 %v4353, 7
        %v4355 = vsub.s32 4, %v4354
        %v4356 = vrot.slane %v4302, %v4355
        %v4357 = vlaneseq
        %v4358 = vshrl.u32 %v4357, 7
        %v4359 = vsub.s32 5, %v4358
        %v4360 = vrot.slane %v4302, %v4359
        %v4361 = vlaneseq
        %v4362 = vshrl.u32 %v4361, 7
        %v4363 = vsub.s32 6, %v4362
        %v4364 = vrot.slane %v4302, %v4363
        %v4365 = vlaneseq
        %v4366 = vshrl.u32 %v4365, 7
        %v4367 = vsub.s32 7, %v4366
        %v4368 = vrot.slane %v4302, %v4367
        %v4385 = vmul.f32 %v1650, %v4308
        %v4386 = vmul.f32 %v1649, %v4312
        %v4387 = vmul.f32 %v1648, %v4316
        %v4388 = vmul.f32 %v1647, %v4320
        %v4389 = vmul.f32 %v1646, %v4324
        %v4390 = vmul.f32 %v1645, %v4328
        %v4391 = vmul.f32 %v1644, %v4332
        %v4392 = vmul.f32 %v1643, %v4336
        %v4393 = vmul.f32 %v1642, %v4340
        %v4394 = vmul.f32 %v1641, %v4344
        %v4395 = vmul.f32 %v1640, %v4348
        %v4396 = vmul.f32 %v1639, %v4352
        %v4397 = vmul.f32 %v1638, %v4356
        %v4398 = vmul.f32 %v1653, %v4360
        %v4399 = vmul.f32 %v1652, %v4364
        %v4400 = vmul.f32 %v1651, %v4368
        %v4417 = vrot.slane %v4385, 4
        %v4418 = vrot.slane %v4386, 4
        %v4419 = vrot.slane %v4387, 4
        %v4420 = vrot.slane %v4388, 4
        %v4421 = vrot.slane %v4389, 4
        %v4422 = vrot.slane %v4390, 4
        %v4423 = vrot.slane %v4391, 4
        %v4424 = vrot.slane %v4392, 4
        %v4425 = vrot.slane %v4393, 4
        %v4426 = vrot.slane %v4394, 4
        %v4427 = vrot.slane %v4395, 4
        %v4428 = vrot.slane %v4396, 4
        %v4429 = vrot.slane %v4397, 4
        %v4430 = vrot.slane %v4398, 4
        %v4431 = vrot.slane %v4399, 4
        %v4432 = vrot.slane %v4400, 4
        %4449 = vst [vmem:[#allocation2 + $0x600] sm:$0xf0] %v4417
        %4450 = vst [vmem:[#allocation2 + $0x608] sm:$0xf0] %v4418
        %4451 = vst [vmem:[#allocation2 + $0x610] sm:$0xf0] %v4419
        %4452 = vst [vmem:[#allocation2 + $0x618] sm:$0xf0] %v4420
        %4453 = vst [vmem:[#allocation2 + $0x620] sm:$0xf0] %v4421
        %4454 = vst [vmem:[#allocation2 + $0x628] sm:$0xf0] %v4422
        %4455 = vst [vmem:[#allocation2 + $0x630] sm:$0xf0] %v4423
        %4456 = vst [vmem:[#allocation2 + $0x638] sm:$0xf0] %v4424
        %4457 = vst [vmem:[#allocation2 + $0x640] sm:$0xf0] %v4425
        %4458 = vst [vmem:[#allocation2 + $0x648] sm:$0xf0] %v4426
        %4459 = vst [vmem:[#allocation2 + $0x650] sm:$0xf0] %v4427
        %4460 = vst [vmem:[#allocation2 + $0x658] sm:$0xf0] %v4428
        %4461 = vst [vmem:[#allocation2 + $0x660] sm:$0xf0] %v4429
        %4462 = vst [vmem:[#allocation2 + $0x668] sm:$0xf0] %v4430
        %4463 = vst [vmem:[#allocation2 + $0x670] sm:$0xf0] %v4431
        %4464 = vst [vmem:[#allocation2 + $0x678] sm:$0xf0] %v4432
        %v4465 = vld [vmem:[%s3231] ss:$8 sm:$0xf]
        %v4466 = vld [vmem:[%s3231] ss:$8 sm:$0xf0]
        %v4467 = vor.u32 %v4465, %v4466
        %v4468 = vld [vmem:[%s3235] ss:$8 sm:$0xf]
        %v4469 = vld [vmem:[%s3235] ss:$8 sm:$0xf0]
        %v4470 = vor.u32 %v4468, %v4469
        %v4471 = vld [vmem:[%s1473] ss:$8 sm:$0xf]
        %v4472 = vld [vmem:[%s1473] ss:$8 sm:$0xf0]
        %v4473 = vor.u32 %v4471, %v4472
        %v4474 = vld [vmem:[%s1477] ss:$8 sm:$0xf]
        %v4475 = vld [vmem:[%s1477] ss:$8 sm:$0xf0]
        %v4476 = vor.u32 %v4474, %v4475
        %v4477 = vmul.f32 %v4467, %v4473
        %v4478 = vmul.f32 %v4470, %v4476
        %v4479 = vld [vmem:[%s724] ss:$8 sm:$0xf]
        %v4480 = vld [vmem:[%s724] ss:$8 sm:$0xf0]
        %v4481 = vor.u32 %v4479, %v4480
        %v4482 = vld [vmem:[%s728] ss:$8 sm:$0xf]
        %v4483 = vld [vmem:[%s728] ss:$8 sm:$0xf0]
        %v4484 = vor.u32 %v4482, %v4483
        %v4485 = vmul.f32 %v4477, %v4481
        %v4486 = vmul.f32 %v4478, %v4484
        %v4489 = vlaneseq
        %v4490 = vshrl.u32 %v4489, 7
        %v4491 = vsub.s32 0, %v4490
        %v4492 = vrot.slane %v4485, %v4491
        %v4493 = vlaneseq
        %v4494 = vshrl.u32 %v4493, 7
        %v4495 = vsub.s32 1, %v4494
        %v4496 = vrot.slane %v4485, %v4495
        %v4497 = vlaneseq
        %v4498 = vshrl.u32 %v4497, 7
        %v4499 = vsub.s32 2, %v4498
        %v4500 = vrot.slane %v4485, %v4499
        %v4501 = vlaneseq
        %v4502 = vshrl.u32 %v4501, 7
        %v4503 = vsub.s32 3, %v4502
        %v4504 = vrot.slane %v4485, %v4503
        %v4505 = vlaneseq
        %v4506 = vshrl.u32 %v4505, 7
        %v4507 = vsub.s32 4, %v4506
        %v4508 = vrot.slane %v4485, %v4507
        %v4509 = vlaneseq
        %v4510 = vshrl.u32 %v4509, 7
        %v4511 = vsub.s32 5, %v4510
        %v4512 = vrot.slane %v4485, %v4511
        %v4513 = vlaneseq
        %v4514 = vshrl.u32 %v4513, 7
        %v4515 = vsub.s32 6, %v4514
        %v4516 = vrot.slane %v4485, %v4515
        %v4517 = vlaneseq
        %v4518 = vshrl.u32 %v4517, 7
        %v4519 = vsub.s32 7, %v4518
        %v4520 = vrot.slane %v4485, %v4519
        %v4521 = vlaneseq
        %v4522 = vshrl.u32 %v4521, 7
        %v4523 = vsub.s32 0, %v4522
        %v4524 = vrot.slane %v4486, %v4523
        %v4525 = vlaneseq
        %v4526 = vshrl.u32 %v4525, 7
        %v4527 = vsub.s32 1, %v4526
        %v4528 = vrot.slane %v4486, %v4527
        %v4529 = vlaneseq
        %v4530 = vshrl.u32 %v4529, 7
        %v4531 = vsub.s32 2, %v4530
        %v4532 = vrot.slane %v4486, %v4531
        %v4533 = vlaneseq
        %v4534 = vshrl.u32 %v4533, 7
        %v4535 = vsub.s32 3, %v4534
        %v4536 = vrot.slane %v4486, %v4535
        %v4537 = vlaneseq
        %v4538 = vshrl.u32 %v4537, 7
        %v4539 = vsub.s32 4, %v4538
        %v4540 = vrot.slane %v4486, %v4539
        %v4541 = vlaneseq
        %v4542 = vshrl.u32 %v4541, 7
        %v4543 = vsub.s32 5, %v4542
        %v4544 = vrot.slane %v4486, %v4543
        %v4545 = vlaneseq
        %v4546 = vshrl.u32 %v4545, 7
        %v4547 = vsub.s32 6, %v4546
        %v4548 = vrot.slane %v4486, %v4547
        %v4549 = vlaneseq
        %v4550 = vshrl.u32 %v4549, 7
        %v4551 = vsub.s32 7, %v4550
        %v4552 = vrot.slane %v4486, %v4551
        %v4569 = vmul.f32 %v1875, %v4492
        %v4570 = vmul.f32 %v1874, %v4496
        %v4571 = vmul.f32 %v1873, %v4500
        %v4572 = vmul.f32 %v1872, %v4504
        %v4573 = vmul.f32 %v1871, %v4508
        %v4574 = vmul.f32 %v1870, %v4512
        %v4575 = vmul.f32 %v1869, %v4516
        %v4576 = vmul.f32 %v1868, %v4520
        %v4577 = vmul.f32 %v1867, %v4524
        %v4578 = vmul.f32 %v1866, %v4528
        %v4579 = vmul.f32 %v1865, %v4532
        %v4580 = vmul.f32 %v1864, %v4536
        %v4581 = vmul.f32 %v1863, %v4540
        %v4582 = vmul.f32 %v1878, %v4544
        %v4583 = vmul.f32 %v1877, %v4548
        %v4584 = vmul.f32 %v1876, %v4552
        %4585 = vst [vmem:[#allocation2 + $0x680] sm:$0xf] %v4569
        %4586 = vst [vmem:[#allocation2 + $0x688] sm:$0xf] %v4570
        %4587 = vst [vmem:[#allocation2 + $0x690] sm:$0xf] %v4571
        %4588 = vst [vmem:[#allocation2 + $0x698] sm:$0xf] %v4572
        %4589 = vst [vmem:[#allocation2 + $0x6a0] sm:$0xf] %v4573
        %4590 = vst [vmem:[#allocation2 + $0x6a8] sm:$0xf] %v4574
        %4591 = vst [vmem:[#allocation2 + $0x6b0] sm:$0xf] %v4575
        %4592 = vst [vmem:[#allocation2 + $0x6b8] sm:$0xf] %v4576
        %4593 = vst [vmem:[#allocation2 + $0x6c0] sm:$0xf] %v4577
        %4594 = vst [vmem:[#allocation2 + $0x6c8] sm:$0xf] %v4578
        %4595 = vst [vmem:[#allocation2 + $0x6d0] sm:$0xf] %v4579
        %4596 = vst [vmem:[#allocation2 + $0x6d8] sm:$0xf] %v4580
        %4597 = vst [vmem:[#allocation2 + $0x6e0] sm:$0xf] %v4581
        %4598 = vst [vmem:[#allocation2 + $0x6e8] sm:$0xf] %v4582
        %4599 = vst [vmem:[#allocation2 + $0x6f0] sm:$0xf] %v4583
        %4600 = vst [vmem:[#allocation2 + $0x6f8] sm:$0xf] %v4584
        %v4601 = vld [vmem:[#allocation6] sm:$0xff]
        %v4602 = vld [vmem:[#allocation2] sm:$0xff]
        %v4603 = vld [vmem:[#allocation2 + $0x8] sm:$0xff]
        %v4604 = vld [vmem:[#allocation2 + $0x10] sm:$0xff]
        %v4605 = vld [vmem:[#allocation2 + $0x18] sm:$0xff]
        %v4606 = vld [vmem:[#allocation2 + $0x20] sm:$0xff]
        %v4607 = vld [vmem:[#allocation2 + $0x28] sm:$0xff]
        %v4608 = vld [vmem:[#allocation2 + $0x30] sm:$0xff]
        %v4609 = vld [vmem:[#allocation2 + $0x38] sm:$0xff]
        %v4610 = vld [vmem:[#allocation2 + $0x40] sm:$0xff]
        %v4611 = vld [vmem:[#allocation2 + $0x48] sm:$0xff]
        %v4612 = vld [vmem:[#allocation2 + $0x50] sm:$0xff]
        %v4613 = vld [vmem:[#allocation2 + $0x58] sm:$0xff]
        %v4614 = vld [vmem:[#allocation2 + $0x60] sm:$0xff]
        %v4615 = vld [vmem:[#allocation2 + $0x68] sm:$0xff]
        %v4616 = vld [vmem:[#allocation2 + $0x70] sm:$0xff]
        %v4617 = vld [vmem:[#allocation2 + $0x78] sm:$0xff]
        %v4618 = vld [vmem:[#allocation2 + $0x80] sm:$0xff]
        %v4619 = vld [vmem:[#allocation2 + $0x88] sm:$0xff]
        %v4620 = vld [vmem:[#allocation2 + $0x90] sm:$0xff]
        %v4621 = vld [vmem:[#allocation2 + $0x98] sm:$0xff]
        %v4622 = vld [vmem:[#allocation2 + $0xa0] sm:$0xff]
        %v4623 = vld [vmem:[#allocation2 + $0xa8] sm:$0xff]
        %v4624 = vld [vmem:[#allocation2 + $0xb0] sm:$0xff]
        %v4625 = vld [vmem:[#allocation2 + $0xb8] sm:$0xff]
        %v4626 = vld [vmem:[#allocation2 + $0xc0] sm:$0xff]
        %v4627 = vld [vmem:[#allocation2 + $0xc8] sm:$0xff]
        %v4628 = vld [vmem:[#allocation2 + $0xd0] sm:$0xff]
        %v4629 = vld [vmem:[#allocation2 + $0xd8] sm:$0xff]
        %v4630 = vld [vmem:[#allocation2 + $0xe0] sm:$0xff]
        %v4631 = vld [vmem:[#allocation2 + $0xe8] sm:$0xff]
        %v4632 = vld [vmem:[#allocation2 + $0xf0] sm:$0xff]
        %v4633 = vld [vmem:[#allocation2 + $0xf8] sm:$0xff]
        %v4634 = vld [vmem:[#allocation2 + $0x100] sm:$0xff]
        %v4635 = vld [vmem:[#allocation2 + $0x108] sm:$0xff]
        %v4636 = vld [vmem:[#allocation2 + $0x110] sm:$0xff]
        %v4637 = vld [vmem:[#allocation2 + $0x118] sm:$0xff]
        %v4638 = vld [vmem:[#allocation2 + $0x120] sm:$0xff]
        %v4639 = vld [vmem:[#allocation2 + $0x128] sm:$0xff]
        %v4640 = vld [vmem:[#allocation2 + $0x130] sm:$0xff]
        %v4641 = vld [vmem:[#allocation2 + $0x138] sm:$0xff]
        %v4642 = vld [vmem:[#allocation2 + $0x140] sm:$0xff]
        %v4643 = vld [vmem:[#allocation2 + $0x148] sm:$0xff]
        %v4644 = vld [vmem:[#allocation2 + $0x150] sm:$0xff]
        %v4645 = vld [vmem:[#allocation2 + $0x158] sm:$0xff]
        %v4646 = vld [vmem:[#allocation2 + $0x160] sm:$0xff]
        %v4647 = vld [vmem:[#allocation2 + $0x168] sm:$0xff]
        %v4648 = vld [vmem:[#allocation2 + $0x170] sm:$0xff]
        %v4649 = vld [vmem:[#allocation2 + $0x178] sm:$0xff]
        %v4650 = vld [vmem:[#allocation2 + $0x180] sm:$0xff]
        %v4651 = vld [vmem:[#allocation2 + $0x188] sm:$0xff]
        %v4652 = vld [vmem:[#allocation2 + $0x190] sm:$0xff]
        %v4653 = vld [vmem:[#allocation2 + $0x198] sm:$0xff]
        %v4654 = vld [vmem:[#allocation2 + $0x1a0] sm:$0xff]
        %v4655 = vld [vmem:[#allocation2 + $0x1a8] sm:$0xff]
        %v4656 = vld [vmem:[#allocation2 + $0x1b0] sm:$0xff]
        %v4657 = vld [vmem:[#allocation2 + $0x1b8] sm:$0xff]
        %v4658 = vld [vmem:[#allocation2 + $0x1c0] sm:$0xff]
        %v4659 = vld [vmem:[#allocation2 + $0x1c8] sm:$0xff]
        %v4660 = vld [vmem:[#allocation2 + $0x1d0] sm:$0xff]
        %v4661 = vld [vmem:[#allocation2 + $0x1d8] sm:$0xff]
        %v4662 = vld [vmem:[#allocation2 + $0x1e0] sm:$0xff]
        %v4663 = vld [vmem:[#allocation2 + $0x1e8] sm:$0xff]
        %v4664 = vld [vmem:[#allocation2 + $0x1f0] sm:$0xff]
        %v4665 = vld [vmem:[#allocation2 + $0x1f8] sm:$0xff]
        %v4666 = vld [vmem:[#allocation2 + $0x200] sm:$0xff]
        %v4667 = vld [vmem:[#allocation2 + $0x208] sm:$0xff]
        %v4668 = vld [vmem:[#allocation2 + $0x210] sm:$0xff]
        %v4669 = vld [vmem:[#allocation2 + $0x218] sm:$0xff]
        %v4670 = vld [vmem:[#allocation2 + $0x220] sm:$0xff]
        %v4671 = vld [vmem:[#allocation2 + $0x228] sm:$0xff]
        %v4672 = vld [vmem:[#allocation2 + $0x230] sm:$0xff]
        %v4673 = vld [vmem:[#allocation2 + $0x238] sm:$0xff]
        %v4674 = vld [vmem:[#allocation2 + $0x240] sm:$0xff]
        %v4675 = vld [vmem:[#allocation2 + $0x248] sm:$0xff]
        %v4676 = vld [vmem:[#allocation2 + $0x250] sm:$0xff]
        %v4677 = vld [vmem:[#allocation2 + $0x258] sm:$0xff]
        %v4678 = vld [vmem:[#allocation2 + $0x260] sm:$0xff]
        %v4679 = vld [vmem:[#allocation2 + $0x268] sm:$0xff]
        %v4680 = vld [vmem:[#allocation2 + $0x270] sm:$0xff]
        %v4681 = vld [vmem:[#allocation2 + $0x278] sm:$0xff]
        %v4682 = vld [vmem:[#allocation2 + $0x280] sm:$0xff]
        %v4683 = vld [vmem:[#allocation2 + $0x288] sm:$0xff]
        %v4684 = vld [vmem:[#allocation2 + $0x290] sm:$0xff]
        %v4685 = vld [vmem:[#allocation2 + $0x298] sm:$0xff]
        %v4686 = vld [vmem:[#allocation2 + $0x2a0] sm:$0xff]
        %v4687 = vld [vmem:[#allocation2 + $0x2a8] sm:$0xff]
        %v4688 = vld [vmem:[#allocation2 + $0x2b0] sm:$0xff]
        %v4689 = vld [vmem:[#allocation2 + $0x2b8] sm:$0xff]
        %v4690 = vld [vmem:[#allocation2 + $0x2c0] sm:$0xff]
        %v4691 = vld [vmem:[#allocation2 + $0x2c8] sm:$0xff]
        %v4692 = vld [vmem:[#allocation2 + $0x2d0] sm:$0xff]
        %v4693 = vld [vmem:[#allocation2 + $0x2d8] sm:$0xff]
        %v4694 = vld [vmem:[#allocation2 + $0x2e0] sm:$0xff]
        %v4695 = vld [vmem:[#allocation2 + $0x2e8] sm:$0xff]
        %v4696 = vld [vmem:[#allocation2 + $0x2f0] sm:$0xff]
        %v4697 = vld [vmem:[#allocation2 + $0x2f8] sm:$0xff]
        %v4698 = vld [vmem:[#allocation2 + $0x300] sm:$0xff]
        %v4699 = vld [vmem:[#allocation2 + $0x308] sm:$0xff]
        %v4700 = vld [vmem:[#allocation2 + $0x310] sm:$0xff]
        %v4701 = vld [vmem:[#allocation2 + $0x318] sm:$0xff]
        %v4702 = vld [vmem:[#allocation2 + $0x320] sm:$0xff]
        %v4703 = vld [vmem:[#allocation2 + $0x328] sm:$0xff]
        %v4704 = vld [vmem:[#allocation2 + $0x330] sm:$0xff]
        %v4705 = vld [vmem:[#allocation2 + $0x338] sm:$0xff]
        %v4706 = vld [vmem:[#allocation2 + $0x340] sm:$0xff]
        %v4707 = vld [vmem:[#allocation2 + $0x348] sm:$0xff]
        %v4708 = vld [vmem:[#allocation2 + $0x350] sm:$0xff]
        %v4709 = vld [vmem:[#allocation2 + $0x358] sm:$0xff]
        %v4710 = vld [vmem:[#allocation2 + $0x360] sm:$0xff]
        %v4711 = vld [vmem:[#allocation2 + $0x368] sm:$0xff]
        %v4712 = vld [vmem:[#allocation2 + $0x370] sm:$0xff]
        %v4713 = vld [vmem:[#allocation2 + $0x378] sm:$0xff]
        %v4714 = vld [vmem:[#allocation2 + $0x380] sm:$0xff]
        %v4715 = vld [vmem:[#allocation2 + $0x388] sm:$0xff]
        %v4716 = vld [vmem:[#allocation2 + $0x390] sm:$0xff]
        %v4717 = vld [vmem:[#allocation2 + $0x398] sm:$0xff]
        %v4718 = vld [vmem:[#allocation2 + $0x3a0] sm:$0xff]
        %v4719 = vld [vmem:[#allocation2 + $0x3a8] sm:$0xff]
        %v4720 = vld [vmem:[#allocation2 + $0x3b0] sm:$0xff]
        %v4721 = vld [vmem:[#allocation2 + $0x3b8] sm:$0xff]
        %v4722 = vld [vmem:[#allocation2 + $0x3c0] sm:$0xff]
        %v4723 = vld [vmem:[#allocation2 + $0x3c8] sm:$0xff]
        %v4724 = vld [vmem:[#allocation2 + $0x3d0] sm:$0xff]
        %v4725 = vld [vmem:[#allocation2 + $0x3d8] sm:$0xff]
        %v4726 = vld [vmem:[#allocation2 + $0x3e0] sm:$0xff]
        %v4727 = vld [vmem:[#allocation2 + $0x3e8] sm:$0xff]
        %v4728 = vld [vmem:[#allocation2 + $0x3f0] sm:$0xff]
        %v4729 = vld [vmem:[#allocation2 + $0x3f8] sm:$0xff]
        %v4730 = vld [vmem:[#allocation2 + $0x400] sm:$0xff]
        %v4731 = vld [vmem:[#allocation2 + $0x408] sm:$0xff]
        %v4732 = vld [vmem:[#allocation2 + $0x410] sm:$0xff]
        %v4733 = vld [vmem:[#allocation2 + $0x418] sm:$0xff]
        %v4734 = vld [vmem:[#allocation2 + $0x420] sm:$0xff]
        %v4735 = vld [vmem:[#allocation2 + $0x428] sm:$0xff]
        %v4736 = vld [vmem:[#allocation2 + $0x430] sm:$0xff]
        %v4737 = vld [vmem:[#allocation2 + $0x438] sm:$0xff]
        %v4738 = vld [vmem:[#allocation2 + $0x440] sm:$0xff]
        %v4739 = vld [vmem:[#allocation2 + $0x448] sm:$0xff]
        %v4740 = vld [vmem:[#allocation2 + $0x450] sm:$0xff]
        %v4741 = vld [vmem:[#allocation2 + $0x458] sm:$0xff]
        %v4742 = vld [vmem:[#allocation2 + $0x460] sm:$0xff]
        %v4743 = vld [vmem:[#allocation2 + $0x468] sm:$0xff]
        %v4744 = vld [vmem:[#allocation2 + $0x470] sm:$0xff]
        %v4745 = vld [vmem:[#allocation2 + $0x478] sm:$0xff]
        %v4746 = vld [vmem:[#allocation2 + $0x480] sm:$0xff]
        %v4747 = vld [vmem:[#allocation2 + $0x488] sm:$0xff]
        %v4748 = vld [vmem:[#allocation2 + $0x490] sm:$0xff]
        %v4749 = vld [vmem:[#allocation2 + $0x498] sm:$0xff]
        %v4750 = vld [vmem:[#allocation2 + $0x4a0] sm:$0xff]
        %v4751 = vld [vmem:[#allocation2 + $0x4a8] sm:$0xff]
        %v4752 = vld [vmem:[#allocation2 + $0x4b0] sm:$0xff]
        %v4753 = vld [vmem:[#allocation2 + $0x4b8] sm:$0xff]
        %v4754 = vld [vmem:[#allocation2 + $0x4c0] sm:$0xff]
        %v4755 = vld [vmem:[#allocation2 + $0x4c8] sm:$0xff]
        %v4756 = vld [vmem:[#allocation2 + $0x4d0] sm:$0xff]
        %v4757 = vld [vmem:[#allocation2 + $0x4d8] sm:$0xff]
        %v4758 = vld [vmem:[#allocation2 + $0x4e0] sm:$0xff]
        %v4759 = vld [vmem:[#allocation2 + $0x4e8] sm:$0xff]
        %v4760 = vld [vmem:[#allocation2 + $0x4f0] sm:$0xff]
        %v4761 = vld [vmem:[#allocation2 + $0x4f8] sm:$0xff]
        %v4762 = vld [vmem:[#allocation2 + $0x500] sm:$0xff]
        %v4763 = vld [vmem:[#allocation2 + $0x508] sm:$0xff]
        %v4764 = vld [vmem:[#allocation2 + $0x510] sm:$0xff]
        %v4765 = vld [vmem:[#allocation2 + $0x518] sm:$0xff]
        %v4766 = vld [vmem:[#allocation2 + $0x520] sm:$0xff]
        %v4767 = vld [vmem:[#allocation2 + $0x528] sm:$0xff]
        %v4768 = vld [vmem:[#allocation2 + $0x530] sm:$0xff]
        %v4769 = vld [vmem:[#allocation2 + $0x538] sm:$0xff]
        %v4770 = vld [vmem:[#allocation2 + $0x540] sm:$0xff]
        %v4771 = vld [vmem:[#allocation2 + $0x548] sm:$0xff]
        %v4772 = vld [vmem:[#allocation2 + $0x550] sm:$0xff]
        %v4773 = vld [vmem:[#allocation2 + $0x558] sm:$0xff]
        %v4774 = vld [vmem:[#allocation2 + $0x560] sm:$0xff]
        %v4775 = vld [vmem:[#allocation2 + $0x568] sm:$0xff]
        %v4776 = vld [vmem:[#allocation2 + $0x570] sm:$0xff]
        %v4777 = vld [vmem:[#allocation2 + $0x578] sm:$0xff]
        %v4778 = vld [vmem:[#allocation2 + $0x580] sm:$0xff]
        %v4779 = vld [vmem:[#allocation2 + $0x588] sm:$0xff]
        %v4780 = vld [vmem:[#allocation2 + $0x590] sm:$0xff]
        %v4781 = vld [vmem:[#allocation2 + $0x598] sm:$0xff]
        %v4782 = vld [vmem:[#allocation2 + $0x5a0] sm:$0xff]
        %v4783 = vld [vmem:[#allocation2 + $0x5a8] sm:$0xff]
        %v4784 = vld [vmem:[#allocation2 + $0x5b0] sm:$0xff]
        %v4785 = vld [vmem:[#allocation2 + $0x5b8] sm:$0xff]
        %v4786 = vld [vmem:[#allocation2 + $0x5c0] sm:$0xff]
        %v4787 = vld [vmem:[#allocation2 + $0x5c8] sm:$0xff]
        %v4788 = vld [vmem:[#allocation2 + $0x5d0] sm:$0xff]
        %v4789 = vld [vmem:[#allocation2 + $0x5d8] sm:$0xff]
        %v4790 = vld [vmem:[#allocation2 + $0x5e0] sm:$0xff]
        %v4791 = vld [vmem:[#allocation2 + $0x5e8] sm:$0xff]
        %v4792 = vld [vmem:[#allocation2 + $0x5f0] sm:$0xff]
        %v4793 = vld [vmem:[#allocation2 + $0x5f8] sm:$0xff]
        %v4794 = vld [vmem:[#allocation2 + $0x600] sm:$0xff]
        %v4795 = vld [vmem:[#allocation2 + $0x608] sm:$0xff]
        %v4796 = vld [vmem:[#allocation2 + $0x610] sm:$0xff]
        %v4797 = vld [vmem:[#allocation2 + $0x618] sm:$0xff]
        %v4798 = vld [vmem:[#allocation2 + $0x620] sm:$0xff]
        %v4799 = vld [vmem:[#allocation2 + $0x628] sm:$0xff]
        %v4800 = vld [vmem:[#allocation2 + $0x630] sm:$0xff]
        %v4801 = vld [vmem:[#allocation2 + $0x638] sm:$0xff]
        %v4802 = vld [vmem:[#allocation2 + $0x640] sm:$0xff]
        %v4803 = vld [vmem:[#allocation2 + $0x648] sm:$0xff]
        %v4804 = vld [vmem:[#allocation2 + $0x650] sm:$0xff]
        %v4805 = vld [vmem:[#allocation2 + $0x658] sm:$0xff]
        %v4806 = vld [vmem:[#allocation2 + $0x660] sm:$0xff]
        %v4807 = vld [vmem:[#allocation2 + $0x668] sm:$0xff]
        %v4808 = vld [vmem:[#allocation2 + $0x670] sm:$0xff]
        %v4809 = vld [vmem:[#allocation2 + $0x678] sm:$0xff]
        %v4810 = vld [vmem:[#allocation2 + $0x680] sm:$0xf]
        %v4811 = vld [vmem:[#allocation2 + $0x688] sm:$0xf]
        %v4812 = vld [vmem:[#allocation2 + $0x690] sm:$0xf]
        %v4813 = vld [vmem:[#allocation2 + $0x698] sm:$0xf]
        %v4814 = vld [vmem:[#allocation2 + $0x6a0] sm:$0xf]
        %v4815 = vld [vmem:[#allocation2 + $0x6a8] sm:$0xf]
        %v4816 = vld [vmem:[#allocation2 + $0x6b0] sm:$0xf]
        %v4817 = vld [vmem:[#allocation2 + $0x6b8] sm:$0xf]
        %v4818 = vld [vmem:[#allocation2 + $0x6c0] sm:$0xf]
        %v4819 = vld [vmem:[#allocation2 + $0x6c8] sm:$0xf]
        %v4820 = vld [vmem:[#allocation2 + $0x6d0] sm:$0xf]
        %v4821 = vld [vmem:[#allocation2 + $0x6d8] sm:$0xf]
        %v4822 = vld [vmem:[#allocation2 + $0x6e0] sm:$0xf]
        %v4823 = vld [vmem:[#allocation2 + $0x6e8] sm:$0xf]
        %v4824 = vld [vmem:[#allocation2 + $0x6f0] sm:$0xf]
        %v4825 = vld [vmem:[#allocation2 + $0x6f8] sm:$0xf]
        %vm4826 = vcmask 883712
        %v4828 = vsel %vm4826, %v4601, 0
        %vm4830 = vcmask 1043456
        %v4832 = vsel %vm4830, %v4810, 0
        %v4835 = vsel %vm4830, %v4811, 0
        %v4838 = vsel %vm4830, %v4812, 0
        %v4841 = vsel %vm4830, %v4813, 0
        %v4844 = vsel %vm4830, %v4814, 0
        %v4847 = vsel %vm4830, %v4815, 0
        %v4850 = vsel %vm4830, %v4816, 0
        %v4853 = vsel %vm4830, %v4817, 0
        %v4856 = vsel %vm4830, %v4818, 0
        %v4859 = vsel %vm4830, %v4819, 0
        %v4862 = vsel %vm4830, %v4820, 0
        %v4865 = vsel %vm4830, %v4821, 0
        %v4868 = vsel %vm4830, %v4822, 0
        %v4871 = vsel %vm4830, %v4823, 0
        %v4874 = vsel %vm4830, %v4824, 0
        %v4877 = vsel %vm4830, %v4825, 0
        %4879 = vmatprep.subr.mxu0 0.0
        %4880 = vmatpush1.msra.mxu0 0.0
        %4881 = vmatprep.subr.mxu0 0.0
        %4882 = vmatpush1.msra.mxu0 0.0
        %4883 = vmatprep.subr.mxu0 %v4835
        %4884 = vmatpush1.msra.mxu0 %v4832
        %4885 = vmatprep.subr.mxu0 %v4795
        %4886 = vmatpush1.msra.mxu0 %v4794
        %4887 = vmatprep.subr.mxu0 %v4779
        %4888 = vmatpush1.msra.mxu0 %v4778
        %4889 = vmatprep.subr.mxu0 %v4763
        %4890 = vmatpush1.msra.mxu0 %v4762
        %4891 = vmatprep.subr.mxu0 %v4747
        %4892 = vmatpush1.msra.mxu0 %v4746
        %4893 = vmatprep.subr.mxu0 %v4731
        %4894 = vmatpush1.msra.mxu0 %v4730
        %4895 = vmatprep.subr.mxu0 %v4715
        %4896 = vmatpush1.msra.mxu0 %v4714
        %4897 = vmatprep.subr.mxu0 %v4699
        %4898 = vmatpush1.msra.mxu0 %v4698
        %4899 = vmatprep.subr.mxu0 %v4683
        %4900 = vmatpush1.msra.mxu0 %v4682
        %4901 = vmatprep.subr.mxu0 %v4667
        %4902 = vmatpush1.msra.mxu0 %v4666
        %4903 = vmatprep.subr.mxu0 %v4651
        %4904 = vmatpush1.msra.mxu0 %v4650
        %4905 = vmatprep.subr.mxu0 %v4635
        %4906 = vmatpush1.msra.mxu0 %v4634
        %4907 = vmatprep.subr.mxu0 %v4619
        %4908 = vmatpush1.msra.mxu0 %v4618
        %4909 = vmatprep.subr.mxu0 %v4603
        %4910 = vmatpush1.msra.mxu0 %v4602
        %4911 = vmatprep.subr.mxu0 0.0
        %4912 = vmatpush2.msra.mxu0 0.0
        %4913 = vmatprep.subr.mxu0 0.0
        %4914 = vmatpush2.msra.mxu0 0.0
        %4915 = vmatprep.subr.mxu0 0.0
        %4916 = vmatpush2.msra.mxu0 0.0
        %4917 = vmatprep.subr.mxu0 0.0
        %4918 = vmatpush2.msra.mxu0 0.0
        %4919 = vmatprep.subr.mxu0 0.0
        %4920 = vmatpush2.msra.mxu0 0.0
        %4921 = vmatprep.subr.mxu0 0.0
        %4922 = vmatpush2.msra.mxu0 0.0
        %4923 = vmatprep.subr.mxu0 0.0
        %4924 = vmatpush2.msra.mxu0 0.0
        %4925 = vmatprep.subr.mxu0 0.0
        %4926 = vmatpush2.msra.mxu0 0.0
        %4927 = vmatprep.subr.mxu0 0.0
        %4928 = vmatpush2.msra.mxu0 0.0
        %4929 = vmatprep.subr.mxu0 0.0
        %4930 = vmatpush2.msra.mxu0 0.0
        %4931 = vmatprep.subr.mxu0 0.0
        %4932 = vmatpush2.msra.mxu0 0.0
        %4933 = vmatprep.subr.mxu0 0.0
        %4934 = vmatpush2.msra.mxu0 0.0
        %4935 = vmatprep.subr.mxu0 0.0
        %4936 = vmatpush2.msra.mxu0 0.0
        %4937 = vmatprep.subr.mxu0 0.0
        %4938 = vmatpush2.msra.mxu0 0.0
        %4939 = vmatprep.subr.mxu0 0.0
        %4940 = vmatpush2.msra.mxu0 0.0
        %4941 = vmatprep.subr.mxu0 0.0
        %4942 = vmatpush2.msra.mxu0 0.0
        %4943 = vmatprep.mubr.f32.mxu0 0.0
        %4944 = vmatmul.mubr.f32.gmra.mxu0 %v4828
        %v4945 = vpop.f32.mrf.mxu0
        %v4946 = vadd.f32 0.0, %v4945
        %v4947 = vpop.f32.mrf.mxu0
        %v4948 = vadd.f32 0.0, %v4947
        %4949 = vdwg.mxu0
        %4950 = vmatprep.subr.mxu0 0.0
        %4951 = vmatpush1.msra.mxu0 0.0
        %4952 = vmatprep.subr.mxu0 0.0
        %4953 = vmatpush1.msra.mxu0 0.0
        %4954 = vmatprep.subr.mxu0 %v4841
        %4955 = vmatpush1.msra.mxu0 %v4838
        %4956 = vmatprep.subr.mxu0 %v4797
        %4957 = vmatpush1.msra.mxu0 %v4796
        %4958 = vmatprep.subr.mxu0 %v4781
        %4959 = vmatpush1.msra.mxu0 %v4780
        %4960 = vmatprep.subr.mxu0 %v4765
        %4961 = vmatpush1.msra.mxu0 %v4764
        %4962 = vmatprep.subr.mxu0 %v4749
        %4963 = vmatpush1.msra.mxu0 %v4748
        %4964 = vmatprep.subr.mxu0 %v4733
        %4965 = vmatpush1.msra.mxu0 %v4732
        %4966 = vmatprep.subr.mxu0 %v4717
        %4967 = vmatpush1.msra.mxu0 %v4716
        %4968 = vmatprep.subr.mxu0 %v4701
        %4969 = vmatpush1.msra.mxu0 %v4700
        %4970 = vmatprep.subr.mxu0 %v4685
        %4971 = vmatpush1.msra.mxu0 %v4684
        %4972 = vmatprep.subr.mxu0 %v4669
        %4973 = vmatpush1.msra.mxu0 %v4668
        %4974 = vmatprep.subr.mxu0 %v4653
        %4975 = vmatpush1.msra.mxu0 %v4652
        %4976 = vmatprep.subr.mxu0 %v4637
        %4977 = vmatpush1.msra.mxu0 %v4636
        %4978 = vmatprep.subr.mxu0 %v4621
        %4979 = vmatpush1.msra.mxu0 %v4620
        %4980 = vmatprep.subr.mxu0 %v4605
        %4981 = vmatpush1.msra.mxu0 %v4604
        %4982 = vmatprep.subr.mxu0 0.0
        %4983 = vmatpush2.msra.mxu0 0.0
        %4984 = vmatprep.subr.mxu0 0.0
        %4985 = vmatpush2.msra.mxu0 0.0
        %4986 = vmatprep.subr.mxu0 0.0
        %4987 = vmatpush2.msra.mxu0 0.0
        %4988 = vmatprep.subr.mxu0 0.0
        %4989 = vmatpush2.msra.mxu0 0.0
        %4990 = vmatprep.subr.mxu0 0.0
        %4991 = vmatpush2.msra.mxu0 0.0
        %4992 = vmatprep.subr.mxu0 0.0
        %4993 = vmatpush2.msra.mxu0 0.0
        %4994 = vmatprep.subr.mxu0 0.0
        %4995 = vmatpush2.msra.mxu0 0.0
        %4996 = vmatprep.subr.mxu0 0.0
        %4997 = vmatpush2.msra.mxu0 0.0
        %4998 = vmatprep.subr.mxu0 0.0
        %4999 = vmatpush2.msra.mxu0 0.0
        %5000 = vmatprep.subr.mxu0 0.0
        %5001 = vmatpush2.msra.mxu0 0.0
        %5002 = vmatprep.subr.mxu0 0.0
        %5003 = vmatpush2.msra.mxu0 0.0
        %5004 = vmatprep.subr.mxu0 0.0
        %5005 = vmatpush2.msra.mxu0 0.0
        %5006 = vmatprep.subr.mxu0 0.0
        %5007 = vmatpush2.msra.mxu0 0.0
        %5008 = vmatprep.subr.mxu0 0.0
        %5009 = vmatpush2.msra.mxu0 0.0
        %5010 = vmatprep.subr.mxu0 0.0
        %5011 = vmatpush2.msra.mxu0 0.0
        %5012 = vmatprep.subr.mxu0 0.0
        %5013 = vmatpush2.msra.mxu0 0.0
        %5014 = vmatprep.mubr.f32.mxu0 0.0
        %5015 = vmatmul.mubr.f32.gmra.mxu0 %v4828
        %v5016 = vpop.f32.mrf.mxu0
        %v5017 = vadd.f32 0.0, %v5016
        %v5018 = vpop.f32.mrf.mxu0
        %v5019 = vadd.f32 0.0, %v5018
        %5020 = vdwg.mxu0
        %5021 = vmatprep.subr.mxu0 0.0
        %5022 = vmatpush1.msra.mxu0 0.0
        %5023 = vmatprep.subr.mxu0 0.0
        %5024 = vmatpush1.msra.mxu0 0.0
        %5025 = vmatprep.subr.mxu0 %v4847
        %5026 = vmatpush1.msra.mxu0 %v4844
        %5027 = vmatprep.subr.mxu0 %v4799
        %5028 = vmatpush1.msra.mxu0 %v4798
        %5029 = vmatprep.subr.mxu0 %v4783
        %5030 = vmatpush1.msra.mxu0 %v4782
        %5031 = vmatprep.subr.mxu0 %v4767
        %5032 = vmatpush1.msra.mxu0 %v4766
        %5033 = vmatprep.subr.mxu0 %v4751
        %5034 = vmatpush1.msra.mxu0 %v4750
        %5035 = vmatprep.subr.mxu0 %v4735
        %5036 = vmatpush1.msra.mxu0 %v4734
        %5037 = vmatprep.subr.mxu0 %v4719
        %5038 = vmatpush1.msra.mxu0 %v4718
        %5039 = vmatprep.subr.mxu0 %v4703
        %5040 = vmatpush1.msra.mxu0 %v4702
        %5041 = vmatprep.subr.mxu0 %v4687
        %5042 = vmatpush1.msra.mxu0 %v4686
        %5043 = vmatprep.subr.mxu0 %v4671
        %5044 = vmatpush1.msra.mxu0 %v4670
        %5045 = vmatprep.subr.mxu0 %v4655
        %5046 = vmatpush1.msra.mxu0 %v4654
        %5047 = vmatprep.subr.mxu0 %v4639
        %5048 = vmatpush1.msra.mxu0 %v4638
        %5049 = vmatprep.subr.mxu0 %v4623
        %5050 = vmatpush1.msra.mxu0 %v4622
        %5051 = vmatprep.subr.mxu0 %v4607
        %5052 = vmatpush1.msra.mxu0 %v4606
        %5053 = vmatprep.subr.mxu0 0.0
        %5054 = vmatpush2.msra.mxu0 0.0
        %5055 = vmatprep.subr.mxu0 0.0
        %5056 = vmatpush2.msra.mxu0 0.0
        %5057 = vmatprep.subr.mxu0 0.0
        %5058 = vmatpush2.msra.mxu0 0.0
        %5059 = vmatprep.subr.mxu0 0.0
        %5060 = vmatpush2.msra.mxu0 0.0
        %5061 = vmatprep.subr.mxu0 0.0
        %5062 = vmatpush2.msra.mxu0 0.0
        %5063 = vmatprep.subr.mxu0 0.0
        %5064 = vmatpush2.msra.mxu0 0.0
        %5065 = vmatprep.subr.mxu0 0.0
        %5066 = vmatpush2.msra.mxu0 0.0
        %5067 = vmatprep.subr.mxu0 0.0
        %5068 = vmatpush2.msra.mxu0 0.0
        %5069 = vmatprep.subr.mxu0 0.0
        %5070 = vmatpush2.msra.mxu0 0.0
        %5071 = vmatprep.subr.mxu0 0.0
        %5072 = vmatpush2.msra.mxu0 0.0
        %5073 = vmatprep.subr.mxu0 0.0
        %5074 = vmatpush2.msra.mxu0 0.0
        %5075 = vmatprep.subr.mxu0 0.0
        %5076 = vmatpush2.msra.mxu0 0.0
        %5077 = vmatprep.subr.mxu0 0.0
        %5078 = vmatpush2.msra.mxu0 0.0
        %5079 = vmatprep.subr.mxu0 0.0
        %5080 = vmatpush2.msra.mxu0 0.0
        %5081 = vmatprep.subr.mxu0 0.0
        %5082 = vmatpush2.msra.mxu0 0.0
        %5083 = vmatprep.subr.mxu0 0.0
        %5084 = vmatpush2.msra.mxu0 0.0
        %5085 = vmatprep.mubr.f32.mxu0 0.0
        %5086 = vmatmul.mubr.f32.gmra.mxu0 %v4828
        %v5087 = vpop.f32.mrf.mxu0
        %v5088 = vadd.f32 0.0, %v5087
        %v5089 = vpop.f32.mrf.mxu0
        %v5090 = vadd.f32 0.0, %v5089
        %5091 = vdwg.mxu0
        %5092 = vmatprep.subr.mxu0 0.0
        %5093 = vmatpush1.msra.mxu0 0.0
        %5094 = vmatprep.subr.mxu0 0.0
        %5095 = vmatpush1.msra.mxu0 0.0
        %5096 = vmatprep.subr.mxu0 %v4853
        %5097 = vmatpush1.msra.mxu0 %v4850
        %5098 = vmatprep.subr.mxu0 %v4801
        %5099 = vmatpush1.msra.mxu0 %v4800
        %5100 = vmatprep.subr.mxu0 %v4785
        %5101 = vmatpush1.msra.mxu0 %v4784
        %5102 = vmatprep.subr.mxu0 %v4769
        %5103 = vmatpush1.msra.mxu0 %v4768
        %5104 = vmatprep.subr.mxu0 %v4753
        %5105 = vmatpush1.msra.mxu0 %v4752
        %5106 = vmatprep.subr.mxu0 %v4737
        %5107 = vmatpush1.msra.mxu0 %v4736
        %5108 = vmatprep.subr.mxu0 %v4721
        %5109 = vmatpush1.msra.mxu0 %v4720
        %5110 = vmatprep.subr.mxu0 %v4705
        %5111 = vmatpush1.msra.mxu0 %v4704
        %5112 = vmatprep.subr.mxu0 %v4689
        %5113 = vmatpush1.msra.mxu0 %v4688
        %5114 = vmatprep.subr.mxu0 %v4673
        %5115 = vmatpush1.msra.mxu0 %v4672
        %5116 = vmatprep.subr.mxu0 %v4657
        %5117 = vmatpush1.msra.mxu0 %v4656
        %5118 = vmatprep.subr.mxu0 %v4641
        %5119 = vmatpush1.msra.mxu0 %v4640
        %5120 = vmatprep.subr.mxu0 %v4625
        %5121 = vmatpush1.msra.mxu0 %v4624
        %5122 = vmatprep.subr.mxu0 %v4609
        %5123 = vmatpush1.msra.mxu0 %v4608
        %5124 = vmatprep.subr.mxu0 0.0
        %5125 = vmatpush2.msra.mxu0 0.0
        %5126 = vmatprep.subr.mxu0 0.0
        %5127 = vmatpush2.msra.mxu0 0.0
        %5128 = vmatprep.subr.mxu0 0.0
        %5129 = vmatpush2.msra.mxu0 0.0
        %5130 = vmatprep.subr.mxu0 0.0
        %5131 = vmatpush2.msra.mxu0 0.0
        %5132 = vmatprep.subr.mxu0 0.0
        %5133 = vmatpush2.msra.mxu0 0.0
        %5134 = vmatprep.subr.mxu0 0.0
        %5135 = vmatpush2.msra.mxu0 0.0
        %5136 = vmatprep.subr.mxu0 0.0
        %5137 = vmatpush2.msra.mxu0 0.0
        %5138 = vmatprep.subr.mxu0 0.0
        %5139 = vmatpush2.msra.mxu0 0.0
        %5140 = vmatprep.subr.mxu0 0.0
        %5141 = vmatpush2.msra.mxu0 0.0
        %5142 = vmatprep.subr.mxu0 0.0
        %5143 = vmatpush2.msra.mxu0 0.0
        %5144 = vmatprep.subr.mxu0 0.0
        %5145 = vmatpush2.msra.mxu0 0.0
        %5146 = vmatprep.subr.mxu0 0.0
        %5147 = vmatpush2.msra.mxu0 0.0
        %5148 = vmatprep.subr.mxu0 0.0
        %5149 = vmatpush2.msra.mxu0 0.0
        %5150 = vmatprep.subr.mxu0 0.0
        %5151 = vmatpush2.msra.mxu0 0.0
        %5152 = vmatprep.subr.mxu0 0.0
        %5153 = vmatpush2.msra.mxu0 0.0
        %5154 = vmatprep.subr.mxu0 0.0
        %5155 = vmatpush2.msra.mxu0 0.0
        %5156 = vmatprep.mubr.f32.mxu0 0.0
        %5157 = vmatmul.mubr.f32.gmra.mxu0 %v4828
        %v5158 = vpop.f32.mrf.mxu0
        %v5159 = vadd.f32 0.0, %v5158
        %v5160 = vpop.f32.mrf.mxu0
        %v5161 = vadd.f32 0.0, %v5160
        %5162 = vdwg.mxu0
        %5163 = vmatprep.subr.mxu0 0.0
        %5164 = vmatpush1.msra.mxu0 0.0
        %5165 = vmatprep.subr.mxu0 0.0
        %5166 = vmatpush1.msra.mxu0 0.0
        %5167 = vmatprep.subr.mxu0 %v4859
        %5168 = vmatpush1.msra.mxu0 %v4856
        %5169 = vmatprep.subr.mxu0 %v4803
        %5170 = vmatpush1.msra.mxu0 %v4802
        %5171 = vmatprep.subr.mxu0 %v4787
        %5172 = vmatpush1.msra.mxu0 %v4786
        %5173 = vmatprep.subr.mxu0 %v4771
        %5174 = vmatpush1.msra.mxu0 %v4770
        %5175 = vmatprep.subr.mxu0 %v4755
        %5176 = vmatpush1.msra.mxu0 %v4754
        %5177 = vmatprep.subr.mxu0 %v4739
        %5178 = vmatpush1.msra.mxu0 %v4738
        %5179 = vmatprep.subr.mxu0 %v4723
        %5180 = vmatpush1.msra.mxu0 %v4722
        %5181 = vmatprep.subr.mxu0 %v4707
        %5182 = vmatpush1.msra.mxu0 %v4706
        %5183 = vmatprep.subr.mxu0 %v4691
        %5184 = vmatpush1.msra.mxu0 %v4690
        %5185 = vmatprep.subr.mxu0 %v4675
        %5186 = vmatpush1.msra.mxu0 %v4674
        %5187 = vmatprep.subr.mxu0 %v4659
        %5188 = vmatpush1.msra.mxu0 %v4658
        %5189 = vmatprep.subr.mxu0 %v4643
        %5190 = vmatpush1.msra.mxu0 %v4642
        %5191 = vmatprep.subr.mxu0 %v4627
        %5192 = vmatpush1.msra.mxu0 %v4626
        %5193 = vmatprep.subr.mxu0 %v4611
        %5194 = vmatpush1.msra.mxu0 %v4610
        %5195 = vmatprep.subr.mxu0 0.0
        %5196 = vmatpush2.msra.mxu0 0.0
        %5197 = vmatprep.subr.mxu0 0.0
        %5198 = vmatpush2.msra.mxu0 0.0
        %5199 = vmatprep.subr.mxu0 0.0
        %5200 = vmatpush2.msra.mxu0 0.0
        %5201 = vmatprep.subr.mxu0 0.0
        %5202 = vmatpush2.msra.mxu0 0.0
        %5203 = vmatprep.subr.mxu0 0.0
        %5204 = vmatpush2.msra.mxu0 0.0
        %5205 = vmatprep.subr.mxu0 0.0
        %5206 = vmatpush2.msra.mxu0 0.0
        %5207 = vmatprep.subr.mxu0 0.0
        %5208 = vmatpush2.msra.mxu0 0.0
        %5209 = vmatprep.subr.mxu0 0.0
        %5210 = vmatpush2.msra.mxu0 0.0
        %5211 = vmatprep.subr.mxu0 0.0
        %5212 = vmatpush2.msra.mxu0 0.0
        %5213 = vmatprep.subr.mxu0 0.0
        %5214 = vmatpush2.msra.mxu0 0.0
        %5215 = vmatprep.subr.mxu0 0.0
        %5216 = vmatpush2.msra.mxu0 0.0
        %5217 = vmatprep.subr.mxu0 0.0
        %5218 = vmatpush2.msra.mxu0 0.0
        %5219 = vmatprep.subr.mxu0 0.0
        %5220 = vmatpush2.msra.mxu0 0.0
        %5221 = vmatprep.subr.mxu0 0.0
        %5222 = vmatpush2.msra.mxu0 0.0
        %5223 = vmatprep.subr.mxu0 0.0
        %5224 = vmatpush2.msra.mxu0 0.0
        %5225 = vmatprep.subr.mxu0 0.0
        %5226 = vmatpush2.msra.mxu0 0.0
        %5227 = vmatprep.mubr.f32.mxu0 0.0
        %5228 = vmatmul.mubr.f32.gmra.mxu0 %v4828
        %v5229 = vpop.f32.mrf.mxu0
        %v5230 = vadd.f32 0.0, %v5229
        %v5231 = vpop.f32.mrf.mxu0
        %v5232 = vadd.f32 0.0, %v5231
        %5233 = vdwg.mxu0
        %5234 = vmatprep.subr.mxu0 0.0
        %5235 = vmatpush1.msra.mxu0 0.0
        %5236 = vmatprep.subr.mxu0 0.0
        %5237 = vmatpush1.msra.mxu0 0.0
        %5238 = vmatprep.subr.mxu0 %v4865
        %5239 = vmatpush1.msra.mxu0 %v4862
        %5240 = vmatprep.subr.mxu0 %v4805
        %5241 = vmatpush1.msra.mxu0 %v4804
        %5242 = vmatprep.subr.mxu0 %v4789
        %5243 = vmatpush1.msra.mxu0 %v4788
        %5244 = vmatprep.subr.mxu0 %v4773
        %5245 = vmatpush1.msra.mxu0 %v4772
        %5246 = vmatprep.subr.mxu0 %v4757
        %5247 = vmatpush1.msra.mxu0 %v4756
        %5248 = vmatprep.subr.mxu0 %v4741
        %5249 = vmatpush1.msra.mxu0 %v4740
        %5250 = vmatprep.subr.mxu0 %v4725
        %5251 = vmatpush1.msra.mxu0 %v4724
        %5252 = vmatprep.subr.mxu0 %v4709
        %5253 = vmatpush1.msra.mxu0 %v4708
        %5254 = vmatprep.subr.mxu0 %v4693
        %5255 = vmatpush1.msra.mxu0 %v4692
        %5256 = vmatprep.subr.mxu0 %v4677
        %5257 = vmatpush1.msra.mxu0 %v4676
        %5258 = vmatprep.subr.mxu0 %v4661
        %5259 = vmatpush1.msra.mxu0 %v4660
        %5260 = vmatprep.subr.mxu0 %v4645
        %5261 = vmatpush1.msra.mxu0 %v4644
        %5262 = vmatprep.subr.mxu0 %v4629
        %5263 = vmatpush1.msra.mxu0 %v4628
        %5264 = vmatprep.subr.mxu0 %v4613
        %5265 = vmatpush1.msra.mxu0 %v4612
        %5266 = vmatprep.subr.mxu0 0.0
        %5267 = vmatpush2.msra.mxu0 0.0
        %5268 = vmatprep.subr.mxu0 0.0
        %5269 = vmatpush2.msra.mxu0 0.0
        %5270 = vmatprep.subr.mxu0 0.0
        %5271 = vmatpush2.msra.mxu0 0.0
        %5272 = vmatprep.subr.mxu0 0.0
        %5273 = vmatpush2.msra.mxu0 0.0
        %5274 = vmatprep.subr.mxu0 0.0
        %5275 = vmatpush2.msra.mxu0 0.0
        %5276 = vmatprep.subr.mxu0 0.0
        %5277 = vmatpush2.msra.mxu0 0.0
        %5278 = vmatprep.subr.mxu0 0.0
        %5279 = vmatpush2.msra.mxu0 0.0
        %5280 = vmatprep.subr.mxu0 0.0
        %5281 = vmatpush2.msra.mxu0 0.0
        %5282 = vmatprep.subr.mxu0 0.0
        %5283 = vmatpush2.msra.mxu0 0.0
        %5284 = vmatprep.subr.mxu0 0.0
        %5285 = vmatpush2.msra.mxu0 0.0
        %5286 = vmatprep.subr.mxu0 0.0
        %5287 = vmatpush2.msra.mxu0 0.0
        %5288 = vmatprep.subr.mxu0 0.0
        %5289 = vmatpush2.msra.mxu0 0.0
        %5290 = vmatprep.subr.mxu0 0.0
        %5291 = vmatpush2.msra.mxu0 0.0
        %5292 = vmatprep.subr.mxu0 0.0
        %5293 = vmatpush2.msra.mxu0 0.0
        %5294 = vmatprep.subr.mxu0 0.0
        %5295 = vmatpush2.msra.mxu0 0.0
        %5296 = vmatprep.subr.mxu0 0.0
        %5297 = vmatpush2.msra.mxu0 0.0
        %5298 = vmatprep.mubr.f32.mxu0 0.0
        %5299 = vmatmul.mubr.f32.gmra.mxu0 %v4828
        %v5300 = vpop.f32.mrf.mxu0
        %v5301 = vadd.f32 0.0, %v5300
        %v5302 = vpop.f32.mrf.mxu0
        %v5303 = vadd.f32 0.0, %v5302
        %5304 = vdwg.mxu0
        %5305 = vmatprep.subr.mxu0 0.0
        %5306 = vmatpush1.msra.mxu0 0.0
        %5307 = vmatprep.subr.mxu0 0.0
        %5308 = vmatpush1.msra.mxu0 0.0
        %5309 = vmatprep.subr.mxu0 %v4871
        %5310 = vmatpush1.msra.mxu0 %v4868
        %5311 = vmatprep.subr.mxu0 %v4807
        %5312 = vmatpush1.msra.mxu0 %v4806
        %5313 = vmatprep.subr.mxu0 %v4791
        %5314 = vmatpush1.msra.mxu0 %v4790
        %5315 = vmatprep.subr.mxu0 %v4775
        %5316 = vmatpush1.msra.mxu0 %v4774
        %5317 = vmatprep.subr.mxu0 %v4759
        %5318 = vmatpush1.msra.mxu0 %v4758
        %5319 = vmatprep.subr.mxu0 %v4743
        %5320 = vmatpush1.msra.mxu0 %v4742
        %5321 = vmatprep.subr.mxu0 %v4727
        %5322 = vmatpush1.msra.mxu0 %v4726
        %5323 = vmatprep.subr.mxu0 %v4711
        %5324 = vmatpush1.msra.mxu0 %v4710
        %5325 = vmatprep.subr.mxu0 %v4695
        %5326 = vmatpush1.msra.mxu0 %v4694
        %5327 = vmatprep.subr.mxu0 %v4679
        %5328 = vmatpush1.msra.mxu0 %v4678
        %5329 = vmatprep.subr.mxu0 %v4663
        %5330 = vmatpush1.msra.mxu0 %v4662
        %5331 = vmatprep.subr.mxu0 %v4647
        %5332 = vmatpush1.msra.mxu0 %v4646
        %5333 = vmatprep.subr.mxu0 %v4631
        %5334 = vmatpush1.msra.mxu0 %v4630
        %5335 = vmatprep.subr.mxu0 %v4615
        %5336 = vmatpush1.msra.mxu0 %v4614
        %5337 = vmatprep.subr.mxu0 0.0
        %5338 = vmatpush2.msra.mxu0 0.0
        %5339 = vmatprep.subr.mxu0 0.0
        %5340 = vmatpush2.msra.mxu0 0.0
        %5341 = vmatprep.subr.mxu0 0.0
        %5342 = vmatpush2.msra.mxu0 0.0
        %5343 = vmatprep.subr.mxu0 0.0
        %5344 = vmatpush2.msra.mxu0 0.0
        %5345 = vmatprep.subr.mxu0 0.0
        %5346 = vmatpush2.msra.mxu0 0.0
        %5347 = vmatprep.subr.mxu0 0.0
        %5348 = vmatpush2.msra.mxu0 0.0
        %5349 = vmatprep.subr.mxu0 0.0
        %5350 = vmatpush2.msra.mxu0 0.0
        %5351 = vmatprep.subr.mxu0 0.0
        %5352 = vmatpush2.msra.mxu0 0.0
        %5353 = vmatprep.subr.mxu0 0.0
        %5354 = vmatpush2.msra.mxu0 0.0
        %5355 = vmatprep.subr.mxu0 0.0
        %5356 = vmatpush2.msra.mxu0 0.0
        %5357 = vmatprep.subr.mxu0 0.0
        %5358 = vmatpush2.msra.mxu0 0.0
        %5359 = vmatprep.subr.mxu0 0.0
        %5360 = vmatpush2.msra.mxu0 0.0
        %5361 = vmatprep.subr.mxu0 0.0
        %5362 = vmatpush2.msra.mxu0 0.0
        %5363 = vmatprep.subr.mxu0 0.0
        %5364 = vmatpush2.msra.mxu0 0.0
        %5365 = vmatprep.subr.mxu0 0.0
        %5366 = vmatpush2.msra.mxu0 0.0
        %5367 = vmatprep.subr.mxu0 0.0
        %5368 = vmatpush2.msra.mxu0 0.0
        %5369 = vmatprep.mubr.f32.mxu0 0.0
        %5370 = vmatmul.mubr.f32.gmra.mxu0 %v4828
        %v5371 = vpop.f32.mrf.mxu0
        %v5372 = vadd.f32 0.0, %v5371
        %v5373 = vpop.f32.mrf.mxu0
        %v5374 = vadd.f32 0.0, %v5373
        %5375 = vdwg.mxu0
        %5376 = vmatprep.subr.mxu0 0.0
        %5377 = vmatpush1.msra.mxu0 0.0
        %5378 = vmatprep.subr.mxu0 0.0
        %5379 = vmatpush1.msra.mxu0 0.0
        %5380 = vmatprep.subr.mxu0 %v4877
        %5381 = vmatpush1.msra.mxu0 %v4874
        %5382 = vmatprep.subr.mxu0 %v4809
        %5383 = vmatpush1.msra.mxu0 %v4808
        %5384 = vmatprep.subr.mxu0 %v4793
        %5385 = vmatpush1.msra.mxu0 %v4792
        %5386 = vmatprep.subr.mxu0 %v4777
        %5387 = vmatpush1.msra.mxu0 %v4776
        %5388 = vmatprep.subr.mxu0 %v4761
        %5389 = vmatpush1.msra.mxu0 %v4760
        %5390 = vmatprep.subr.mxu0 %v4745
        %5391 = vmatpush1.msra.mxu0 %v4744
        %5392 = vmatprep.subr.mxu0 %v4729
        %5393 = vmatpush1.msra.mxu0 %v4728
        %5394 = vmatprep.subr.mxu0 %v4713
        %5395 = vmatpush1.msra.mxu0 %v4712
        %5396 = vmatprep.subr.mxu0 %v4697
        %5397 = vmatpush1.msra.mxu0 %v4696
        %5398 = vmatprep.subr.mxu0 %v4681
        %5399 = vmatpush1.msra.mxu0 %v4680
        %5400 = vmatprep.subr.mxu0 %v4665
        %5401 = vmatpush1.msra.mxu0 %v4664
        %5402 = vmatprep.subr.mxu0 %v4649
        %5403 = vmatpush1.msra.mxu0 %v4648
        %5404 = vmatprep.subr.mxu0 %v4633
        %5405 = vmatpush1.msra.mxu0 %v4632
        %5406 = vmatprep.subr.mxu0 %v4617
        %5407 = vmatpush1.msra.mxu0 %v4616
        %5408 = vmatprep.subr.mxu0 0.0
        %5409 = vmatpush2.msra.mxu0 0.0
        %5410 = vmatprep.subr.mxu0 0.0
        %5411 = vmatpush2.msra.mxu0 0.0
        %5412 = vmatprep.subr.mxu0 0.0
        %5413 = vmatpush2.msra.mxu0 0.0
        %5414 = vmatprep.subr.mxu0 0.0
        %5415 = vmatpush2.msra.mxu0 0.0
        %5416 = vmatprep.subr.mxu0 0.0
        %5417 = vmatpush2.msra.mxu0 0.0
        %5418 = vmatprep.subr.mxu0 0.0
        %5419 = vmatpush2.msra.mxu0 0.0
        %5420 = vmatprep.subr.mxu0 0.0
        %5421 = vmatpush2.msra.mxu0 0.0
        %5422 = vmatprep.subr.mxu0 0.0
        %5423 = vmatpush2.msra.mxu0 0.0
        %5424 = vmatprep.subr.mxu0 0.0
        %5425 = vmatpush2.msra.mxu0 0.0
        %5426 = vmatprep.subr.mxu0 0.0
        %5427 = vmatpush2.msra.mxu0 0.0
        %5428 = vmatprep.subr.mxu0 0.0
        %5429 = vmatpush2.msra.mxu0 0.0
        %5430 = vmatprep.subr.mxu0 0.0
        %5431 = vmatpush2.msra.mxu0 0.0
        %5432 = vmatprep.subr.mxu0 0.0
        %5433 = vmatpush2.msra.mxu0 0.0
        %5434 = vmatprep.subr.mxu0 0.0
        %5435 = vmatpush2.msra.mxu0 0.0
        %5436 = vmatprep.subr.mxu0 0.0
        %5437 = vmatpush2.msra.mxu0 0.0
        %5438 = vmatprep.subr.mxu0 0.0
        %5439 = vmatpush2.msra.mxu0 0.0
        %5440 = vmatprep.mubr.f32.mxu0 0.0
        %5441 = vmatmul.mubr.f32.gmra.mxu0 %v4828
        %v5442 = vpop.f32.mrf.mxu0
        %v5443 = vadd.f32 0.0, %v5442
        %v5444 = vpop.f32.mrf.mxu0
        %v5445 = vadd.f32 0.0, %v5444
        %5446 = vdwg.mxu0
        %v5447 = vadd.f32 %v4946, %v4948
        %v5448 = vadd.f32 %v5447, %v5017
        %v5449 = vadd.f32 %v5448, %v5019
        %v5450 = vadd.f32 %v5449, %v5088
        %v5451 = vadd.f32 %v5450, %v5090
        %v5452 = vadd.f32 %v5451, %v5159
        %v5453 = vadd.f32 %v5452, %v5161
        %v5454 = vadd.f32 %v5453, %v5230
        %v5455 = vadd.f32 %v5454, %v5232
        %v5456 = vadd.f32 %v5455, %v5301
        %v5457 = vadd.f32 %v5456, %v5303
        %v5458 = vadd.f32 %v5457, %v5372
        %v5459 = vadd.f32 %v5458, %v5374
        %v5460 = vadd.f32 %v5459, %v5443
        %v5461 = vadd.f32 %v5460, %v5445
        %5462 = vadd.xlane.f32.xlu0 %v5461
        %v5463 = vpop.xlane.xlu0 %5462
        %v5464 = vmul.f32 %v4946, %v4946
        %v5465 = vmul.f32 %v4948, %v4948
        %v5466 = vmul.f32 %v5017, %v5017
        %v5467 = vmul.f32 %v5019, %v5019
        %v5468 = vmul.f32 %v5088, %v5088
        %v5469 = vmul.f32 %v5090, %v5090
        %v5470 = vmul.f32 %v5159, %v5159
        %v5471 = vmul.f32 %v5161, %v5161
        %v5472 = vmul.f32 %v5230, %v5230
        %v5473 = vmul.f32 %v5232, %v5232
        %v5474 = vmul.f32 %v5301, %v5301
        %v5475 = vmul.f32 %v5303, %v5303
        %v5476 = vmul.f32 %v5372, %v5372
        %v5477 = vmul.f32 %v5374, %v5374
        %v5478 = vmul.f32 %v5443, %v5443
        %v5479 = vmul.f32 %v5445, %v5445
        %v5480 = vadd.f32 %v5464, %v5465
        %v5481 = vadd.f32 %v5480, %v5466
        %v5482 = vadd.f32 %v5481, %v5467
        %v5483 = vadd.f32 %v5482, %v5468
        %v5484 = vadd.f32 %v5483, %v5469
        %v5485 = vadd.f32 %v5484, %v5470
        %v5486 = vadd.f32 %v5485, %v5471
        %v5487 = vadd.f32 %v5486, %v5472
        %v5488 = vadd.f32 %v5487, %v5473
        %v5489 = vadd.f32 %v5488, %v5474
        %v5490 = vadd.f32 %v5489, %v5475
        %v5491 = vadd.f32 %v5490, %v5476
        %v5492 = vadd.f32 %v5491, %v5477
        %v5493 = vadd.f32 %v5492, %v5478
        %v5494 = vadd.f32 %v5493, %v5479
        %5495 = vadd.xlane.f32.xlu0 %v5494
        %v5496 = vpop.xlane.xlu0 %5495
        %v5497 = vmul.f32 %v5463, 0.00048828125
        %v5498 = vmul.f32 %v5496, 0.00048828125
        %v5499 = vmul.f32 %v5497, %v5497
        %v5500 = vsub.f32 %v5498, %v5499
        %v5501 = vsub.f32 %v4946, %v5497
        %v5502 = vsub.f32 %v4948, %v5497
        %v5503 = vsub.f32 %v5017, %v5497
        %v5504 = vsub.f32 %v5019, %v5497
        %v5505 = vsub.f32 %v5088, %v5497
        %v5506 = vsub.f32 %v5090, %v5497
        %v5507 = vsub.f32 %v5159, %v5497
        %v5508 = vsub.f32 %v5161, %v5497
        %v5509 = vsub.f32 %v5230, %v5497
        %v5510 = vsub.f32 %v5232, %v5497
        %v5511 = vsub.f32 %v5301, %v5497
        %v5512 = vsub.f32 %v5303, %v5497
        %v5513 = vsub.f32 %v5372, %v5497
        %v5514 = vsub.f32 %v5374, %v5497
        %v5515 = vsub.f32 %v5443, %v5497
        %v5516 = vsub.f32 %v5445, %v5497
        %v5517 = vadd.f32 %v5500, 1e-05
        %v5518 = vrsqrt.pop %v5517
        %v5519 = vmul.f32 %v5501, %v5518
        %v5520 = vmul.f32 %v5502, %v5518
        %v5521 = vmul.f32 %v5503, %v5518
        %v5522 = vmul.f32 %v5504, %v5518
        %v5523 = vmul.f32 %v5505, %v5518
        %v5524 = vmul.f32 %v5506, %v5518
        %v5525 = vmul.f32 %v5507, %v5518
        %v5526 = vmul.f32 %v5508, %v5518
        %v5527 = vmul.f32 %v5509, %v5518
        %v5528 = vmul.f32 %v5510, %v5518
        %v5529 = vmul.f32 %v5511, %v5518
        %v5530 = vmul.f32 %v5512, %v5518
        %v5531 = vmul.f32 %v5513, %v5518
        %v5532 = vmul.f32 %v5514, %v5518
        %v5533 = vmul.f32 %v5515, %v5518
        %v5534 = vmul.f32 %v5516, %v5518
        %vm5535 = vcmp.ge.f32.partialorder %v5519, 0.0
        %vm5536 = vcmp.ge.f32.partialorder %v5520, 0.0
        %vm5537 = vcmp.ge.f32.partialorder %v5521, 0.0
        %vm5538 = vcmp.ge.f32.partialorder %v5522, 0.0
        %vm5539 = vcmp.ge.f32.partialorder %v5523, 0.0
        %vm5540 = vcmp.ge.f32.partialorder %v5524, 0.0
        %vm5541 = vcmp.ge.f32.partialorder %v5525, 0.0
        %vm5542 = vcmp.ge.f32.partialorder %v5526, 0.0
        %vm5543 = vcmp.ge.f32.partialorder %v5527, 0.0
        %vm5544 = vcmp.ge.f32.partialorder %v5528, 0.0
        %vm5545 = vcmp.ge.f32.partialorder %v5529, 0.0
        %vm5546 = vcmp.ge.f32.partialorder %v5530, 0.0
        %vm5547 = vcmp.ge.f32.partialorder %v5531, 0.0
        %vm5548 = vcmp.ge.f32.partialorder %v5532, 0.0
        %vm5549 = vcmp.ge.f32.partialorder %v5533, 0.0
        %vm5550 = vcmp.ge.f32.partialorder %v5534, 0.0
        %v5551 = vmul.f32 %v5519, 0.2
        %v5552 = vmul.f32 %v5520, 0.2
        %v5553 = vmul.f32 %v5521, 0.2
        %v5554 = vmul.f32 %v5522, 0.2
        %v5555 = vmul.f32 %v5523, 0.2
        %v5556 = vmul.f32 %v5524, 0.2
        %v5557 = vmul.f32 %v5525, 0.2
        %v5558 = vmul.f32 %v5526, 0.2
        %v5559 = vmul.f32 %v5527, 0.2
        %v5560 = vmul.f32 %v5528, 0.2
        %v5561 = vmul.f32 %v5529, 0.2
        %v5562 = vmul.f32 %v5530, 0.2
        %v5563 = vmul.f32 %v5531, 0.2
        %v5564 = vmul.f32 %v5532, 0.2
        %v5565 = vmul.f32 %v5533, 0.2
        %v5566 = vmul.f32 %v5534, 0.2
        %v5567 = vsel %vm5535, %v5519, %v5551
        %v5568 = vsel %vm5536, %v5520, %v5552
        %v5569 = vsel %vm5537, %v5521, %v5553
        %v5570 = vsel %vm5538, %v5522, %v5554
        %v5571 = vsel %vm5539, %v5523, %v5555
        %v5572 = vsel %vm5540, %v5524, %v5556
        %v5573 = vsel %vm5541, %v5525, %v5557
        %v5574 = vsel %vm5542, %v5526, %v5558
        %v5575 = vsel %vm5543, %v5527, %v5559
        %v5576 = vsel %vm5544, %v5528, %v5560
        %v5577 = vsel %vm5545, %v5529, %v5561
        %v5578 = vsel %vm5546, %v5530, %v5562
        %v5579 = vsel %vm5547, %v5531, %v5563
        %v5580 = vsel %vm5548, %v5532, %v5564
        %v5581 = vsel %vm5549, %v5533, %v5565
        %v5582 = vsel %vm5550, %v5534, %v5566
        %5583 = vst [vmem:[%s211] sm:$0xff] %v5567
        %5584 = vst [vmem:[%s211 + $0x8] sm:$0xff] %v5568
        %5585 = vst [vmem:[%s211 + $0x10] sm:$0xff] %v5569
        %5586 = vst [vmem:[%s211 + $0x18] sm:$0xff] %v5570
        %5587 = vst [vmem:[%s211 + $0x20] sm:$0xff] %v5571
        %5588 = vst [vmem:[%s211 + $0x28] sm:$0xff] %v5572
        %5589 = vst [vmem:[%s211 + $0x30] sm:$0xff] %v5573
        %5590 = vst [vmem:[%s211 + $0x38] sm:$0xff] %v5574
        %5591 = vst [vmem:[%s211 + $0x40] sm:$0xff] %v5575
        %5592 = vst [vmem:[%s211 + $0x48] sm:$0xff] %v5576
        %5593 = vst [vmem:[%s211 + $0x50] sm:$0xff] %v5577
        %5594 = vst [vmem:[%s211 + $0x58] sm:$0xff] %v5578
        %5595 = vst [vmem:[%s211 + $0x60] sm:$0xff] %v5579
        %5596 = vst [vmem:[%s211 + $0x68] sm:$0xff] %v5580
        %5597 = vst [vmem:[%s211 + $0x70] sm:$0xff] %v5581
        %5598 = vst [vmem:[%s211 + $0x78] sm:$0xff] %v5582
        %s5599 = sand.u32 %s97, 1
        %s5600 = scalar_lea.sflag [#allocation5], %s5599
        %s5601 = sand.u32 %s97, 1
        %s5602 = smul.addr %s5601, 128
        %s5603 = scalar_lea.vmem [#allocation9], %s5602
        // Predicated region
        $region45: #{tpu_custom_call.1} parent=31 // pred_check
          %p5604 = pneg %p107
        $region46: #{tpu_custom_call.1} parent=31 // pred_check_branch
          %5606 = sbr.rel (%p5604) target = $region48
        $region47: #{tpu_custom_call.1} parent=31 // pred_region
          %s5608 = ssub.s32 2048, 2048
          %5609 = vsyncadd %s5600, %s5608
          %s5610 = smul.addr %s21, 16
          %s5611 = smul.addr %s5610, 128
          %s5612 = scalar_lea.hbm %s3, %s5611
          %s5614 = sshll.u32 %s5603, 4
          %s5615 = int_to_ptr.vmem [resolvable:$true] %s5614
          %5617 = dma.vmem_to_hbm [thread:$0]  %s5615, 2048, %s5612, %s5600
        $region48: #{tpu_custom_call.1} parent=31 // pred_fallthru
          _
      $region32: #{tpu_custom_call.1} parent=5 // pred_fallthru
        _
      %p5618 = scmp.le.s32.totalorder 2, %s16
      // Predicated region
      $region49: #{tpu_custom_call.1} parent=5 // pred_check
        %p5619 = pneg %p5618
      $region50: #{tpu_custom_call.1} parent=5 // pred_check_branch
        %5621 = sbr.rel (%p5619) target = $region52
      $region51: #{tpu_custom_call.1} parent=5 // pred_region
        %s5622 = ssub.s32 %s16, 2
        // Predicated region
        $region53: #{tpu_custom_call.1} parent=51 // pred_check
          %p5623 = pneg %p113
        $region54: #{tpu_custom_call.1} parent=51 // pred_check_branch
          %5625 = sbr.rel (%p5623) target = $region56
        $region55: #{tpu_custom_call.1} parent=51 // pred_region
          %s5626 = sand.u32 %s98, 1
          %s5627 = scalar_lea.sflag [#allocation5], %s5626
          %s5628 = sand.u32 %s98, 1
          %s5629 = smul.addr %s5628, 128
          %s5630 = scalar_lea.vmem [#allocation9], %s5629
          %5631 = dma.done %s5627, 2048
        $region56: #{tpu_custom_call.1} parent=51 // pred_fallthru
          _
      $region52: #{tpu_custom_call.1} parent=5 // pred_fallthru
        _
    $region6: #{tpu_custom_call.1} parent=1 // loop_footer
      %s20 = sadd.s32 1, %s16
    $region7: #{tpu_custom_call.1} parent=1 // loop_footer_branch
      %15 = sbr.rel target = $region3
    $region8: #{tpu_custom_call.1} parent=1 // loop_exit
      _
    %5632 = vsyncpa [#allocation4], 1
    %s5633 = scalar_lea.sflag [#allocation4], 1
    %5634 = vsyncpa %s5633, 1
    %5635 = vsyncpa [#allocation7], 1
    %5636 = vsyncpa [#allocation5], 1
    %s5637 = scalar_lea.sflag [#allocation5], 1
    %5638 = vsyncpa %s5637, 1

</llo_original>
